<compile_context>
chip_gen: v7x
topology: tpu7x:2x2x1
jax: 0.10.0
libtpu: 0.0.40
codegen_flags: <defaults>
</compile_context>

<pallas_src>
import functools

import jax
import jax.numpy as jnp
from jax.experimental import pallas as pl
from jax.experimental.pallas import tpu as pltpu

HIDDEN = 1200


def _round_up(x, m):
    return ((x + m - 1) // m) * m


def _generator_kernel(x_ref, w1_ref, b1_ref, w2_ref, b2_ref, w3_ref, b3_ref,
                      o_ref):
    # Layer 1: (TB, Lp) @ (Lp, Hp) -> f32 acc, +bias, ReLU, cast for next MXU op.
    h1 = jnp.dot(x_ref[...], w1_ref[...], preferred_element_type=jnp.float32)
    h1 = jnp.maximum(h1 + b1_ref[...], 0.0).astype(w2_ref.dtype)
    # Layer 2: (TB, Hp) @ (Hp, Hp)
    h2 = jnp.dot(h1, w2_ref[...], preferred_element_type=jnp.float32)
    h2 = jnp.maximum(h2 + b2_ref[...], 0.0).astype(w3_ref.dtype)
    # Layer 3 + sigmoid: exp and approx reciprocal both run on the EUP slot.
    logits = jnp.dot(h2, w3_ref[...], preferred_element_type=jnp.float32)
    logits = logits + b3_ref[...]
    o_ref[...] = pl.reciprocal(1.0 + jnp.exp(-logits), approx=True)


def generator_forward(x, params, img_size, *, compute_dtype=jnp.bfloat16):
    """x: (B, latent) float32.  Returns (B, *img_size) float32."""
    w1, b1, w2, b2, w3, b3 = params
    B, L = x.shape
    H = w1.shape[1]
    P = w3.shape[1]

    # Lane-dense padding of every feature dim (zero pads are exact: padded
    # hidden units see ReLU(0 + 0) = 0 and contribute nothing downstream).
    Lp = _round_up(L, 128)
    Hp = _round_up(H, 128)
    Pp = _round_up(P, 128)

    # Batch tile: MXU-shaped (256) for real batches, sublane-rounded for demos.
    TB = 256 if B >= 256 else _round_up(B, 8)
    Bp = _round_up(B, TB)
    nb = Bp // TB

    xd = x.astype(compute_dtype)
    xp = jnp.zeros((Bp, Lp), compute_dtype).at[:B, :L].set(xd)
    w1p = jnp.zeros((Lp, Hp), compute_dtype).at[:L, :H].set(w1.astype(compute_dtype))
    b1p = jnp.zeros((1, Hp), jnp.float32).at[:, :H].set(b1)
    w2p = jnp.zeros((Hp, Hp), compute_dtype).at[:H, :H].set(w2.astype(compute_dtype))
    b2p = jnp.zeros((1, Hp), jnp.float32).at[:, :H].set(b2)
    w3p = jnp.zeros((Hp, Pp), compute_dtype).at[:H, :P].set(w3.astype(compute_dtype))
    b3p = jnp.zeros((1, Pp), jnp.float32).at[:, :P].set(b3)

    # Weights/biases: constant index_map -> resident in VMEM across the grid.
    resident = lambda shape: pl.BlockSpec(shape, lambda i: (0, 0))

    out_flat = pl.pallas_call(
        _generator_kernel,
        out_shape=jax.ShapeDtypeStruct((Bp, Pp), jnp.float32),
        grid_spec=pltpu.PrefetchScalarGridSpec(
            num_scalar_prefetch=0,
            grid=(nb,),
            in_specs=[
                pl.BlockSpec((TB, Lp), lambda i: (i, 0)),   # activations: tiled over batch
                resident((Lp, Hp)), resident((1, Hp)),
                resident((Hp, Hp)), resident((1, Hp)),
                resident((Hp, Pp)), resident((1, Pp)),
            ],
            out_specs=pl.BlockSpec((TB, Pp), lambda i: (i, 0)),
        ),
        compiler_params=pltpu.CompilerParams(
            dimension_semantics=("parallel",),   # megacore: shard batch tiles across TCs
            vmem_limit_bytes=48 << 20,           # headroom on v7x's 64 MiB VMEM
        ),
    )(xp, w1p, b1p, w2p, b2p, w3p, b3p)

    # Strip batch / output padding, then NCHW view (pure glue).
    return out_flat[:B, :P].reshape(B, *img_size)


def init_params(key, latent_dim, img_size, hidden=HIDDEN):
    """Deterministic PyTorch-style Linear init: U(-1/sqrt(fan_in), 1/sqrt(fan_in))."""
    out_dim = 1
    for d in img_size:
        out_dim *= d
    dims = [(latent_dim, hidden), (hidden, hidden), (hidden, out_dim)]
    params = []
    for (fan_in, fan_out) in dims:
        key, kw, kb = jax.random.split(key, 3)
        bound = 1.0 / (fan_in ** 0.5)
        w = jax.random.uniform(kw, (fan_in, fan_out), jnp.float32, -bound, bound)
        b = jax.random.uniform(kb, (1, fan_out), jnp.float32, -bound, bound)
        params += [w, b]
    return tuple(params)


def _reference_forward(x, params, img_size):
    w1, b1, w2, b2, w3, b3 = params
    h = jnp.maximum(x @ w1 + b1, 0.0)
    h = jnp.maximum(h @ w2 + b2, 0.0)
    y = jax.nn.sigmoid(h @ w3 + b3)
    return y.reshape(x.shape[0], *img_size)


if __name__ == "__main__":
    # Small, module-consistent shapes: latent_size=(32,), img_size=(1, 16, 16)
    img_size = (1, 16, 16)
    latent_dim = 32
    batch = 8

    key = jax.random.PRNGKey(0)
    key, kx = jax.random.split(key)
    x = jax.random.normal(kx, (batch, latent_dim), jnp.float32)
    params = init_params(key, latent_dim, img_size)

    fwd = jax.jit(functools.partial(generator_forward, img_size=img_size))
    out = fwd(x, params)
    out = jax.block_until_ready(out)

    ref = _reference_forward(x, params, img_size)
    assert out.shape == (batch, *img_size), out.shape
    # bf16 matmul inputs (f32 accumulation) -> loosen tolerance vs f32 reference.
    assert jnp.allclose(out, ref, atol=2e-2, rtol=2e-2), "mismatch vs reference"

    print("KERNEL_OK")
</pallas_src>

<mosaic_0001>
module attributes {stable_mosaic.version = 11 : i64} {
  func.func @_generator_kernel(%arg0: i32, %arg1: memref<8x128xbf16, #tpu.memory_space<vmem>>, %arg2: memref<128x1280xbf16, #tpu.memory_space<vmem>>, %arg3: memref<1x1280xf32, #tpu.memory_space<vmem>>, %arg4: memref<1280x1280xbf16, #tpu.memory_space<vmem>>, %arg5: memref<1x1280xf32, #tpu.memory_space<vmem>>, %arg6: memref<1280x256xbf16, #tpu.memory_space<vmem>>, %arg7: memref<1x256xf32, #tpu.memory_space<vmem>>, %arg8: memref<8x256xf32, #tpu.memory_space<vmem>>) attributes {dimension_semantics = [#tpu.dimension_semantics<parallel>], iteration_bounds = array<i64: 1>, scalar_prefetch = 0 : i64, scratch_operands = 0 : i64, tpu.core_type = #tpu.core_type<tc>, window_params = [{transform_indices = @transform_0, window_bounds = array<i64: 8, 128>}, {pipeline_mode = #tpu.pipeline_mode<synchronous>, transform_indices = @transform_1, window_bounds = array<i64: 128, 1280>}, {pipeline_mode = #tpu.pipeline_mode<synchronous>, transform_indices = @transform_2, window_bounds = array<i64: 1, 1280>}, {pipeline_mode = #tpu.pipeline_mode<synchronous>, transform_indices = @transform_3, window_bounds = array<i64: 1280, 1280>}, {pipeline_mode = #tpu.pipeline_mode<synchronous>, transform_indices = @transform_4, window_bounds = array<i64: 1, 1280>}, {pipeline_mode = #tpu.pipeline_mode<synchronous>, transform_indices = @transform_5, window_bounds = array<i64: 1280, 256>}, {pipeline_mode = #tpu.pipeline_mode<synchronous>, transform_indices = @transform_6, window_bounds = array<i64: 1, 256>}, {transform_indices = @transform_7, window_bounds = array<i64: 8, 256>}]} {
    %c0 = arith.constant 0 : index
    %c0_0 = arith.constant 0 : index
    %0 = vector.load %arg1[%c0, %c0_0] : memref<8x128xbf16, #tpu.memory_space<vmem>>, vector<8x128xbf16>
    %c0_1 = arith.constant 0 : index
    %c0_2 = arith.constant 0 : index
    %1 = vector.load %arg2[%c0_1, %c0_2] : memref<128x1280xbf16, #tpu.memory_space<vmem>>, vector<128x1280xbf16>
    %cst = arith.constant dense<0.000000e+00> : vector<8x1280xf32>
    %2 = tpu.matmul %0, %1, %cst {dimension_numbers = #tpu.dot_dimension_numbers<[1], [0], [0], [1], [0, 0, 1, 1], [], []>} : vector<8x128xbf16>, vector<128x1280xbf16>, vector<8x1280xf32> -> vector<8x1280xf32>
    %c0_3 = arith.constant 0 : index
    %c0_4 = arith.constant 0 : index
    %3 = vector.load %arg3[%c0_3, %c0_4] : memref<1x1280xf32, #tpu.memory_space<vmem>>, vector<1x1280xf32>
    %4 = vector.broadcast %3 : vector<1x1280xf32> to vector<8x1280xf32>
    %5 = arith.addf %2, %4 : vector<8x1280xf32>
    %cst_5 = arith.constant 0.000000e+00 : f32
    %6 = vector.broadcast %cst_5 : f32 to vector<8x1280xf32>
    %7 = arith.maximumf %5, %6 : vector<8x1280xf32>
    %8 = arith.truncf %7 : vector<8x1280xf32> to vector<8x1280xbf16>
    %c0_6 = arith.constant 0 : index
    %c0_7 = arith.constant 0 : index
    %9 = vector.load %arg4[%c0_6, %c0_7] : memref<1280x1280xbf16, #tpu.memory_space<vmem>>, vector<1280x1280xbf16>
    %cst_8 = arith.constant dense<0.000000e+00> : vector<8x1280xf32>
    %10 = tpu.matmul %8, %9, %cst_8 {dimension_numbers = #tpu.dot_dimension_numbers<[1], [0], [0], [1], [0, 0, 1, 1], [], []>} : vector<8x1280xbf16>, vector<1280x1280xbf16>, vector<8x1280xf32> -> vector<8x1280xf32>
    %c0_9 = arith.constant 0 : index
    %c0_10 = arith.constant 0 : index
    %11 = vector.load %arg5[%c0_9, %c0_10] : memref<1x1280xf32, #tpu.memory_space<vmem>>, vector<1x1280xf32>
    %12 = vector.broadcast %11 : vector<1x1280xf32> to vector<8x1280xf32>
    %13 = arith.addf %10, %12 : vector<8x1280xf32>
    %cst_11 = arith.constant 0.000000e+00 : f32
    %14 = vector.broadcast %cst_11 : f32 to vector<8x1280xf32>
    %15 = arith.maximumf %13, %14 : vector<8x1280xf32>
    %16 = arith.truncf %15 : vector<8x1280xf32> to vector<8x1280xbf16>
    %c0_12 = arith.constant 0 : index
    %c0_13 = arith.constant 0 : index
    %17 = vector.load %arg6[%c0_12, %c0_13] : memref<1280x256xbf16, #tpu.memory_space<vmem>>, vector<1280x256xbf16>
    %cst_14 = arith.constant dense<0.000000e+00> : vector<8x256xf32>
    %18 = tpu.matmul %16, %17, %cst_14 {dimension_numbers = #tpu.dot_dimension_numbers<[1], [0], [0], [1], [0, 0, 1, 1], [], []>} : vector<8x1280xbf16>, vector<1280x256xbf16>, vector<8x256xf32> -> vector<8x256xf32>
    %c0_15 = arith.constant 0 : index
    %c0_16 = arith.constant 0 : index
    %19 = vector.load %arg7[%c0_15, %c0_16] : memref<1x256xf32, #tpu.memory_space<vmem>>, vector<1x256xf32>
    %20 = vector.broadcast %19 : vector<1x256xf32> to vector<8x256xf32>
    %21 = arith.addf %18, %20 : vector<8x256xf32>
    %cst_17 = arith.constant 0.000000e+00 : f32
    %22 = vector.broadcast %cst_17 : f32 to vector<8x256xf32>
    %23 = arith.subf %22, %21 : vector<8x256xf32>
    %24 = math.exp %23 : vector<8x256xf32>
    %cst_18 = arith.constant 1.000000e+00 : f32
    %25 = vector.broadcast %cst_18 : f32 to vector<8x256xf32>
    %26 = arith.addf %25, %24 : vector<8x256xf32>
    %27 = tpu.reciprocal %26 {approx = true} : vector<8x256xf32> -> vector<8x256xf32>
    %c0_19 = arith.constant 0 : index
    %c0_20 = arith.constant 0 : index
    %28 = vector.load %arg8[%c0_19, %c0_20] : memref<8x256xf32, #tpu.memory_space<vmem>>, vector<8x256xf32>
    tpu.vector_store %arg8[%c0_19, %c0_20], %27 {strides = array<i32>} : memref<8x256xf32, #tpu.memory_space<vmem>>, vector<8x256xf32>,
    return
  }
  func.func @transform_0(%arg0: i32) -> (i32, i32) {
    %c0_i32 = arith.constant 0 : i32
    %c0_i32_0 = arith.constant 0 : i32
    return %arg0, %c0_i32 : i32, i32
  }
  func.func @transform_1(%arg0: i32) -> (i32, i32) {
    %c0_i32 = arith.constant 0 : i32
    %c0_i32_0 = arith.constant 0 : i32
    %c0_i32_1 = arith.constant 0 : i32
    return %c0_i32, %c0_i32_0 : i32, i32
  }
  func.func @transform_2(%arg0: i32) -> (i32, i32) {
    %c0_i32 = arith.constant 0 : i32
    %c0_i32_0 = arith.constant 0 : i32
    %c0_i32_1 = arith.constant 0 : i32
    return %c0_i32, %c0_i32_0 : i32, i32
  }
  func.func @transform_3(%arg0: i32) -> (i32, i32) {
    %c0_i32 = arith.constant 0 : i32
    %c0_i32_0 = arith.constant 0 : i32
    %c0_i32_1 = arith.constant 0 : i32
    return %c0_i32, %c0_i32_0 : i32, i32
  }
  func.func @transform_4(%arg0: i32) -> (i32, i32) {
    %c0_i32 = arith.constant 0 : i32
    %c0_i32_0 = arith.constant 0 : i32
    %c0_i32_1 = arith.constant 0 : i32
    return %c0_i32, %c0_i32_0 : i32, i32
  }
  func.func @transform_5(%arg0: i32) -> (i32, i32) {
    %c0_i32 = arith.constant 0 : i32
    %c0_i32_0 = arith.constant 0 : i32
    %c0_i32_1 = arith.constant 0 : i32
    return %c0_i32, %c0_i32_0 : i32, i32
  }
  func.func @transform_6(%arg0: i32) -> (i32, i32) {
    %c0_i32 = arith.constant 0 : i32
    %c0_i32_0 = arith.constant 0 : i32
    %c0_i32_1 = arith.constant 0 : i32
    return %c0_i32, %c0_i32_0 : i32, i32
  }
  func.func @transform_7(%arg0: i32) -> (i32, i32) {
    %c0_i32 = arith.constant 0 : i32
    %c0_i32_0 = arith.constant 0 : i32
    return %arg0, %c0_i32 : i32, i32
  }
}

</mosaic_0001>

<llo_original>
// kernel: generator_forward.1
$region0: #{generator_forward.1}
  #allocation0 [shape = 'u32[]', space=smem, size = 0x4, offset = 0x4, fixed_abs, tag = 'smem constant byte address 0x4 - core index']
  #allocation1 [shape = 'u32[144,128]{1,0:T(1,128)}', space=vmem, size = 0x12000, scoped, tag = 'internal scratch']
  %s0 = inlined_call_operand.vmem [shape: bf16[8,128], index: 0, kind: input, shape index: {}]
  %s1 = inlined_call_operand.vmem [shape: bf16[128,1280], index: 1, kind: input, shape index: {}]
  %s2 = inlined_call_operand.vmem [shape: f32[1,1280], index: 2, kind: input, shape index: {}]
  %s3 = inlined_call_operand.vmem [shape: bf16[1280,1280], index: 3, kind: input, shape index: {}]
  %s4 = inlined_call_operand.vmem [shape: f32[1,1280], index: 4, kind: input, shape index: {}]
  %s5 = inlined_call_operand.vmem [shape: bf16[1280,256], index: 5, kind: input, shape index: {}]
  %s6 = inlined_call_operand.vmem [shape: f32[1,256], index: 6, kind: input, shape index: {}]
  %s7 = inlined_call_operand.vmem [shape: f32[8,256], index: 7, kind: output, shape index: {}]
  %s8 = sld [smem:[#allocation0]]
  $region38: #{generator_forward.1} parent=0
    _
  %s10 = ssub.s32 1, %s8
  %s11 = scalar_select 0, %s10, %s8
  // Predicated region
  $region2: #{generator_forward.1} parent=0 // pred_check
    _
  $region3: #{generator_forward.1} parent=0 // pred_check_branch
    %13 = sbr.rel (0) target = $region5
  $region4: #{generator_forward.1} parent=0 // pred_region
    _
  $region5: #{generator_forward.1} parent=0 // pred_fallthru
    _
  // Predicated region
  $region6: #{generator_forward.1} parent=0 // pred_check
    _
  $region7: #{generator_forward.1} parent=0 // pred_check_branch
    %15 = sbr.rel (0) target = $region9
  $region8: #{generator_forward.1} parent=0 // pred_region
    _
  $region9: #{generator_forward.1} parent=0 // pred_fallthru
    _
  // Predicated region
  $region10: #{generator_forward.1} parent=0 // pred_check
    _
  $region11: #{generator_forward.1} parent=0 // pred_check_branch
    %17 = sbr.rel (0) target = $region13
  $region12: #{generator_forward.1} parent=0 // pred_region
    _
  $region13: #{generator_forward.1} parent=0 // pred_fallthru
    _
  // Predicated region
  $region14: #{generator_forward.1} parent=0 // pred_check
    _
  $region15: #{generator_forward.1} parent=0 // pred_check_branch
    %19 = sbr.rel (0) target = $region17
  $region16: #{generator_forward.1} parent=0 // pred_region
    _
  $region17: #{generator_forward.1} parent=0 // pred_fallthru
    _
  // Predicated region
  $region18: #{generator_forward.1} parent=0 // pred_check
    _
  $region19: #{generator_forward.1} parent=0 // pred_check_branch
    %21 = sbr.rel (0) target = $region21
  $region20: #{generator_forward.1} parent=0 // pred_region
    _
  $region21: #{generator_forward.1} parent=0 // pred_fallthru
    _
  // Predicated region
  $region22: #{generator_forward.1} parent=0 // pred_check
    _
  $region23: #{generator_forward.1} parent=0 // pred_check_branch
    %23 = sbr.rel (0) target = $region25
  $region24: #{generator_forward.1} parent=0 // pred_region
    _
  $region25: #{generator_forward.1} parent=0 // pred_fallthru
    _
  // Predicated region
  $region26: #{generator_forward.1} parent=0 // pred_check
    _
  $region27: #{generator_forward.1} parent=0 // pred_check_branch
    %25 = sbr.rel (0) target = $region29
  $region28: #{generator_forward.1} parent=0 // pred_region
    _
  $region29: #{generator_forward.1} parent=0 // pred_fallthru
    _
  %v27 = vld [vmem:[%s0] sm:$0xf]
  %v28 = vld [vmem:[%s1] sm:$0xff]
  %v29 = vld [vmem:[%s1 + $0x8] sm:$0xff]
  %v30 = vld [vmem:[%s1 + $0x10] sm:$0xff]
  %v31 = vld [vmem:[%s1 + $0x18] sm:$0xff]
  %v32 = vld [vmem:[%s1 + $0x20] sm:$0xff]
  %v33 = vld [vmem:[%s1 + $0x28] sm:$0xff]
  %v34 = vld [vmem:[%s1 + $0x30] sm:$0xff]
  %v35 = vld [vmem:[%s1 + $0x38] sm:$0xff]
  %v36 = vld [vmem:[%s1 + $0x40] sm:$0xff]
  %v37 = vld [vmem:[%s1 + $0x48] sm:$0xff]
  %v38 = vld [vmem:[%s1 + $0x50] sm:$0xff]
  %v39 = vld [vmem:[%s1 + $0x58] sm:$0xff]
  %v40 = vld [vmem:[%s1 + $0x60] sm:$0xff]
  %v41 = vld [vmem:[%s1 + $0x68] sm:$0xff]
  %v42 = vld [vmem:[%s1 + $0x70] sm:$0xff]
  %v43 = vld [vmem:[%s1 + $0x78] sm:$0xff]
  %v44 = vld [vmem:[%s1 + $0x80] sm:$0xff]
  %v45 = vld [vmem:[%s1 + $0x88] sm:$0xff]
  %v46 = vld [vmem:[%s1 + $0x90] sm:$0xff]
  %v47 = vld [vmem:[%s1 + $0x98] sm:$0xff]
  %v48 = vld [vmem:[%s1 + $0xa0] sm:$0xff]
  %v49 = vld [vmem:[%s1 + $0xa8] sm:$0xff]
  %v50 = vld [vmem:[%s1 + $0xb0] sm:$0xff]
  %v51 = vld [vmem:[%s1 + $0xb8] sm:$0xff]
  %v52 = vld [vmem:[%s1 + $0xc0] sm:$0xff]
  %v53 = vld [vmem:[%s1 + $0xc8] sm:$0xff]
  %v54 = vld [vmem:[%s1 + $0xd0] sm:$0xff]
  %v55 = vld [vmem:[%s1 + $0xd8] sm:$0xff]
  %v56 = vld [vmem:[%s1 + $0xe0] sm:$0xff]
  %v57 = vld [vmem:[%s1 + $0xe8] sm:$0xff]
  %v58 = vld [vmem:[%s1 + $0xf0] sm:$0xff]
  %v59 = vld [vmem:[%s1 + $0xf8] sm:$0xff]
  %v60 = vld [vmem:[%s1 + $0x100] sm:$0xff]
  %v61 = vld [vmem:[%s1 + $0x108] sm:$0xff]
  %v62 = vld [vmem:[%s1 + $0x110] sm:$0xff]
  %v63 = vld [vmem:[%s1 + $0x118] sm:$0xff]
  %v64 = vld [vmem:[%s1 + $0x120] sm:$0xff]
  %v65 = vld [vmem:[%s1 + $0x128] sm:$0xff]
  %v66 = vld [vmem:[%s1 + $0x130] sm:$0xff]
  %v67 = vld [vmem:[%s1 + $0x138] sm:$0xff]
  %v68 = vld [vmem:[%s1 + $0x140] sm:$0xff]
  %v69 = vld [vmem:[%s1 + $0x148] sm:$0xff]
  %v70 = vld [vmem:[%s1 + $0x150] sm:$0xff]
  %v71 = vld [vmem:[%s1 + $0x158] sm:$0xff]
  %v72 = vld [vmem:[%s1 + $0x160] sm:$0xff]
  %v73 = vld [vmem:[%s1 + $0x168] sm:$0xff]
  %v74 = vld [vmem:[%s1 + $0x170] sm:$0xff]
  %v75 = vld [vmem:[%s1 + $0x178] sm:$0xff]
  %v76 = vld [vmem:[%s1 + $0x180] sm:$0xff]
  %v77 = vld [vmem:[%s1 + $0x188] sm:$0xff]
  %v78 = vld [vmem:[%s1 + $0x190] sm:$0xff]
  %v79 = vld [vmem:[%s1 + $0x198] sm:$0xff]
  %v80 = vld [vmem:[%s1 + $0x1a0] sm:$0xff]
  %v81 = vld [vmem:[%s1 + $0x1a8] sm:$0xff]
  %v82 = vld [vmem:[%s1 + $0x1b0] sm:$0xff]
  %v83 = vld [vmem:[%s1 + $0x1b8] sm:$0xff]
  %v84 = vld [vmem:[%s1 + $0x1c0] sm:$0xff]
  %v85 = vld [vmem:[%s1 + $0x1c8] sm:$0xff]
  %v86 = vld [vmem:[%s1 + $0x1d0] sm:$0xff]
  %v87 = vld [vmem:[%s1 + $0x1d8] sm:$0xff]
  %v88 = vld [vmem:[%s1 + $0x1e0] sm:$0xff]
  %v89 = vld [vmem:[%s1 + $0x1e8] sm:$0xff]
  %v90 = vld [vmem:[%s1 + $0x1f0] sm:$0xff]
  %v91 = vld [vmem:[%s1 + $0x1f8] sm:$0xff]
  %v92 = vld [vmem:[%s1 + $0x200] sm:$0xff]
  %v93 = vld [vmem:[%s1 + $0x208] sm:$0xff]
  %v94 = vld [vmem:[%s1 + $0x210] sm:$0xff]
  %v95 = vld [vmem:[%s1 + $0x218] sm:$0xff]
  %v96 = vld [vmem:[%s1 + $0x220] sm:$0xff]
  %v97 = vld [vmem:[%s1 + $0x228] sm:$0xff]
  %v98 = vld [vmem:[%s1 + $0x230] sm:$0xff]
  %v99 = vld [vmem:[%s1 + $0x238] sm:$0xff]
  %v100 = vld [vmem:[%s1 + $0x240] sm:$0xff]
  %v101 = vld [vmem:[%s1 + $0x248] sm:$0xff]
  %v102 = vld [vmem:[%s1 + $0x250] sm:$0xff]
  %v103 = vld [vmem:[%s1 + $0x258] sm:$0xff]
  %v104 = vld [vmem:[%s1 + $0x260] sm:$0xff]
  %v105 = vld [vmem:[%s1 + $0x268] sm:$0xff]
  %v106 = vld [vmem:[%s1 + $0x270] sm:$0xff]
  %v107 = vld [vmem:[%s1 + $0x278] sm:$0xff]
  %v108 = vld [vmem:[%s2] sm:$0xff]
  %v109 = vld [vmem:[%s2 + $0x8] sm:$0x3]
  %v112 = vlaneseq
  %v113 = vshrl.u32 %v112, 7
  %v114 = vsub.s32 0, %v113
  %v115 = vrot.slane %v108, %v114
  %v116 = vlaneseq
  %v117 = vshrl.u32 %v116, 7
  %v118 = vsub.s32 1, %v117
  %v119 = vrot.slane %v108, %v118
  %v120 = vlaneseq
  %v121 = vshrl.u32 %v120, 7
  %v122 = vsub.s32 2, %v121
  %v123 = vrot.slane %v108, %v122
  %v124 = vlaneseq
  %v125 = vshrl.u32 %v124, 7
  %v126 = vsub.s32 3, %v125
  %v127 = vrot.slane %v108, %v126
  %v128 = vlaneseq
  %v129 = vshrl.u32 %v128, 7
  %v130 = vsub.s32 4, %v129
  %v131 = vrot.slane %v108, %v130
  %v132 = vlaneseq
  %v133 = vshrl.u32 %v132, 7
  %v134 = vsub.s32 5, %v133
  %v135 = vrot.slane %v108, %v134
  %v136 = vlaneseq
  %v137 = vshrl.u32 %v136, 7
  %v138 = vsub.s32 6, %v137
  %v139 = vrot.slane %v108, %v138
  %v140 = vlaneseq
  %v141 = vshrl.u32 %v140, 7
  %v142 = vsub.s32 7, %v141
  %v143 = vrot.slane %v108, %v142
  %v144 = vlaneseq
  %v145 = vshrl.u32 %v144, 7
  %v146 = vsub.s32 0, %v145
  %v147 = vrot.slane %v109, %v146
  %v148 = vlaneseq
  %v149 = vshrl.u32 %v148, 7
  %v150 = vsub.s32 1, %v149
  %v151 = vrot.slane %v109, %v150
  %v242 = vunpack.c.l.b16 %v28
  %v243 = vunpack.c.h.b16 %v28
  %v244 = vunpack.c.l.b16 %v29
  %v245 = vunpack.c.h.b16 %v29
  %v246 = vunpack.c.l.b16 %v30
  %v247 = vunpack.c.h.b16 %v30
  %v248 = vunpack.c.l.b16 %v31
  %v249 = vunpack.c.h.b16 %v31
  %v250 = vunpack.c.l.b16 %v32
  %v251 = vunpack.c.h.b16 %v32
  %v252 = vunpack.c.l.b16 %v33
  %v253 = vunpack.c.h.b16 %v33
  %v254 = vunpack.c.l.b16 %v34
  %v255 = vunpack.c.h.b16 %v34
  %v256 = vunpack.c.l.b16 %v35
  %v257 = vunpack.c.h.b16 %v35
  %v258 = vunpack.c.l.b16 %v36
  %v259 = vunpack.c.h.b16 %v36
  %v260 = vunpack.c.l.b16 %v37
  %v261 = vunpack.c.h.b16 %v37
  %v262 = vunpack.c.l.b16 %v38
  %v263 = vunpack.c.h.b16 %v38
  %v264 = vunpack.c.l.b16 %v39
  %v265 = vunpack.c.h.b16 %v39
  %v266 = vunpack.c.l.b16 %v40
  %v267 = vunpack.c.h.b16 %v40
  %v268 = vunpack.c.l.b16 %v41
  %v269 = vunpack.c.h.b16 %v41
  %v270 = vunpack.c.l.b16 %v42
  %v271 = vunpack.c.h.b16 %v42
  %v272 = vunpack.c.l.b16 %v43
  %v273 = vunpack.c.h.b16 %v43
  %v274 = vunpack.c.l.b16 %v44
  %v275 = vunpack.c.h.b16 %v44
  %v276 = vunpack.c.l.b16 %v45
  %v277 = vunpack.c.h.b16 %v45
  %v278 = vunpack.c.l.b16 %v46
  %v279 = vunpack.c.h.b16 %v46
  %v280 = vunpack.c.l.b16 %v47
  %v281 = vunpack.c.h.b16 %v47
  %v282 = vunpack.c.l.b16 %v48
  %v283 = vunpack.c.h.b16 %v48
  %v284 = vunpack.c.l.b16 %v49
  %v285 = vunpack.c.h.b16 %v49
  %v286 = vunpack.c.l.b16 %v50
  %v287 = vunpack.c.h.b16 %v50
  %v288 = vunpack.c.l.b16 %v51
  %v289 = vunpack.c.h.b16 %v51
  %v290 = vunpack.c.l.b16 %v52
  %v291 = vunpack.c.h.b16 %v52
  %v292 = vunpack.c.l.b16 %v53
  %v293 = vunpack.c.h.b16 %v53
  %v294 = vunpack.c.l.b16 %v54
  %v295 = vunpack.c.h.b16 %v54
  %v296 = vunpack.c.l.b16 %v55
  %v297 = vunpack.c.h.b16 %v55
  %v298 = vunpack.c.l.b16 %v56
  %v299 = vunpack.c.h.b16 %v56
  %v300 = vunpack.c.l.b16 %v57
  %v301 = vunpack.c.h.b16 %v57
  %v302 = vunpack.c.l.b16 %v58
  %v303 = vunpack.c.h.b16 %v58
  %v304 = vunpack.c.l.b16 %v59
  %v305 = vunpack.c.h.b16 %v59
  %v306 = vunpack.c.l.b16 %v60
  %v307 = vunpack.c.h.b16 %v60
  %v308 = vunpack.c.l.b16 %v61
  %v309 = vunpack.c.h.b16 %v61
  %v310 = vunpack.c.l.b16 %v62
  %v311 = vunpack.c.h.b16 %v62
  %v312 = vunpack.c.l.b16 %v63
  %v313 = vunpack.c.h.b16 %v63
  %v314 = vunpack.c.l.b16 %v64
  %v315 = vunpack.c.h.b16 %v64
  %v316 = vunpack.c.l.b16 %v65
  %v317 = vunpack.c.h.b16 %v65
  %v318 = vunpack.c.l.b16 %v66
  %v319 = vunpack.c.h.b16 %v66
  %v320 = vunpack.c.l.b16 %v67
  %v321 = vunpack.c.h.b16 %v67
  %v322 = vunpack.c.l.b16 %v68
  %v323 = vunpack.c.h.b16 %v68
  %v324 = vunpack.c.l.b16 %v69
  %v325 = vunpack.c.h.b16 %v69
  %v326 = vunpack.c.l.b16 %v70
  %v327 = vunpack.c.h.b16 %v70
  %v328 = vunpack.c.l.b16 %v71
  %v329 = vunpack.c.h.b16 %v71
  %v330 = vunpack.c.l.b16 %v72
  %v331 = vunpack.c.h.b16 %v72
  %v332 = vunpack.c.l.b16 %v73
  %v333 = vunpack.c.h.b16 %v73
  %v334 = vunpack.c.l.b16 %v74
  %v335 = vunpack.c.h.b16 %v74
  %v336 = vunpack.c.l.b16 %v75
  %v337 = vunpack.c.h.b16 %v75
  %v338 = vunpack.c.l.b16 %v76
  %v339 = vunpack.c.h.b16 %v76
  %v340 = vunpack.c.l.b16 %v77
  %v341 = vunpack.c.h.b16 %v77
  %v342 = vunpack.c.l.b16 %v78
  %v343 = vunpack.c.h.b16 %v78
  %v344 = vunpack.c.l.b16 %v79
  %v345 = vunpack.c.h.b16 %v79
  %v346 = vunpack.c.l.b16 %v80
  %v347 = vunpack.c.h.b16 %v80
  %v348 = vunpack.c.l.b16 %v81
  %v349 = vunpack.c.h.b16 %v81
  %v350 = vunpack.c.l.b16 %v82
  %v351 = vunpack.c.h.b16 %v82
  %v352 = vunpack.c.l.b16 %v83
  %v353 = vunpack.c.h.b16 %v83
  %v354 = vunpack.c.l.b16 %v84
  %v355 = vunpack.c.h.b16 %v84
  %v356 = vunpack.c.l.b16 %v85
  %v357 = vunpack.c.h.b16 %v85
  %v358 = vunpack.c.l.b16 %v86
  %v359 = vunpack.c.h.b16 %v86
  %v360 = vunpack.c.l.b16 %v87
  %v361 = vunpack.c.h.b16 %v87
  %v362 = vunpack.c.l.b16 %v88
  %v363 = vunpack.c.h.b16 %v88
  %v364 = vunpack.c.l.b16 %v89
  %v365 = vunpack.c.h.b16 %v89
  %v366 = vunpack.c.l.b16 %v90
  %v367 = vunpack.c.h.b16 %v90
  %v368 = vunpack.c.l.b16 %v91
  %v369 = vunpack.c.h.b16 %v91
  %v370 = vunpack.c.l.b16 %v92
  %v371 = vunpack.c.h.b16 %v92
  %v372 = vunpack.c.l.b16 %v93
  %v373 = vunpack.c.h.b16 %v93
  %v374 = vunpack.c.l.b16 %v94
  %v375 = vunpack.c.h.b16 %v94
  %v376 = vunpack.c.l.b16 %v95
  %v377 = vunpack.c.h.b16 %v95
  %v378 = vunpack.c.l.b16 %v96
  %v379 = vunpack.c.h.b16 %v96
  %v380 = vunpack.c.l.b16 %v97
  %v381 = vunpack.c.h.b16 %v97
  %v382 = vunpack.c.l.b16 %v98
  %v383 = vunpack.c.h.b16 %v98
  %v384 = vunpack.c.l.b16 %v99
  %v385 = vunpack.c.h.b16 %v99
  %v386 = vunpack.c.l.b16 %v100
  %v387 = vunpack.c.h.b16 %v100
  %v388 = vunpack.c.l.b16 %v101
  %v389 = vunpack.c.h.b16 %v101
  %v390 = vunpack.c.l.b16 %v102
  %v391 = vunpack.c.h.b16 %v102
  %v392 = vunpack.c.l.b16 %v103
  %v393 = vunpack.c.h.b16 %v103
  %v394 = vunpack.c.l.b16 %v104
  %v395 = vunpack.c.h.b16 %v104
  %v396 = vunpack.c.l.b16 %v105
  %v397 = vunpack.c.h.b16 %v105
  %v398 = vunpack.c.l.b16 %v106
  %v399 = vunpack.c.h.b16 %v106
  %v400 = vunpack.c.l.b16 %v107
  %v401 = vunpack.c.h.b16 %v107
  %v402 = vpack.c.b16 %v252, %v242
  %v403 = vpack.c.b16 %v253, %v243
  %v404 = vpack.c.b16 %v254, %v244
  %v405 = vpack.c.b16 %v255, %v245
  %v406 = vpack.c.b16 %v256, %v246
  %v407 = vpack.c.b16 %v257, %v247
  %v408 = vpack.c.b16 %v258, %v248
  %v409 = vpack.c.b16 %v259, %v249
  %v410 = vpack.c.b16 %v260, %v250
  %v411 = vpack.c.b16 %v261, %v251
  %v412 = vpack.c.b16 %v272, %v262
  %v413 = vpack.c.b16 %v273, %v263
  %v414 = vpack.c.b16 %v274, %v264
  %v415 = vpack.c.b16 %v275, %v265
  %v416 = vpack.c.b16 %v276, %v266
  %v417 = vpack.c.b16 %v277, %v267
  %v418 = vpack.c.b16 %v278, %v268
  %v419 = vpack.c.b16 %v279, %v269
  %v420 = vpack.c.b16 %v280, %v270
  %v421 = vpack.c.b16 %v281, %v271
  %v422 = vpack.c.b16 %v292, %v282
  %v423 = vpack.c.b16 %v293, %v283
  %v424 = vpack.c.b16 %v294, %v284
  %v425 = vpack.c.b16 %v295, %v285
  %v426 = vpack.c.b16 %v296, %v286
  %v427 = vpack.c.b16 %v297, %v287
  %v428 = vpack.c.b16 %v298, %v288
  %v429 = vpack.c.b16 %v299, %v289
  %v430 = vpack.c.b16 %v300, %v290
  %v431 = vpack.c.b16 %v301, %v291
  %v432 = vpack.c.b16 %v312, %v302
  %v433 = vpack.c.b16 %v313, %v303
  %v434 = vpack.c.b16 %v314, %v304
  %v435 = vpack.c.b16 %v315, %v305
  %v436 = vpack.c.b16 %v316, %v306
  %v437 = vpack.c.b16 %v317, %v307
  %v438 = vpack.c.b16 %v318, %v308
  %v439 = vpack.c.b16 %v319, %v309
  %v440 = vpack.c.b16 %v320, %v310
  %v441 = vpack.c.b16 %v321, %v311
  %v442 = vpack.c.b16 %v332, %v322
  %v443 = vpack.c.b16 %v333, %v323
  %v444 = vpack.c.b16 %v334, %v324
  %v445 = vpack.c.b16 %v335, %v325
  %v446 = vpack.c.b16 %v336, %v326
  %v447 = vpack.c.b16 %v337, %v327
  %v448 = vpack.c.b16 %v338, %v328
  %v449 = vpack.c.b16 %v339, %v329
  %v450 = vpack.c.b16 %v340, %v330
  %v451 = vpack.c.b16 %v341, %v331
  %v452 = vpack.c.b16 %v352, %v342
  %v453 = vpack.c.b16 %v353, %v343
  %v454 = vpack.c.b16 %v354, %v344
  %v455 = vpack.c.b16 %v355, %v345
  %v456 = vpack.c.b16 %v356, %v346
  %v457 = vpack.c.b16 %v357, %v347
  %v458 = vpack.c.b16 %v358, %v348
  %v459 = vpack.c.b16 %v359, %v349
  %v460 = vpack.c.b16 %v360, %v350
  %v461 = vpack.c.b16 %v361, %v351
  %v462 = vpack.c.b16 %v372, %v362
  %v463 = vpack.c.b16 %v373, %v363
  %v464 = vpack.c.b16 %v374, %v364
  %v465 = vpack.c.b16 %v375, %v365
  %v466 = vpack.c.b16 %v376, %v366
  %v467 = vpack.c.b16 %v377, %v367
  %v468 = vpack.c.b16 %v378, %v368
  %v469 = vpack.c.b16 %v379, %v369
  %v470 = vpack.c.b16 %v380, %v370
  %v471 = vpack.c.b16 %v381, %v371
  %v472 = vpack.c.b16 %v392, %v382
  %v473 = vpack.c.b16 %v393, %v383
  %v474 = vpack.c.b16 %v394, %v384
  %v475 = vpack.c.b16 %v395, %v385
  %v476 = vpack.c.b16 %v396, %v386
  %v477 = vpack.c.b16 %v397, %v387
  %v478 = vpack.c.b16 %v398, %v388
  %v479 = vpack.c.b16 %v399, %v389
  %v480 = vpack.c.b16 %v400, %v390
  %v481 = vpack.c.b16 %v401, %v391
  %562 = vmatprep.subr.bf16.mxu0 %v403
  %563 = vmatpush1.bf16.msra.mxu0 %v402
  %564 = vmatprep.subr.bf16.mxu0 %v413
  %565 = vmatpush1.bf16.msra.mxu0 %v412
  %566 = vmatprep.subr.bf16.mxu0 %v423
  %567 = vmatpush1.bf16.msra.mxu0 %v422
  %568 = vmatprep.subr.bf16.mxu0 %v433
  %569 = vmatpush1.bf16.msra.mxu0 %v432
  %570 = vmatprep.subr.bf16.mxu0 %v443
  %571 = vmatpush1.bf16.msra.mxu0 %v442
  %572 = vmatprep.subr.bf16.mxu0 %v453
  %573 = vmatpush1.bf16.msra.mxu0 %v452
  %574 = vmatprep.subr.bf16.mxu0 %v463
  %575 = vmatpush1.bf16.msra.mxu0 %v462
  %576 = vmatprep.subr.bf16.mxu0 %v473
  %577 = vmatpush1.bf16.msra.mxu0 %v472
  %578 = vmatprep.subr.bf16.mxu0 0
  %579 = vmatpush1.bf16.msra.mxu0 0
  %580 = vmatprep.subr.bf16.mxu0 0
  %581 = vmatpush1.bf16.msra.mxu0 0
  %582 = vmatprep.subr.bf16.mxu0 0
  %583 = vmatpush1.bf16.msra.mxu0 0
  %584 = vmatprep.subr.bf16.mxu0 0
  %585 = vmatpush1.bf16.msra.mxu0 0
  %586 = vmatprep.subr.bf16.mxu0 0
  %587 = vmatpush1.bf16.msra.mxu0 0
  %588 = vmatprep.subr.bf16.mxu0 0
  %589 = vmatpush1.bf16.msra.mxu0 0
  %590 = vmatprep.subr.bf16.mxu0 0
  %591 = vmatpush1.bf16.msra.mxu0 0
  %592 = vmatprep.subr.bf16.mxu0 0
  %593 = vmatpush1.bf16.msra.mxu0 0
  %594 = vmatprep.mubr.bf16.mxu0 0
  %595 = vmatmul.mubr.bf16.gmra.mrb[0].mxu0 %v27
  %v596 = vpop.f32.mrb[0].mxu0
  %v597 = vadd.f32 %v115, %v596
  %v598 = vpop.f32.mrb[0].mxu0
  %v599 = vadd.f32 %v119, %v598
  %v600 = vpop.f32.mrb[0].mxu0
  %v601 = vpop.f32.mrb[0].mxu0
  %602 = vdwg.mxu0
  %603 = vmatprep.subr.bf16.mxu0 %v405
  %604 = vmatpush1.bf16.msra.mxu0 %v404
  %605 = vmatprep.subr.bf16.mxu0 %v415
  %606 = vmatpush1.bf16.msra.mxu0 %v414
  %607 = vmatprep.subr.bf16.mxu0 %v425
  %608 = vmatpush1.bf16.msra.mxu0 %v424
  %609 = vmatprep.subr.bf16.mxu0 %v435
  %610 = vmatpush1.bf16.msra.mxu0 %v434
  %611 = vmatprep.subr.bf16.mxu0 %v445
  %612 = vmatpush1.bf16.msra.mxu0 %v444
  %613 = vmatprep.subr.bf16.mxu0 %v455
  %614 = vmatpush1.bf16.msra.mxu0 %v454
  %615 = vmatprep.subr.bf16.mxu0 %v465
  %616 = vmatpush1.bf16.msra.mxu0 %v464
  %617 = vmatprep.subr.bf16.mxu0 %v475
  %618 = vmatpush1.bf16.msra.mxu0 %v474
  %619 = vmatprep.subr.bf16.mxu0 0
  %620 = vmatpush1.bf16.msra.mxu0 0
  %621 = vmatprep.subr.bf16.mxu0 0
  %622 = vmatpush1.bf16.msra.mxu0 0
  %623 = vmatprep.subr.bf16.mxu0 0
  %624 = vmatpush1.bf16.msra.mxu0 0
  %625 = vmatprep.subr.bf16.mxu0 0
  %626 = vmatpush1.bf16.msra.mxu0 0
  %627 = vmatprep.subr.bf16.mxu0 0
  %628 = vmatpush1.bf16.msra.mxu0 0
  %629 = vmatprep.subr.bf16.mxu0 0
  %630 = vmatpush1.bf16.msra.mxu0 0
  %631 = vmatprep.subr.bf16.mxu0 0
  %632 = vmatpush1.bf16.msra.mxu0 0
  %633 = vmatprep.subr.bf16.mxu0 0
  %634 = vmatpush1.bf16.msra.mxu0 0
  %635 = vmatprep.mubr.bf16.mxu0 0
  %636 = vmatmul.mubr.bf16.gmra.mrb[0].mxu0 %v27
  %v637 = vpop.f32.mrb[0].mxu0
  %v638 = vadd.f32 %v123, %v637
  %v639 = vpop.f32.mrb[0].mxu0
  %v640 = vadd.f32 %v127, %v639
  %v641 = vpop.f32.mrb[0].mxu0
  %v642 = vpop.f32.mrb[0].mxu0
  %643 = vdwg.mxu0
  %644 = vmatprep.subr.bf16.mxu0 %v407
  %645 = vmatpush1.bf16.msra.mxu0 %v406
  %646 = vmatprep.subr.bf16.mxu0 %v417
  %647 = vmatpush1.bf16.msra.mxu0 %v416
  %648 = vmatprep.subr.bf16.mxu0 %v427
  %649 = vmatpush1.bf16.msra.mxu0 %v426
  %650 = vmatprep.subr.bf16.mxu0 %v437
  %651 = vmatpush1.bf16.msra.mxu0 %v436
  %652 = vmatprep.subr.bf16.mxu0 %v447
  %653 = vmatpush1.bf16.msra.mxu0 %v446
  %654 = vmatprep.subr.bf16.mxu0 %v457
  %655 = vmatpush1.bf16.msra.mxu0 %v456
  %656 = vmatprep.subr.bf16.mxu0 %v467
  %657 = vmatpush1.bf16.msra.mxu0 %v466
  %658 = vmatprep.subr.bf16.mxu0 %v477
  %659 = vmatpush1.bf16.msra.mxu0 %v476
  %660 = vmatprep.subr.bf16.mxu0 0
  %661 = vmatpush1.bf16.msra.mxu0 0
  %662 = vmatprep.subr.bf16.mxu0 0
  %663 = vmatpush1.bf16.msra.mxu0 0
  %664 = vmatprep.subr.bf16.mxu0 0
  %665 = vmatpush1.bf16.msra.mxu0 0
  %666 = vmatprep.subr.bf16.mxu0 0
  %667 = vmatpush1.bf16.msra.mxu0 0
  %668 = vmatprep.subr.bf16.mxu0 0
  %669 = vmatpush1.bf16.msra.mxu0 0
  %670 = vmatprep.subr.bf16.mxu0 0
  %671 = vmatpush1.bf16.msra.mxu0 0
  %672 = vmatprep.subr.bf16.mxu0 0
  %673 = vmatpush1.bf16.msra.mxu0 0
  %674 = vmatprep.subr.bf16.mxu0 0
  %675 = vmatpush1.bf16.msra.mxu0 0
  %676 = vmatprep.mubr.bf16.mxu0 0
  %677 = vmatmul.mubr.bf16.gmra.mrb[0].mxu0 %v27
  %v678 = vpop.f32.mrb[0].mxu0
  %v679 = vadd.f32 %v131, %v678
  %v680 = vpop.f32.mrb[0].mxu0
  %v681 = vadd.f32 %v135, %v680
  %v682 = vpop.f32.mrb[0].mxu0
  %v683 = vpop.f32.mrb[0].mxu0
  %684 = vdwg.mxu0
  %685 = vmatprep.subr.bf16.mxu0 %v409
  %686 = vmatpush1.bf16.msra.mxu0 %v408
  %687 = vmatprep.subr.bf16.mxu0 %v419
  %688 = vmatpush1.bf16.msra.mxu0 %v418
  %689 = vmatprep.subr.bf16.mxu0 %v429
  %690 = vmatpush1.bf16.msra.mxu0 %v428
  %691 = vmatprep.subr.bf16.mxu0 %v439
  %692 = vmatpush1.bf16.msra.mxu0 %v438
  %693 = vmatprep.subr.bf16.mxu0 %v449
  %694 = vmatpush1.bf16.msra.mxu0 %v448
  %695 = vmatprep.subr.bf16.mxu0 %v459
  %696 = vmatpush1.bf16.msra.mxu0 %v458
  %697 = vmatprep.subr.bf16.mxu0 %v469
  %698 = vmatpush1.bf16.msra.mxu0 %v468
  %699 = vmatprep.subr.bf16.mxu0 %v479
  %700 = vmatpush1.bf16.msra.mxu0 %v478
  %701 = vmatprep.subr.bf16.mxu0 0
  %702 = vmatpush1.bf16.msra.mxu0 0
  %703 = vmatprep.subr.bf16.mxu0 0
  %704 = vmatpush1.bf16.msra.mxu0 0
  %705 = vmatprep.subr.bf16.mxu0 0
  %706 = vmatpush1.bf16.msra.mxu0 0
  %707 = vmatprep.subr.bf16.mxu0 0
  %708 = vmatpush1.bf16.msra.mxu0 0
  %709 = vmatprep.subr.bf16.mxu0 0
  %710 = vmatpush1.bf16.msra.mxu0 0
  %711 = vmatprep.subr.bf16.mxu0 0
  %712 = vmatpush1.bf16.msra.mxu0 0
  %713 = vmatprep.subr.bf16.mxu0 0
  %714 = vmatpush1.bf16.msra.mxu0 0
  %715 = vmatprep.subr.bf16.mxu0 0
  %716 = vmatpush1.bf16.msra.mxu0 0
  %717 = vmatprep.mubr.bf16.mxu0 0
  %718 = vmatmul.mubr.bf16.gmra.mrb[0].mxu0 %v27
  %v719 = vpop.f32.mrb[0].mxu0
  %v720 = vadd.f32 %v139, %v719
  %v721 = vpop.f32.mrb[0].mxu0
  %v722 = vadd.f32 %v143, %v721
  %v723 = vpop.f32.mrb[0].mxu0
  %v724 = vpop.f32.mrb[0].mxu0
  %725 = vdwg.mxu0
  %726 = vmatprep.subr.bf16.mxu0 %v411
  %727 = vmatpush1.bf16.msra.mxu0 %v410
  %728 = vmatprep.subr.bf16.mxu0 %v421
  %729 = vmatpush1.bf16.msra.mxu0 %v420
  %730 = vmatprep.subr.bf16.mxu0 %v431
  %731 = vmatpush1.bf16.msra.mxu0 %v430
  %732 = vmatprep.subr.bf16.mxu0 %v441
  %733 = vmatpush1.bf16.msra.mxu0 %v440
  %734 = vmatprep.subr.bf16.mxu0 %v451
  %735 = vmatpush1.bf16.msra.mxu0 %v450
  %736 = vmatprep.subr.bf16.mxu0 %v461
  %737 = vmatpush1.bf16.msra.mxu0 %v460
  %738 = vmatprep.subr.bf16.mxu0 %v471
  %739 = vmatpush1.bf16.msra.mxu0 %v470
  %740 = vmatprep.subr.bf16.mxu0 %v481
  %741 = vmatpush1.bf16.msra.mxu0 %v480
  %742 = vmatprep.subr.bf16.mxu0 0
  %743 = vmatpush1.bf16.msra.mxu0 0
  %744 = vmatprep.subr.bf16.mxu0 0
  %745 = vmatpush1.bf16.msra.mxu0 0
  %746 = vmatprep.subr.bf16.mxu0 0
  %747 = vmatpush1.bf16.msra.mxu0 0
  %748 = vmatprep.subr.bf16.mxu0 0
  %749 = vmatpush1.bf16.msra.mxu0 0
  %750 = vmatprep.subr.bf16.mxu0 0
  %751 = vmatpush1.bf16.msra.mxu0 0
  %752 = vmatprep.subr.bf16.mxu0 0
  %753 = vmatpush1.bf16.msra.mxu0 0
  %754 = vmatprep.subr.bf16.mxu0 0
  %755 = vmatpush1.bf16.msra.mxu0 0
  %756 = vmatprep.subr.bf16.mxu0 0
  %757 = vmatpush1.bf16.msra.mxu0 0
  %758 = vmatprep.mubr.bf16.mxu0 0
  %759 = vmatmul.mubr.bf16.gmra.mrb[0].mxu0 %v27
  %v760 = vpop.f32.mrb[0].mxu0
  %v761 = vadd.f32 %v147, %v760
  %v762 = vpop.f32.mrb[0].mxu0
  %v763 = vadd.f32 %v151, %v762
  %v764 = vpop.f32.mrb[0].mxu0
  %v765 = vpop.f32.mrb[0].mxu0
  %766 = vdwg.mxu0
  %v767 = vmax.f32 %v597, 0.0
  %v768 = vmax.f32 %v599, 0.0
  %v769 = vmax.f32 %v638, 0.0
  %v770 = vmax.f32 %v640, 0.0
  %v771 = vmax.f32 %v679, 0.0
  %v772 = vmax.f32 %v681, 0.0
  %v773 = vmax.f32 %v720, 0.0
  %v774 = vmax.f32 %v722, 0.0
  %v775 = vmax.f32 %v761, 0.0
  %v776 = vmax.f32 %v763, 0.0
  %v777 = vpack.c.bf16 %v767, %v767
  %v778 = vpack.c.bf16 %v768, %v768
  %v779 = vpack.c.bf16 %v769, %v769
  %v780 = vpack.c.bf16 %v770, %v770
  %v781 = vpack.c.bf16 %v771, %v771
  %v782 = vpack.c.bf16 %v772, %v772
  %v783 = vpack.c.bf16 %v773, %v773
  %v784 = vpack.c.bf16 %v774, %v774
  %v785 = vpack.c.bf16 %v775, %v775
  %v786 = vpack.c.bf16 %v776, %v776
  %v787 = vld [vmem:[%s3] sm:$0xff]
  %v788 = vld [vmem:[%s3 + $0x8] sm:$0xff]
  %v789 = vld [vmem:[%s3 + $0x10] sm:$0xff]
  %v790 = vld [vmem:[%s3 + $0x18] sm:$0xff]
  %v791 = vld [vmem:[%s3 + $0x20] sm:$0xff]
  %v792 = vld [vmem:[%s3 + $0x28] sm:$0xff]
  %v793 = vld [vmem:[%s3 + $0x30] sm:$0xff]
  %v794 = vld [vmem:[%s3 + $0x38] sm:$0xff]
  %v795 = vld [vmem:[%s3 + $0x40] sm:$0xff]
  %v796 = vld [vmem:[%s3 + $0x48] sm:$0xff]
  %v797 = vld [vmem:[%s3 + $0x50] sm:$0xff]
  %v798 = vld [vmem:[%s3 + $0x58] sm:$0xff]
  %v799 = vld [vmem:[%s3 + $0x60] sm:$0xff]
  %v800 = vld [vmem:[%s3 + $0x68] sm:$0xff]
  %v801 = vld [vmem:[%s3 + $0x70] sm:$0xff]
  %v802 = vld [vmem:[%s3 + $0x78] sm:$0xff]
  %v803 = vld [vmem:[%s3 + $0x80] sm:$0xff]
  %v804 = vld [vmem:[%s3 + $0x88] sm:$0xff]
  %v805 = vld [vmem:[%s3 + $0x90] sm:$0xff]
  %v806 = vld [vmem:[%s3 + $0x98] sm:$0xff]
  %v807 = vld [vmem:[%s3 + $0xa0] sm:$0xff]
  %v808 = vld [vmem:[%s3 + $0xa8] sm:$0xff]
  %v809 = vld [vmem:[%s3 + $0xb0] sm:$0xff]
  %v810 = vld [vmem:[%s3 + $0xb8] sm:$0xff]
  %v811 = vld [vmem:[%s3 + $0xc0] sm:$0xff]
  %v812 = vld [vmem:[%s3 + $0xc8] sm:$0xff]
  %v813 = vld [vmem:[%s3 + $0xd0] sm:$0xff]
  %v814 = vld [vmem:[%s3 + $0xd8] sm:$0xff]
  %v815 = vld [vmem:[%s3 + $0xe0] sm:$0xff]
  %v816 = vld [vmem:[%s3 + $0xe8] sm:$0xff]
  %v817 = vld [vmem:[%s3 + $0xf0] sm:$0xff]
  %v818 = vld [vmem:[%s3 + $0xf8] sm:$0xff]
  %v819 = vld [vmem:[%s3 + $0x100] sm:$0xff]
  %v820 = vld [vmem:[%s3 + $0x108] sm:$0xff]
  %v821 = vld [vmem:[%s3 + $0x110] sm:$0xff]
  %v822 = vld [vmem:[%s3 + $0x118] sm:$0xff]
  %v823 = vld [vmem:[%s3 + $0x120] sm:$0xff]
  %v824 = vld [vmem:[%s3 + $0x128] sm:$0xff]
  %v825 = vld [vmem:[%s3 + $0x130] sm:$0xff]
  %v826 = vld [vmem:[%s3 + $0x138] sm:$0xff]
  %v827 = vld [vmem:[%s3 + $0x140] sm:$0xff]
  %v828 = vld [vmem:[%s3 + $0x148] sm:$0xff]
  %v829 = vld [vmem:[%s3 + $0x150] sm:$0xff]
  %v830 = vld [vmem:[%s3 + $0x158] sm:$0xff]
  %v831 = vld [vmem:[%s3 + $0x160] sm:$0xff]
  %v832 = vld [vmem:[%s3 + $0x168] sm:$0xff]
  %v833 = vld [vmem:[%s3 + $0x170] sm:$0xff]
  %v834 = vld [vmem:[%s3 + $0x178] sm:$0xff]
  %v835 = vld [vmem:[%s3 + $0x180] sm:$0xff]
  %v836 = vld [vmem:[%s3 + $0x188] sm:$0xff]
  %v837 = vld [vmem:[%s3 + $0x190] sm:$0xff]
  %v838 = vld [vmem:[%s3 + $0x198] sm:$0xff]
  %v839 = vld [vmem:[%s3 + $0x1a0] sm:$0xff]
  %v840 = vld [vmem:[%s3 + $0x1a8] sm:$0xff]
  %v841 = vld [vmem:[%s3 + $0x1b0] sm:$0xff]
  %v842 = vld [vmem:[%s3 + $0x1b8] sm:$0xff]
  %v843 = vld [vmem:[%s3 + $0x1c0] sm:$0xff]
  %v844 = vld [vmem:[%s3 + $0x1c8] sm:$0xff]
  %v845 = vld [vmem:[%s3 + $0x1d0] sm:$0xff]
  %v846 = vld [vmem:[%s3 + $0x1d8] sm:$0xff]
  %v847 = vld [vmem:[%s3 + $0x1e0] sm:$0xff]
  %v848 = vld [vmem:[%s3 + $0x1e8] sm:$0xff]
  %v849 = vld [vmem:[%s3 + $0x1f0] sm:$0xff]
  %v850 = vld [vmem:[%s3 + $0x1f8] sm:$0xff]
  %v851 = vld [vmem:[%s3 + $0x200] sm:$0xff]
  %v852 = vld [vmem:[%s3 + $0x208] sm:$0xff]
  %v853 = vld [vmem:[%s3 + $0x210] sm:$0xff]
  %v854 = vld [vmem:[%s3 + $0x218] sm:$0xff]
  %v855 = vld [vmem:[%s3 + $0x220] sm:$0xff]
  %v856 = vld [vmem:[%s3 + $0x228] sm:$0xff]
  %v857 = vld [vmem:[%s3 + $0x230] sm:$0xff]
  %v858 = vld [vmem:[%s3 + $0x238] sm:$0xff]
  %v859 = vld [vmem:[%s3 + $0x240] sm:$0xff]
  %v860 = vld [vmem:[%s3 + $0x248] sm:$0xff]
  %v861 = vld [vmem:[%s3 + $0x250] sm:$0xff]
  %v862 = vld [vmem:[%s3 + $0x258] sm:$0xff]
  %v863 = vld [vmem:[%s3 + $0x260] sm:$0xff]
  %v864 = vld [vmem:[%s3 + $0x268] sm:$0xff]
  %v865 = vld [vmem:[%s3 + $0x270] sm:$0xff]
  %v866 = vld [vmem:[%s3 + $0x278] sm:$0xff]
  %v867 = vld [vmem:[%s3 + $0x280] sm:$0xff]
  %v868 = vld [vmem:[%s3 + $0x288] sm:$0xff]
  %v869 = vld [vmem:[%s3 + $0x290] sm:$0xff]
  %v870 = vld [vmem:[%s3 + $0x298] sm:$0xff]
  %v871 = vld [vmem:[%s3 + $0x2a0] sm:$0xff]
  %v872 = vld [vmem:[%s3 + $0x2a8] sm:$0xff]
  %v873 = vld [vmem:[%s3 + $0x2b0] sm:$0xff]
  %v874 = vld [vmem:[%s3 + $0x2b8] sm:$0xff]
  %v875 = vld [vmem:[%s3 + $0x2c0] sm:$0xff]
  %v876 = vld [vmem:[%s3 + $0x2c8] sm:$0xff]
  %v877 = vld [vmem:[%s3 + $0x2d0] sm:$0xff]
  %v878 = vld [vmem:[%s3 + $0x2d8] sm:$0xff]
  %v879 = vld [vmem:[%s3 + $0x2e0] sm:$0xff]
  %v880 = vld [vmem:[%s3 + $0x2e8] sm:$0xff]
  %v881 = vld [vmem:[%s3 + $0x2f0] sm:$0xff]
  %v882 = vld [vmem:[%s3 + $0x2f8] sm:$0xff]
  %v883 = vld [vmem:[%s3 + $0x300] sm:$0xff]
  %v884 = vld [vmem:[%s3 + $0x308] sm:$0xff]
  %v885 = vld [vmem:[%s3 + $0x310] sm:$0xff]
  %v886 = vld [vmem:[%s3 + $0x318] sm:$0xff]
  %v887 = vld [vmem:[%s3 + $0x320] sm:$0xff]
  %v888 = vld [vmem:[%s3 + $0x328] sm:$0xff]
  %v889 = vld [vmem:[%s3 + $0x330] sm:$0xff]
  %v890 = vld [vmem:[%s3 + $0x338] sm:$0xff]
  %v891 = vld [vmem:[%s3 + $0x340] sm:$0xff]
  %v892 = vld [vmem:[%s3 + $0x348] sm:$0xff]
  %v893 = vld [vmem:[%s3 + $0x350] sm:$0xff]
  %v894 = vld [vmem:[%s3 + $0x358] sm:$0xff]
  %v895 = vld [vmem:[%s3 + $0x360] sm:$0xff]
  %v896 = vld [vmem:[%s3 + $0x368] sm:$0xff]
  %v897 = vld [vmem:[%s3 + $0x370] sm:$0xff]
  %v898 = vld [vmem:[%s3 + $0x378] sm:$0xff]
  %v899 = vld [vmem:[%s3 + $0x380] sm:$0xff]
  %v900 = vld [vmem:[%s3 + $0x388] sm:$0xff]
  %v901 = vld [vmem:[%s3 + $0x390] sm:$0xff]
  %v902 = vld [vmem:[%s3 + $0x398] sm:$0xff]
  %v903 = vld [vmem:[%s3 + $0x3a0] sm:$0xff]
  %v904 = vld [vmem:[%s3 + $0x3a8] sm:$0xff]
  %v905 = vld [vmem:[%s3 + $0x3b0] sm:$0xff]
  %v906 = vld [vmem:[%s3 + $0x3b8] sm:$0xff]
  %v907 = vld [vmem:[%s3 + $0x3c0] sm:$0xff]
  %v908 = vld [vmem:[%s3 + $0x3c8] sm:$0xff]
  %v909 = vld [vmem:[%s3 + $0x3d0] sm:$0xff]
  %v910 = vld [vmem:[%s3 + $0x3d8] sm:$0xff]
  %v911 = vld [vmem:[%s3 + $0x3e0] sm:$0xff]
  %v912 = vld [vmem:[%s3 + $0x3e8] sm:$0xff]
  %v913 = vld [vmem:[%s3 + $0x3f0] sm:$0xff]
  %v914 = vld [vmem:[%s3 + $0x3f8] sm:$0xff]
  %v915 = vld [vmem:[%s3 + $0x400] sm:$0xff]
  %v916 = vld [vmem:[%s3 + $0x408] sm:$0xff]
  %v917 = vld [vmem:[%s3 + $0x410] sm:$0xff]
  %v918 = vld [vmem:[%s3 + $0x418] sm:$0xff]
  %v919 = vld [vmem:[%s3 + $0x420] sm:$0xff]
  %v920 = vld [vmem:[%s3 + $0x428] sm:$0xff]
  %v921 = vld [vmem:[%s3 + $0x430] sm:$0xff]
  %v922 = vld [vmem:[%s3 + $0x438] sm:$0xff]
  %v923 = vld [vmem:[%s3 + $0x440] sm:$0xff]
  %v924 = vld [vmem:[%s3 + $0x448] sm:$0xff]
  %v925 = vld [vmem:[%s3 + $0x450] sm:$0xff]
  %v926 = vld [vmem:[%s3 + $0x458] sm:$0xff]
  %v927 = vld [vmem:[%s3 + $0x460] sm:$0xff]
  %v928 = vld [vmem:[%s3 + $0x468] sm:$0xff]
  %v929 = vld [vmem:[%s3 + $0x470] sm:$0xff]
  %v930 = vld [vmem:[%s3 + $0x478] sm:$0xff]
  %v931 = vld [vmem:[%s3 + $0x480] sm:$0xff]
  %v932 = vld [vmem:[%s3 + $0x488] sm:$0xff]
  %v933 = vld [vmem:[%s3 + $0x490] sm:$0xff]
  %v934 = vld [vmem:[%s3 + $0x498] sm:$0xff]
  %v935 = vld [vmem:[%s3 + $0x4a0] sm:$0xff]
  %v936 = vld [vmem:[%s3 + $0x4a8] sm:$0xff]
  %v937 = vld [vmem:[%s3 + $0x4b0] sm:$0xff]
  %v938 = vld [vmem:[%s3 + $0x4b8] sm:$0xff]
  %v939 = vld [vmem:[%s3 + $0x4c0] sm:$0xff]
  %v940 = vld [vmem:[%s3 + $0x4c8] sm:$0xff]
  %v941 = vld [vmem:[%s3 + $0x4d0] sm:$0xff]
  %v942 = vld [vmem:[%s3 + $0x4d8] sm:$0xff]
  %v943 = vld [vmem:[%s3 + $0x4e0] sm:$0xff]
  %v944 = vld [vmem:[%s3 + $0x4e8] sm:$0xff]
  %v945 = vld [vmem:[%s3 + $0x4f0] sm:$0xff]
  %v946 = vld [vmem:[%s3 + $0x4f8] sm:$0xff]
  %v947 = vld [vmem:[%s3 + $0x500] sm:$0xff]
  %v948 = vld [vmem:[%s3 + $0x508] sm:$0xff]
  %v949 = vld [vmem:[%s3 + $0x510] sm:$0xff]
  %v950 = vld [vmem:[%s3 + $0x518] sm:$0xff]
  %v951 = vld [vmem:[%s3 + $0x520] sm:$0xff]
  %v952 = vld [vmem:[%s3 + $0x528] sm:$0xff]
  %v953 = vld [vmem:[%s3 + $0x530] sm:$0xff]
  %v954 = vld [vmem:[%s3 + $0x538] sm:$0xff]
  %v955 = vld [vmem:[%s3 + $0x540] sm:$0xff]
  %v956 = vld [vmem:[%s3 + $0x548] sm:$0xff]
  %v957 = vld [vmem:[%s3 + $0x550] sm:$0xff]
  %v958 = vld [vmem:[%s3 + $0x558] sm:$0xff]
  %v959 = vld [vmem:[%s3 + $0x560] sm:$0xff]
  %v960 = vld [vmem:[%s3 + $0x568] sm:$0xff]
  %v961 = vld [vmem:[%s3 + $0x570] sm:$0xff]
  %v962 = vld [vmem:[%s3 + $0x578] sm:$0xff]
  %v963 = vld [vmem:[%s3 + $0x580] sm:$0xff]
  %v964 = vld [vmem:[%s3 + $0x588] sm:$0xff]
  %v965 = vld [vmem:[%s3 + $0x590] sm:$0xff]
  %v966 = vld [vmem:[%s3 + $0x598] sm:$0xff]
  %v967 = vld [vmem:[%s3 + $0x5a0] sm:$0xff]
  %v968 = vld [vmem:[%s3 + $0x5a8] sm:$0xff]
  %v969 = vld [vmem:[%s3 + $0x5b0] sm:$0xff]
  %v970 = vld [vmem:[%s3 + $0x5b8] sm:$0xff]
  %v971 = vld [vmem:[%s3 + $0x5c0] sm:$0xff]
  %v972 = vld [vmem:[%s3 + $0x5c8] sm:$0xff]
  %v973 = vld [vmem:[%s3 + $0x5d0] sm:$0xff]
  %v974 = vld [vmem:[%s3 + $0x5d8] sm:$0xff]
  %v975 = vld [vmem:[%s3 + $0x5e0] sm:$0xff]
  %v976 = vld [vmem:[%s3 + $0x5e8] sm:$0xff]
  %v977 = vld [vmem:[%s3 + $0x5f0] sm:$0xff]
  %v978 = vld [vmem:[%s3 + $0x5f8] sm:$0xff]
  %v979 = vld [vmem:[%s3 + $0x600] sm:$0xff]
  %v980 = vld [vmem:[%s3 + $0x608] sm:$0xff]
  %v981 = vld [vmem:[%s3 + $0x610] sm:$0xff]
  %v982 = vld [vmem:[%s3 + $0x618] sm:$0xff]
  %v983 = vld [vmem:[%s3 + $0x620] sm:$0xff]
  %v984 = vld [vmem:[%s3 + $0x628] sm:$0xff]
  %v985 = vld [vmem:[%s3 + $0x630] sm:$0xff]
  %v986 = vld [vmem:[%s3 + $0x638] sm:$0xff]
  %v987 = vld [vmem:[%s3 + $0x640] sm:$0xff]
  %v988 = vld [vmem:[%s3 + $0x648] sm:$0xff]
  %v989 = vld [vmem:[%s3 + $0x650] sm:$0xff]
  %v990 = vld [vmem:[%s3 + $0x658] sm:$0xff]
  %v991 = vld [vmem:[%s3 + $0x660] sm:$0xff]
  %v992 = vld [vmem:[%s3 + $0x668] sm:$0xff]
  %v993 = vld [vmem:[%s3 + $0x670] sm:$0xff]
  %v994 = vld [vmem:[%s3 + $0x678] sm:$0xff]
  %v995 = vld [vmem:[%s3 + $0x680] sm:$0xff]
  %v996 = vld [vmem:[%s3 + $0x688] sm:$0xff]
  %v997 = vld [vmem:[%s3 + $0x690] sm:$0xff]
  %v998 = vld [vmem:[%s3 + $0x698] sm:$0xff]
  %v999 = vld [vmem:[%s3 + $0x6a0] sm:$0xff]
  %v1000 = vld [vmem:[%s3 + $0x6a8] sm:$0xff]
  %v1001 = vld [vmem:[%s3 + $0x6b0] sm:$0xff]
  %v1002 = vld [vmem:[%s3 + $0x6b8] sm:$0xff]
  %v1003 = vld [vmem:[%s3 + $0x6c0] sm:$0xff]
  %v1004 = vld [vmem:[%s3 + $0x6c8] sm:$0xff]
  %v1005 = vld [vmem:[%s3 + $0x6d0] sm:$0xff]
  %v1006 = vld [vmem:[%s3 + $0x6d8] sm:$0xff]
  %v1007 = vld [vmem:[%s3 + $0x6e0] sm:$0xff]
  %v1008 = vld [vmem:[%s3 + $0x6e8] sm:$0xff]
  %v1009 = vld [vmem:[%s3 + $0x6f0] sm:$0xff]
  %v1010 = vld [vmem:[%s3 + $0x6f8] sm:$0xff]
  %v1011 = vld [vmem:[%s3 + $0x700] sm:$0xff]
  %v1012 = vld [vmem:[%s3 + $0x708] sm:$0xff]
  %v1013 = vld [vmem:[%s3 + $0x710] sm:$0xff]
  %v1014 = vld [vmem:[%s3 + $0x718] sm:$0xff]
  %v1015 = vld [vmem:[%s3 + $0x720] sm:$0xff]
  %v1016 = vld [vmem:[%s3 + $0x728] sm:$0xff]
  %v1017 = vld [vmem:[%s3 + $0x730] sm:$0xff]
  %v1018 = vld [vmem:[%s3 + $0x738] sm:$0xff]
  %v1019 = vld [vmem:[%s3 + $0x740] sm:$0xff]
  %v1020 = vld [vmem:[%s3 + $0x748] sm:$0xff]
  %v1021 = vld [vmem:[%s3 + $0x750] sm:$0xff]
  %v1022 = vld [vmem:[%s3 + $0x758] sm:$0xff]
  %v1023 = vld [vmem:[%s3 + $0x760] sm:$0xff]
  %v1024 = vld [vmem:[%s3 + $0x768] sm:$0xff]
  %v1025 = vld [vmem:[%s3 + $0x770] sm:$0xff]
  %v1026 = vld [vmem:[%s3 + $0x778] sm:$0xff]
  %v1027 = vld [vmem:[%s3 + $0x780] sm:$0xff]
  %v1028 = vld [vmem:[%s3 + $0x788] sm:$0xff]
  %v1029 = vld [vmem:[%s3 + $0x790] sm:$0xff]
  %v1030 = vld [vmem:[%s3 + $0x798] sm:$0xff]
  %v1031 = vld [vmem:[%s3 + $0x7a0] sm:$0xff]
  %v1032 = vld [vmem:[%s3 + $0x7a8] sm:$0xff]
  %v1033 = vld [vmem:[%s3 + $0x7b0] sm:$0xff]
  %v1034 = vld [vmem:[%s3 + $0x7b8] sm:$0xff]
  %v1035 = vld [vmem:[%s3 + $0x7c0] sm:$0xff]
  %v1036 = vld [vmem:[%s3 + $0x7c8] sm:$0xff]
  %v1037 = vld [vmem:[%s3 + $0x7d0] sm:$0xff]
  %v1038 = vld [vmem:[%s3 + $0x7d8] sm:$0xff]
  %v1039 = vld [vmem:[%s3 + $0x7e0] sm:$0xff]
  %v1040 = vld [vmem:[%s3 + $0x7e8] sm:$0xff]
  %v1041 = vld [vmem:[%s3 + $0x7f0] sm:$0xff]
  %v1042 = vld [vmem:[%s3 + $0x7f8] sm:$0xff]
  %v1043 = vld [vmem:[%s3 + $0x800] sm:$0xff]
  %v1044 = vld [vmem:[%s3 + $0x808] sm:$0xff]
  %v1045 = vld [vmem:[%s3 + $0x810] sm:$0xff]
  %v1046 = vld [vmem:[%s3 + $0x818] sm:$0xff]
  %v1047 = vld [vmem:[%s3 + $0x820] sm:$0xff]
  %v1048 = vld [vmem:[%s3 + $0x828] sm:$0xff]
  %v1049 = vld [vmem:[%s3 + $0x830] sm:$0xff]
  %v1050 = vld [vmem:[%s3 + $0x838] sm:$0xff]
  %v1051 = vld [vmem:[%s3 + $0x840] sm:$0xff]
  %v1052 = vld [vmem:[%s3 + $0x848] sm:$0xff]
  %v1053 = vld [vmem:[%s3 + $0x850] sm:$0xff]
  %v1054 = vld [vmem:[%s3 + $0x858] sm:$0xff]
  %v1055 = vld [vmem:[%s3 + $0x860] sm:$0xff]
  %v1056 = vld [vmem:[%s3 + $0x868] sm:$0xff]
  %v1057 = vld [vmem:[%s3 + $0x870] sm:$0xff]
  %v1058 = vld [vmem:[%s3 + $0x878] sm:$0xff]
  %v1059 = vld [vmem:[%s3 + $0x880] sm:$0xff]
  %v1060 = vld [vmem:[%s3 + $0x888] sm:$0xff]
  %v1061 = vld [vmem:[%s3 + $0x890] sm:$0xff]
  %v1062 = vld [vmem:[%s3 + $0x898] sm:$0xff]
  %v1063 = vld [vmem:[%s3 + $0x8a0] sm:$0xff]
  %v1064 = vld [vmem:[%s3 + $0x8a8] sm:$0xff]
  %v1065 = vld [vmem:[%s3 + $0x8b0] sm:$0xff]
  %v1066 = vld [vmem:[%s3 + $0x8b8] sm:$0xff]
  %v1067 = vld [vmem:[%s3 + $0x8c0] sm:$0xff]
  %v1068 = vld [vmem:[%s3 + $0x8c8] sm:$0xff]
  %v1069 = vld [vmem:[%s3 + $0x8d0] sm:$0xff]
  %v1070 = vld [vmem:[%s3 + $0x8d8] sm:$0xff]
  %v1071 = vld [vmem:[%s3 + $0x8e0] sm:$0xff]
  %v1072 = vld [vmem:[%s3 + $0x8e8] sm:$0xff]
  %v1073 = vld [vmem:[%s3 + $0x8f0] sm:$0xff]
  %v1074 = vld [vmem:[%s3 + $0x8f8] sm:$0xff]
  %v1075 = vld [vmem:[%s3 + $0x900] sm:$0xff]
  %v1076 = vld [vmem:[%s3 + $0x908] sm:$0xff]
  %v1077 = vld [vmem:[%s3 + $0x910] sm:$0xff]
  %v1078 = vld [vmem:[%s3 + $0x918] sm:$0xff]
  %v1079 = vld [vmem:[%s3 + $0x920] sm:$0xff]
  %v1080 = vld [vmem:[%s3 + $0x928] sm:$0xff]
  %v1081 = vld [vmem:[%s3 + $0x930] sm:$0xff]
  %v1082 = vld [vmem:[%s3 + $0x938] sm:$0xff]
  %v1083 = vld [vmem:[%s3 + $0x940] sm:$0xff]
  %v1084 = vld [vmem:[%s3 + $0x948] sm:$0xff]
  %v1085 = vld [vmem:[%s3 + $0x950] sm:$0xff]
  %v1086 = vld [vmem:[%s3 + $0x958] sm:$0xff]
  %v1087 = vld [vmem:[%s3 + $0x960] sm:$0xff]
  %v1088 = vld [vmem:[%s3 + $0x968] sm:$0xff]
  %v1089 = vld [vmem:[%s3 + $0x970] sm:$0xff]
  %v1090 = vld [vmem:[%s3 + $0x978] sm:$0xff]
  %v1091 = vld [vmem:[%s3 + $0x980] sm:$0xff]
  %v1092 = vld [vmem:[%s3 + $0x988] sm:$0xff]
  %v1093 = vld [vmem:[%s3 + $0x990] sm:$0xff]
  %v1094 = vld [vmem:[%s3 + $0x998] sm:$0xff]
  %v1095 = vld [vmem:[%s3 + $0x9a0] sm:$0xff]
  %v1096 = vld [vmem:[%s3 + $0x9a8] sm:$0xff]
  %v1097 = vld [vmem:[%s3 + $0x9b0] sm:$0xff]
  %v1098 = vld [vmem:[%s3 + $0x9b8] sm:$0xff]
  %v1099 = vld [vmem:[%s3 + $0x9c0] sm:$0xff]
  %v1100 = vld [vmem:[%s3 + $0x9c8] sm:$0xff]
  %v1101 = vld [vmem:[%s3 + $0x9d0] sm:$0xff]
  %v1102 = vld [vmem:[%s3 + $0x9d8] sm:$0xff]
  %v1103 = vld [vmem:[%s3 + $0x9e0] sm:$0xff]
  %v1104 = vld [vmem:[%s3 + $0x9e8] sm:$0xff]
  %v1105 = vld [vmem:[%s3 + $0x9f0] sm:$0xff]
  %v1106 = vld [vmem:[%s3 + $0x9f8] sm:$0xff]
  %v1107 = vld [vmem:[%s3 + $0xa00] sm:$0xff]
  %v1108 = vld [vmem:[%s3 + $0xa08] sm:$0xff]
  %v1109 = vld [vmem:[%s3 + $0xa10] sm:$0xff]
  %v1110 = vld [vmem:[%s3 + $0xa18] sm:$0xff]
  %v1111 = vld [vmem:[%s3 + $0xa20] sm:$0xff]
  %v1112 = vld [vmem:[%s3 + $0xa28] sm:$0xff]
  %v1113 = vld [vmem:[%s3 + $0xa30] sm:$0xff]
  %v1114 = vld [vmem:[%s3 + $0xa38] sm:$0xff]
  %v1115 = vld [vmem:[%s3 + $0xa40] sm:$0xff]
  %v1116 = vld [vmem:[%s3 + $0xa48] sm:$0xff]
  %v1117 = vld [vmem:[%s3 + $0xa50] sm:$0xff]
  %v1118 = vld [vmem:[%s3 + $0xa58] sm:$0xff]
  %v1119 = vld [vmem:[%s3 + $0xa60] sm:$0xff]
  %v1120 = vld [vmem:[%s3 + $0xa68] sm:$0xff]
  %v1121 = vld [vmem:[%s3 + $0xa70] sm:$0xff]
  %v1122 = vld [vmem:[%s3 + $0xa78] sm:$0xff]
  %v1123 = vld [vmem:[%s3 + $0xa80] sm:$0xff]
  %v1124 = vld [vmem:[%s3 + $0xa88] sm:$0xff]
  %v1125 = vld [vmem:[%s3 + $0xa90] sm:$0xff]
  %v1126 = vld [vmem:[%s3 + $0xa98] sm:$0xff]
  %v1127 = vld [vmem:[%s3 + $0xaa0] sm:$0xff]
  %v1128 = vld [vmem:[%s3 + $0xaa8] sm:$0xff]
  %v1129 = vld [vmem:[%s3 + $0xab0] sm:$0xff]
  %v1130 = vld [vmem:[%s3 + $0xab8] sm:$0xff]
  %v1131 = vld [vmem:[%s3 + $0xac0] sm:$0xff]
  %v1132 = vld [vmem:[%s3 + $0xac8] sm:$0xff]
  %v1133 = vld [vmem:[%s3 + $0xad0] sm:$0xff]
  %v1134 = vld [vmem:[%s3 + $0xad8] sm:$0xff]
  %v1135 = vld [vmem:[%s3 + $0xae0] sm:$0xff]
  %v1136 = vld [vmem:[%s3 + $0xae8] sm:$0xff]
  %v1137 = vld [vmem:[%s3 + $0xaf0] sm:$0xff]
  %v1138 = vld [vmem:[%s3 + $0xaf8] sm:$0xff]
  %v1139 = vld [vmem:[%s3 + $0xb00] sm:$0xff]
  %v1140 = vld [vmem:[%s3 + $0xb08] sm:$0xff]
  %v1141 = vld [vmem:[%s3 + $0xb10] sm:$0xff]
  %v1142 = vld [vmem:[%s3 + $0xb18] sm:$0xff]
  %v1143 = vld [vmem:[%s3 + $0xb20] sm:$0xff]
  %v1144 = vld [vmem:[%s3 + $0xb28] sm:$0xff]
  %v1145 = vld [vmem:[%s3 + $0xb30] sm:$0xff]
  %v1146 = vld [vmem:[%s3 + $0xb38] sm:$0xff]
  %v1147 = vld [vmem:[%s3 + $0xb40] sm:$0xff]
  %v1148 = vld [vmem:[%s3 + $0xb48] sm:$0xff]
  %v1149 = vld [vmem:[%s3 + $0xb50] sm:$0xff]
  %v1150 = vld [vmem:[%s3 + $0xb58] sm:$0xff]
  %v1151 = vld [vmem:[%s3 + $0xb60] sm:$0xff]
  %v1152 = vld [vmem:[%s3 + $0xb68] sm:$0xff]
  %v1153 = vld [vmem:[%s3 + $0xb70] sm:$0xff]
  %v1154 = vld [vmem:[%s3 + $0xb78] sm:$0xff]
  %v1155 = vld [vmem:[%s3 + $0xb80] sm:$0xff]
  %v1156 = vld [vmem:[%s3 + $0xb88] sm:$0xff]
  %v1157 = vld [vmem:[%s3 + $0xb90] sm:$0xff]
  %v1158 = vld [vmem:[%s3 + $0xb98] sm:$0xff]
  %v1159 = vld [vmem:[%s3 + $0xba0] sm:$0xff]
  %v1160 = vld [vmem:[%s3 + $0xba8] sm:$0xff]
  %v1161 = vld [vmem:[%s3 + $0xbb0] sm:$0xff]
  %v1162 = vld [vmem:[%s3 + $0xbb8] sm:$0xff]
  %v1163 = vld [vmem:[%s3 + $0xbc0] sm:$0xff]
  %v1164 = vld [vmem:[%s3 + $0xbc8] sm:$0xff]
  %v1165 = vld [vmem:[%s3 + $0xbd0] sm:$0xff]
  %v1166 = vld [vmem:[%s3 + $0xbd8] sm:$0xff]
  %v1167 = vld [vmem:[%s3 + $0xbe0] sm:$0xff]
  %v1168 = vld [vmem:[%s3 + $0xbe8] sm:$0xff]
  %v1169 = vld [vmem:[%s3 + $0xbf0] sm:$0xff]
  %v1170 = vld [vmem:[%s3 + $0xbf8] sm:$0xff]
  %v1171 = vld [vmem:[%s3 + $0xc00] sm:$0xff]
  %v1172 = vld [vmem:[%s3 + $0xc08] sm:$0xff]
  %v1173 = vld [vmem:[%s3 + $0xc10] sm:$0xff]
  %v1174 = vld [vmem:[%s3 + $0xc18] sm:$0xff]
  %v1175 = vld [vmem:[%s3 + $0xc20] sm:$0xff]
  %v1176 = vld [vmem:[%s3 + $0xc28] sm:$0xff]
  %v1177 = vld [vmem:[%s3 + $0xc30] sm:$0xff]
  %v1178 = vld [vmem:[%s3 + $0xc38] sm:$0xff]
  %v1179 = vld [vmem:[%s3 + $0xc40] sm:$0xff]
  %v1180 = vld [vmem:[%s3 + $0xc48] sm:$0xff]
  %v1181 = vld [vmem:[%s3 + $0xc50] sm:$0xff]
  %v1182 = vld [vmem:[%s3 + $0xc58] sm:$0xff]
  %v1183 = vld [vmem:[%s3 + $0xc60] sm:$0xff]
  %v1184 = vld [vmem:[%s3 + $0xc68] sm:$0xff]
  %v1185 = vld [vmem:[%s3 + $0xc70] sm:$0xff]
  %v1186 = vld [vmem:[%s3 + $0xc78] sm:$0xff]
  %v1187 = vld [vmem:[%s3 + $0xc80] sm:$0xff]
  %v1188 = vld [vmem:[%s3 + $0xc88] sm:$0xff]
  %v1189 = vld [vmem:[%s3 + $0xc90] sm:$0xff]
  %v1190 = vld [vmem:[%s3 + $0xc98] sm:$0xff]
  %v1191 = vld [vmem:[%s3 + $0xca0] sm:$0xff]
  %v1192 = vld [vmem:[%s3 + $0xca8] sm:$0xff]
  %v1193 = vld [vmem:[%s3 + $0xcb0] sm:$0xff]
  %v1194 = vld [vmem:[%s3 + $0xcb8] sm:$0xff]
  %v1195 = vld [vmem:[%s3 + $0xcc0] sm:$0xff]
  %v1196 = vld [vmem:[%s3 + $0xcc8] sm:$0xff]
  %v1197 = vld [vmem:[%s3 + $0xcd0] sm:$0xff]
  %v1198 = vld [vmem:[%s3 + $0xcd8] sm:$0xff]
  %v1199 = vld [vmem:[%s3 + $0xce0] sm:$0xff]
  %v1200 = vld [vmem:[%s3 + $0xce8] sm:$0xff]
  %v1201 = vld [vmem:[%s3 + $0xcf0] sm:$0xff]
  %v1202 = vld [vmem:[%s3 + $0xcf8] sm:$0xff]
  %v1203 = vld [vmem:[%s3 + $0xd00] sm:$0xff]
  %v1204 = vld [vmem:[%s3 + $0xd08] sm:$0xff]
  %v1205 = vld [vmem:[%s3 + $0xd10] sm:$0xff]
  %v1206 = vld [vmem:[%s3 + $0xd18] sm:$0xff]
  %v1207 = vld [vmem:[%s3 + $0xd20] sm:$0xff]
  %v1208 = vld [vmem:[%s3 + $0xd28] sm:$0xff]
  %v1209 = vld [vmem:[%s3 + $0xd30] sm:$0xff]
  %v1210 = vld [vmem:[%s3 + $0xd38] sm:$0xff]
  %v1211 = vld [vmem:[%s3 + $0xd40] sm:$0xff]
  %v1212 = vld [vmem:[%s3 + $0xd48] sm:$0xff]
  %v1213 = vld [vmem:[%s3 + $0xd50] sm:$0xff]
  %v1214 = vld [vmem:[%s3 + $0xd58] sm:$0xff]
  %v1215 = vld [vmem:[%s3 + $0xd60] sm:$0xff]
  %v1216 = vld [vmem:[%s3 + $0xd68] sm:$0xff]
  %v1217 = vld [vmem:[%s3 + $0xd70] sm:$0xff]
  %v1218 = vld [vmem:[%s3 + $0xd78] sm:$0xff]
  %v1219 = vld [vmem:[%s3 + $0xd80] sm:$0xff]
  %v1220 = vld [vmem:[%s3 + $0xd88] sm:$0xff]
  %v1221 = vld [vmem:[%s3 + $0xd90] sm:$0xff]
  %v1222 = vld [vmem:[%s3 + $0xd98] sm:$0xff]
  %v1223 = vld [vmem:[%s3 + $0xda0] sm:$0xff]
  %v1224 = vld [vmem:[%s3 + $0xda8] sm:$0xff]
  %v1225 = vld [vmem:[%s3 + $0xdb0] sm:$0xff]
  %v1226 = vld [vmem:[%s3 + $0xdb8] sm:$0xff]
  %v1227 = vld [vmem:[%s3 + $0xdc0] sm:$0xff]
  %v1228 = vld [vmem:[%s3 + $0xdc8] sm:$0xff]
  %v1229 = vld [vmem:[%s3 + $0xdd0] sm:$0xff]
  %v1230 = vld [vmem:[%s3 + $0xdd8] sm:$0xff]
  %v1231 = vld [vmem:[%s3 + $0xde0] sm:$0xff]
  %v1232 = vld [vmem:[%s3 + $0xde8] sm:$0xff]
  %v1233 = vld [vmem:[%s3 + $0xdf0] sm:$0xff]
  %v1234 = vld [vmem:[%s3 + $0xdf8] sm:$0xff]
  %v1235 = vld [vmem:[%s3 + $0xe00] sm:$0xff]
  %v1236 = vld [vmem:[%s3 + $0xe08] sm:$0xff]
  %v1237 = vld [vmem:[%s3 + $0xe10] sm:$0xff]
  %v1238 = vld [vmem:[%s3 + $0xe18] sm:$0xff]
  %v1239 = vld [vmem:[%s3 + $0xe20] sm:$0xff]
  %v1240 = vld [vmem:[%s3 + $0xe28] sm:$0xff]
  %v1241 = vld [vmem:[%s3 + $0xe30] sm:$0xff]
  %v1242 = vld [vmem:[%s3 + $0xe38] sm:$0xff]
  %v1243 = vld [vmem:[%s3 + $0xe40] sm:$0xff]
  %v1244 = vld [vmem:[%s3 + $0xe48] sm:$0xff]
  %v1245 = vld [vmem:[%s3 + $0xe50] sm:$0xff]
  %v1246 = vld [vmem:[%s3 + $0xe58] sm:$0xff]
  %v1247 = vld [vmem:[%s3 + $0xe60] sm:$0xff]
  %v1248 = vld [vmem:[%s3 + $0xe68] sm:$0xff]
  %v1249 = vld [vmem:[%s3 + $0xe70] sm:$0xff]
  %v1250 = vld [vmem:[%s3 + $0xe78] sm:$0xff]
  %v1251 = vld [vmem:[%s3 + $0xe80] sm:$0xff]
  %v1252 = vld [vmem:[%s3 + $0xe88] sm:$0xff]
  %v1253 = vld [vmem:[%s3 + $0xe90] sm:$0xff]
  %v1254 = vld [vmem:[%s3 + $0xe98] sm:$0xff]
  %v1255 = vld [vmem:[%s3 + $0xea0] sm:$0xff]
  %v1256 = vld [vmem:[%s3 + $0xea8] sm:$0xff]
  %v1257 = vld [vmem:[%s3 + $0xeb0] sm:$0xff]
  %v1258 = vld [vmem:[%s3 + $0xeb8] sm:$0xff]
  %v1259 = vld [vmem:[%s3 + $0xec0] sm:$0xff]
  %v1260 = vld [vmem:[%s3 + $0xec8] sm:$0xff]
  %v1261 = vld [vmem:[%s3 + $0xed0] sm:$0xff]
  %v1262 = vld [vmem:[%s3 + $0xed8] sm:$0xff]
  %v1263 = vld [vmem:[%s3 + $0xee0] sm:$0xff]
  %v1264 = vld [vmem:[%s3 + $0xee8] sm:$0xff]
  %v1265 = vld [vmem:[%s3 + $0xef0] sm:$0xff]
  %v1266 = vld [vmem:[%s3 + $0xef8] sm:$0xff]
  %v1267 = vld [vmem:[%s3 + $0xf00] sm:$0xff]
  %v1268 = vld [vmem:[%s3 + $0xf08] sm:$0xff]
  %v1269 = vld [vmem:[%s3 + $0xf10] sm:$0xff]
  %v1270 = vld [vmem:[%s3 + $0xf18] sm:$0xff]
  %v1271 = vld [vmem:[%s3 + $0xf20] sm:$0xff]
  %v1272 = vld [vmem:[%s3 + $0xf28] sm:$0xff]
  %v1273 = vld [vmem:[%s3 + $0xf30] sm:$0xff]
  %v1274 = vld [vmem:[%s3 + $0xf38] sm:$0xff]
  %v1275 = vld [vmem:[%s3 + $0xf40] sm:$0xff]
  %v1276 = vld [vmem:[%s3 + $0xf48] sm:$0xff]
  %v1277 = vld [vmem:[%s3 + $0xf50] sm:$0xff]
  %v1278 = vld [vmem:[%s3 + $0xf58] sm:$0xff]
  %v1279 = vld [vmem:[%s3 + $0xf60] sm:$0xff]
  %v1280 = vld [vmem:[%s3 + $0xf68] sm:$0xff]
  %v1281 = vld [vmem:[%s3 + $0xf70] sm:$0xff]
  %v1282 = vld [vmem:[%s3 + $0xf78] sm:$0xff]
  %v1283 = vld [vmem:[%s3 + $0xf80] sm:$0xff]
  %v1284 = vld [vmem:[%s3 + $0xf88] sm:$0xff]
  %v1285 = vld [vmem:[%s3 + $0xf90] sm:$0xff]
  %v1286 = vld [vmem:[%s3 + $0xf98] sm:$0xff]
  %v1287 = vld [vmem:[%s3 + $0xfa0] sm:$0xff]
  %v1288 = vld [vmem:[%s3 + $0xfa8] sm:$0xff]
  %v1289 = vld [vmem:[%s3 + $0xfb0] sm:$0xff]
  %v1290 = vld [vmem:[%s3 + $0xfb8] sm:$0xff]
  %v1291 = vld [vmem:[%s3 + $0xfc0] sm:$0xff]
  %v1292 = vld [vmem:[%s3 + $0xfc8] sm:$0xff]
  %v1293 = vld [vmem:[%s3 + $0xfd0] sm:$0xff]
  %v1294 = vld [vmem:[%s3 + $0xfd8] sm:$0xff]
  %v1295 = vld [vmem:[%s3 + $0xfe0] sm:$0xff]
  %v1296 = vld [vmem:[%s3 + $0xfe8] sm:$0xff]
  %v1297 = vld [vmem:[%s3 + $0xff0] sm:$0xff]
  %v1298 = vld [vmem:[%s3 + $0xff8] sm:$0xff]
  %v1299 = vld [vmem:[%s3 + $0x1000] sm:$0xff]
  %v1300 = vld [vmem:[%s3 + $0x1008] sm:$0xff]
  %v1301 = vld [vmem:[%s3 + $0x1010] sm:$0xff]
  %v1302 = vld [vmem:[%s3 + $0x1018] sm:$0xff]
  %v1303 = vld [vmem:[%s3 + $0x1020] sm:$0xff]
  %v1304 = vld [vmem:[%s3 + $0x1028] sm:$0xff]
  %v1305 = vld [vmem:[%s3 + $0x1030] sm:$0xff]
  %v1306 = vld [vmem:[%s3 + $0x1038] sm:$0xff]
  %v1307 = vld [vmem:[%s3 + $0x1040] sm:$0xff]
  %v1308 = vld [vmem:[%s3 + $0x1048] sm:$0xff]
  %v1309 = vld [vmem:[%s3 + $0x1050] sm:$0xff]
  %v1310 = vld [vmem:[%s3 + $0x1058] sm:$0xff]
  %v1311 = vld [vmem:[%s3 + $0x1060] sm:$0xff]
  %v1312 = vld [vmem:[%s3 + $0x1068] sm:$0xff]
  %v1313 = vld [vmem:[%s3 + $0x1070] sm:$0xff]
  %v1314 = vld [vmem:[%s3 + $0x1078] sm:$0xff]
  %v1315 = vld [vmem:[%s3 + $0x1080] sm:$0xff]
  %v1316 = vld [vmem:[%s3 + $0x1088] sm:$0xff]
  %v1317 = vld [vmem:[%s3 + $0x1090] sm:$0xff]
  %v1318 = vld [vmem:[%s3 + $0x1098] sm:$0xff]
  %v1319 = vld [vmem:[%s3 + $0x10a0] sm:$0xff]
  %v1320 = vld [vmem:[%s3 + $0x10a8] sm:$0xff]
  %v1321 = vld [vmem:[%s3 + $0x10b0] sm:$0xff]
  %v1322 = vld [vmem:[%s3 + $0x10b8] sm:$0xff]
  %v1323 = vld [vmem:[%s3 + $0x10c0] sm:$0xff]
  %v1324 = vld [vmem:[%s3 + $0x10c8] sm:$0xff]
  %v1325 = vld [vmem:[%s3 + $0x10d0] sm:$0xff]
  %v1326 = vld [vmem:[%s3 + $0x10d8] sm:$0xff]
  %v1327 = vld [vmem:[%s3 + $0x10e0] sm:$0xff]
  %v1328 = vld [vmem:[%s3 + $0x10e8] sm:$0xff]
  %v1329 = vld [vmem:[%s3 + $0x10f0] sm:$0xff]
  %v1330 = vld [vmem:[%s3 + $0x10f8] sm:$0xff]
  %v1331 = vld [vmem:[%s3 + $0x1100] sm:$0xff]
  %v1332 = vld [vmem:[%s3 + $0x1108] sm:$0xff]
  %v1333 = vld [vmem:[%s3 + $0x1110] sm:$0xff]
  %v1334 = vld [vmem:[%s3 + $0x1118] sm:$0xff]
  %v1335 = vld [vmem:[%s3 + $0x1120] sm:$0xff]
  %v1336 = vld [vmem:[%s3 + $0x1128] sm:$0xff]
  %v1337 = vld [vmem:[%s3 + $0x1130] sm:$0xff]
  %v1338 = vld [vmem:[%s3 + $0x1138] sm:$0xff]
  %v1339 = vld [vmem:[%s3 + $0x1140] sm:$0xff]
  %v1340 = vld [vmem:[%s3 + $0x1148] sm:$0xff]
  %v1341 = vld [vmem:[%s3 + $0x1150] sm:$0xff]
  %v1342 = vld [vmem:[%s3 + $0x1158] sm:$0xff]
  %v1343 = vld [vmem:[%s3 + $0x1160] sm:$0xff]
  %v1344 = vld [vmem:[%s3 + $0x1168] sm:$0xff]
  %v1345 = vld [vmem:[%s3 + $0x1170] sm:$0xff]
  %v1346 = vld [vmem:[%s3 + $0x1178] sm:$0xff]
  %v1347 = vld [vmem:[%s3 + $0x1180] sm:$0xff]
  %v1348 = vld [vmem:[%s3 + $0x1188] sm:$0xff]
  %v1349 = vld [vmem:[%s3 + $0x1190] sm:$0xff]
  %v1350 = vld [vmem:[%s3 + $0x1198] sm:$0xff]
  %v1351 = vld [vmem:[%s3 + $0x11a0] sm:$0xff]
  %v1352 = vld [vmem:[%s3 + $0x11a8] sm:$0xff]
  %v1353 = vld [vmem:[%s3 + $0x11b0] sm:$0xff]
  %v1354 = vld [vmem:[%s3 + $0x11b8] sm:$0xff]
  %v1355 = vld [vmem:[%s3 + $0x11c0] sm:$0xff]
  %v1356 = vld [vmem:[%s3 + $0x11c8] sm:$0xff]
  %v1357 = vld [vmem:[%s3 + $0x11d0] sm:$0xff]
  %v1358 = vld [vmem:[%s3 + $0x11d8] sm:$0xff]
  %v1359 = vld [vmem:[%s3 + $0x11e0] sm:$0xff]
  %v1360 = vld [vmem:[%s3 + $0x11e8] sm:$0xff]
  %v1361 = vld [vmem:[%s3 + $0x11f0] sm:$0xff]
  %v1362 = vld [vmem:[%s3 + $0x11f8] sm:$0xff]
  %v1363 = vld [vmem:[%s3 + $0x1200] sm:$0xff]
  %v1364 = vld [vmem:[%s3 + $0x1208] sm:$0xff]
  %v1365 = vld [vmem:[%s3 + $0x1210] sm:$0xff]
  %v1366 = vld [vmem:[%s3 + $0x1218] sm:$0xff]
  %v1367 = vld [vmem:[%s3 + $0x1220] sm:$0xff]
  %v1368 = vld [vmem:[%s3 + $0x1228] sm:$0xff]
  %v1369 = vld [vmem:[%s3 + $0x1230] sm:$0xff]
  %v1370 = vld [vmem:[%s3 + $0x1238] sm:$0xff]
  %v1371 = vld [vmem:[%s3 + $0x1240] sm:$0xff]
  %v1372 = vld [vmem:[%s3 + $0x1248] sm:$0xff]
  %v1373 = vld [vmem:[%s3 + $0x1250] sm:$0xff]
  %v1374 = vld [vmem:[%s3 + $0x1258] sm:$0xff]
  %v1375 = vld [vmem:[%s3 + $0x1260] sm:$0xff]
  %v1376 = vld [vmem:[%s3 + $0x1268] sm:$0xff]
  %v1377 = vld [vmem:[%s3 + $0x1270] sm:$0xff]
  %v1378 = vld [vmem:[%s3 + $0x1278] sm:$0xff]
  %v1379 = vld [vmem:[%s3 + $0x1280] sm:$0xff]
  %v1380 = vld [vmem:[%s3 + $0x1288] sm:$0xff]
  %v1381 = vld [vmem:[%s3 + $0x1290] sm:$0xff]
  %v1382 = vld [vmem:[%s3 + $0x1298] sm:$0xff]
  %v1383 = vld [vmem:[%s3 + $0x12a0] sm:$0xff]
  %v1384 = vld [vmem:[%s3 + $0x12a8] sm:$0xff]
  %v1385 = vld [vmem:[%s3 + $0x12b0] sm:$0xff]
  %v1386 = vld [vmem:[%s3 + $0x12b8] sm:$0xff]
  %v1387 = vld [vmem:[%s3 + $0x12c0] sm:$0xff]
  %v1388 = vld [vmem:[%s3 + $0x12c8] sm:$0xff]
  %v1389 = vld [vmem:[%s3 + $0x12d0] sm:$0xff]
  %v1390 = vld [vmem:[%s3 + $0x12d8] sm:$0xff]
  %v1391 = vld [vmem:[%s3 + $0x12e0] sm:$0xff]
  %v1392 = vld [vmem:[%s3 + $0x12e8] sm:$0xff]
  %v1393 = vld [vmem:[%s3 + $0x12f0] sm:$0xff]
  %v1394 = vld [vmem:[%s3 + $0x12f8] sm:$0xff]
  %v1395 = vld [vmem:[%s3 + $0x1300] sm:$0xff]
  %v1396 = vld [vmem:[%s3 + $0x1308] sm:$0xff]
  %v1397 = vld [vmem:[%s3 + $0x1310] sm:$0xff]
  %v1398 = vld [vmem:[%s3 + $0x1318] sm:$0xff]
  %v1399 = vld [vmem:[%s3 + $0x1320] sm:$0xff]
  %v1400 = vld [vmem:[%s3 + $0x1328] sm:$0xff]
  %v1401 = vld [vmem:[%s3 + $0x1330] sm:$0xff]
  %v1402 = vld [vmem:[%s3 + $0x1338] sm:$0xff]
  %v1403 = vld [vmem:[%s3 + $0x1340] sm:$0xff]
  %v1404 = vld [vmem:[%s3 + $0x1348] sm:$0xff]
  %v1405 = vld [vmem:[%s3 + $0x1350] sm:$0xff]
  %v1406 = vld [vmem:[%s3 + $0x1358] sm:$0xff]
  %v1407 = vld [vmem:[%s3 + $0x1360] sm:$0xff]
  %v1408 = vld [vmem:[%s3 + $0x1368] sm:$0xff]
  %v1409 = vld [vmem:[%s3 + $0x1370] sm:$0xff]
  %v1410 = vld [vmem:[%s3 + $0x1378] sm:$0xff]
  %v1411 = vld [vmem:[%s3 + $0x1380] sm:$0xff]
  %v1412 = vld [vmem:[%s3 + $0x1388] sm:$0xff]
  %v1413 = vld [vmem:[%s3 + $0x1390] sm:$0xff]
  %v1414 = vld [vmem:[%s3 + $0x1398] sm:$0xff]
  %v1415 = vld [vmem:[%s3 + $0x13a0] sm:$0xff]
  %v1416 = vld [vmem:[%s3 + $0x13a8] sm:$0xff]
  %v1417 = vld [vmem:[%s3 + $0x13b0] sm:$0xff]
  %v1418 = vld [vmem:[%s3 + $0x13b8] sm:$0xff]
  %v1419 = vld [vmem:[%s3 + $0x13c0] sm:$0xff]
  %v1420 = vld [vmem:[%s3 + $0x13c8] sm:$0xff]
  %v1421 = vld [vmem:[%s3 + $0x13d0] sm:$0xff]
  %v1422 = vld [vmem:[%s3 + $0x13d8] sm:$0xff]
  %v1423 = vld [vmem:[%s3 + $0x13e0] sm:$0xff]
  %v1424 = vld [vmem:[%s3 + $0x13e8] sm:$0xff]
  %v1425 = vld [vmem:[%s3 + $0x13f0] sm:$0xff]
  %v1426 = vld [vmem:[%s3 + $0x13f8] sm:$0xff]
  %v1427 = vld [vmem:[%s3 + $0x1400] sm:$0xff]
  %v1428 = vld [vmem:[%s3 + $0x1408] sm:$0xff]
  %v1429 = vld [vmem:[%s3 + $0x1410] sm:$0xff]
  %v1430 = vld [vmem:[%s3 + $0x1418] sm:$0xff]
  %v1431 = vld [vmem:[%s3 + $0x1420] sm:$0xff]
  %v1432 = vld [vmem:[%s3 + $0x1428] sm:$0xff]
  %v1433 = vld [vmem:[%s3 + $0x1430] sm:$0xff]
  %v1434 = vld [vmem:[%s3 + $0x1438] sm:$0xff]
  %v1435 = vld [vmem:[%s3 + $0x1440] sm:$0xff]
  %v1436 = vld [vmem:[%s3 + $0x1448] sm:$0xff]
  %v1437 = vld [vmem:[%s3 + $0x1450] sm:$0xff]
  %v1438 = vld [vmem:[%s3 + $0x1458] sm:$0xff]
  %v1439 = vld [vmem:[%s3 + $0x1460] sm:$0xff]
  %v1440 = vld [vmem:[%s3 + $0x1468] sm:$0xff]
  %v1441 = vld [vmem:[%s3 + $0x1470] sm:$0xff]
  %v1442 = vld [vmem:[%s3 + $0x1478] sm:$0xff]
  %v1443 = vld [vmem:[%s3 + $0x1480] sm:$0xff]
  %v1444 = vld [vmem:[%s3 + $0x1488] sm:$0xff]
  %v1445 = vld [vmem:[%s3 + $0x1490] sm:$0xff]
  %v1446 = vld [vmem:[%s3 + $0x1498] sm:$0xff]
  %v1447 = vld [vmem:[%s3 + $0x14a0] sm:$0xff]
  %v1448 = vld [vmem:[%s3 + $0x14a8] sm:$0xff]
  %v1449 = vld [vmem:[%s3 + $0x14b0] sm:$0xff]
  %v1450 = vld [vmem:[%s3 + $0x14b8] sm:$0xff]
  %v1451 = vld [vmem:[%s3 + $0x14c0] sm:$0xff]
  %v1452 = vld [vmem:[%s3 + $0x14c8] sm:$0xff]
  %v1453 = vld [vmem:[%s3 + $0x14d0] sm:$0xff]
  %v1454 = vld [vmem:[%s3 + $0x14d8] sm:$0xff]
  %v1455 = vld [vmem:[%s3 + $0x14e0] sm:$0xff]
  %v1456 = vld [vmem:[%s3 + $0x14e8] sm:$0xff]
  %v1457 = vld [vmem:[%s3 + $0x14f0] sm:$0xff]
  %v1458 = vld [vmem:[%s3 + $0x14f8] sm:$0xff]
  %v1459 = vld [vmem:[%s3 + $0x1500] sm:$0xff]
  %v1460 = vld [vmem:[%s3 + $0x1508] sm:$0xff]
  %v1461 = vld [vmem:[%s3 + $0x1510] sm:$0xff]
  %v1462 = vld [vmem:[%s3 + $0x1518] sm:$0xff]
  %v1463 = vld [vmem:[%s3 + $0x1520] sm:$0xff]
  %v1464 = vld [vmem:[%s3 + $0x1528] sm:$0xff]
  %v1465 = vld [vmem:[%s3 + $0x1530] sm:$0xff]
  %v1466 = vld [vmem:[%s3 + $0x1538] sm:$0xff]
  %v1467 = vld [vmem:[%s3 + $0x1540] sm:$0xff]
  %v1468 = vld [vmem:[%s3 + $0x1548] sm:$0xff]
  %v1469 = vld [vmem:[%s3 + $0x1550] sm:$0xff]
  %v1470 = vld [vmem:[%s3 + $0x1558] sm:$0xff]
  %v1471 = vld [vmem:[%s3 + $0x1560] sm:$0xff]
  %v1472 = vld [vmem:[%s3 + $0x1568] sm:$0xff]
  %v1473 = vld [vmem:[%s3 + $0x1570] sm:$0xff]
  %v1474 = vld [vmem:[%s3 + $0x1578] sm:$0xff]
  %v1475 = vld [vmem:[%s3 + $0x1580] sm:$0xff]
  %v1476 = vld [vmem:[%s3 + $0x1588] sm:$0xff]
  %v1477 = vld [vmem:[%s3 + $0x1590] sm:$0xff]
  %v1478 = vld [vmem:[%s3 + $0x1598] sm:$0xff]
  %v1479 = vld [vmem:[%s3 + $0x15a0] sm:$0xff]
  %v1480 = vld [vmem:[%s3 + $0x15a8] sm:$0xff]
  %v1481 = vld [vmem:[%s3 + $0x15b0] sm:$0xff]
  %v1482 = vld [vmem:[%s3 + $0x15b8] sm:$0xff]
  %v1483 = vld [vmem:[%s3 + $0x15c0] sm:$0xff]
  %v1484 = vld [vmem:[%s3 + $0x15c8] sm:$0xff]
  %v1485 = vld [vmem:[%s3 + $0x15d0] sm:$0xff]
  %v1486 = vld [vmem:[%s3 + $0x15d8] sm:$0xff]
  %v1487 = vld [vmem:[%s3 + $0x15e0] sm:$0xff]
  %v1488 = vld [vmem:[%s3 + $0x15e8] sm:$0xff]
  %v1489 = vld [vmem:[%s3 + $0x15f0] sm:$0xff]
  %v1490 = vld [vmem:[%s3 + $0x15f8] sm:$0xff]
  %v1491 = vld [vmem:[%s3 + $0x1600] sm:$0xff]
  %v1492 = vld [vmem:[%s3 + $0x1608] sm:$0xff]
  %v1493 = vld [vmem:[%s3 + $0x1610] sm:$0xff]
  %v1494 = vld [vmem:[%s3 + $0x1618] sm:$0xff]
  %v1495 = vld [vmem:[%s3 + $0x1620] sm:$0xff]
  %v1496 = vld [vmem:[%s3 + $0x1628] sm:$0xff]
  %v1497 = vld [vmem:[%s3 + $0x1630] sm:$0xff]
  %v1498 = vld [vmem:[%s3 + $0x1638] sm:$0xff]
  %v1499 = vld [vmem:[%s3 + $0x1640] sm:$0xff]
  %v1500 = vld [vmem:[%s3 + $0x1648] sm:$0xff]
  %v1501 = vld [vmem:[%s3 + $0x1650] sm:$0xff]
  %v1502 = vld [vmem:[%s3 + $0x1658] sm:$0xff]
  %v1503 = vld [vmem:[%s3 + $0x1660] sm:$0xff]
  %v1504 = vld [vmem:[%s3 + $0x1668] sm:$0xff]
  %v1505 = vld [vmem:[%s3 + $0x1670] sm:$0xff]
  %v1506 = vld [vmem:[%s3 + $0x1678] sm:$0xff]
  %v1507 = vld [vmem:[%s3 + $0x1680] sm:$0xff]
  %v1508 = vld [vmem:[%s3 + $0x1688] sm:$0xff]
  %v1509 = vld [vmem:[%s3 + $0x1690] sm:$0xff]
  %v1510 = vld [vmem:[%s3 + $0x1698] sm:$0xff]
  %v1511 = vld [vmem:[%s3 + $0x16a0] sm:$0xff]
  %v1512 = vld [vmem:[%s3 + $0x16a8] sm:$0xff]
  %v1513 = vld [vmem:[%s3 + $0x16b0] sm:$0xff]
  %v1514 = vld [vmem:[%s3 + $0x16b8] sm:$0xff]
  %v1515 = vld [vmem:[%s3 + $0x16c0] sm:$0xff]
  %v1516 = vld [vmem:[%s3 + $0x16c8] sm:$0xff]
  %v1517 = vld [vmem:[%s3 + $0x16d0] sm:$0xff]
  %v1518 = vld [vmem:[%s3 + $0x16d8] sm:$0xff]
  %v1519 = vld [vmem:[%s3 + $0x16e0] sm:$0xff]
  %v1520 = vld [vmem:[%s3 + $0x16e8] sm:$0xff]
  %v1521 = vld [vmem:[%s3 + $0x16f0] sm:$0xff]
  %v1522 = vld [vmem:[%s3 + $0x16f8] sm:$0xff]
  %v1523 = vld [vmem:[%s3 + $0x1700] sm:$0xff]
  %v1524 = vld [vmem:[%s3 + $0x1708] sm:$0xff]
  %v1525 = vld [vmem:[%s3 + $0x1710] sm:$0xff]
  %v1526 = vld [vmem:[%s3 + $0x1718] sm:$0xff]
  %v1527 = vld [vmem:[%s3 + $0x1720] sm:$0xff]
  %v1528 = vld [vmem:[%s3 + $0x1728] sm:$0xff]
  %v1529 = vld [vmem:[%s3 + $0x1730] sm:$0xff]
  %v1530 = vld [vmem:[%s3 + $0x1738] sm:$0xff]
  %v1531 = vld [vmem:[%s3 + $0x1740] sm:$0xff]
  %v1532 = vld [vmem:[%s3 + $0x1748] sm:$0xff]
  %v1533 = vld [vmem:[%s3 + $0x1750] sm:$0xff]
  %v1534 = vld [vmem:[%s3 + $0x1758] sm:$0xff]
  %v1535 = vld [vmem:[%s3 + $0x1760] sm:$0xff]
  %v1536 = vld [vmem:[%s3 + $0x1768] sm:$0xff]
  %v1537 = vld [vmem:[%s3 + $0x1770] sm:$0xff]
  %v1538 = vld [vmem:[%s3 + $0x1778] sm:$0xff]
  %v1539 = vld [vmem:[%s3 + $0x1780] sm:$0xff]
  %v1540 = vld [vmem:[%s3 + $0x1788] sm:$0xff]
  %v1541 = vld [vmem:[%s3 + $0x1790] sm:$0xff]
  %v1542 = vld [vmem:[%s3 + $0x1798] sm:$0xff]
  %v1543 = vld [vmem:[%s3 + $0x17a0] sm:$0xff]
  %v1544 = vld [vmem:[%s3 + $0x17a8] sm:$0xff]
  %v1545 = vld [vmem:[%s3 + $0x17b0] sm:$0xff]
  %v1546 = vld [vmem:[%s3 + $0x17b8] sm:$0xff]
  %v1547 = vld [vmem:[%s3 + $0x17c0] sm:$0xff]
  %v1548 = vld [vmem:[%s3 + $0x17c8] sm:$0xff]
  %v1549 = vld [vmem:[%s3 + $0x17d0] sm:$0xff]
  %v1550 = vld [vmem:[%s3 + $0x17d8] sm:$0xff]
  %v1551 = vld [vmem:[%s3 + $0x17e0] sm:$0xff]
  %v1552 = vld [vmem:[%s3 + $0x17e8] sm:$0xff]
  %v1553 = vld [vmem:[%s3 + $0x17f0] sm:$0xff]
  %v1554 = vld [vmem:[%s3 + $0x17f8] sm:$0xff]
  %v1555 = vld [vmem:[%s3 + $0x1800] sm:$0xff]
  %v1556 = vld [vmem:[%s3 + $0x1808] sm:$0xff]
  %v1557 = vld [vmem:[%s3 + $0x1810] sm:$0xff]
  %v1558 = vld [vmem:[%s3 + $0x1818] sm:$0xff]
  %v1559 = vld [vmem:[%s3 + $0x1820] sm:$0xff]
  %v1560 = vld [vmem:[%s3 + $0x1828] sm:$0xff]
  %v1561 = vld [vmem:[%s3 + $0x1830] sm:$0xff]
  %v1562 = vld [vmem:[%s3 + $0x1838] sm:$0xff]
  %v1563 = vld [vmem:[%s3 + $0x1840] sm:$0xff]
  %v1564 = vld [vmem:[%s3 + $0x1848] sm:$0xff]
  %v1565 = vld [vmem:[%s3 + $0x1850] sm:$0xff]
  %v1566 = vld [vmem:[%s3 + $0x1858] sm:$0xff]
  %v1567 = vld [vmem:[%s3 + $0x1860] sm:$0xff]
  %v1568 = vld [vmem:[%s3 + $0x1868] sm:$0xff]
  %v1569 = vld [vmem:[%s3 + $0x1870] sm:$0xff]
  %v1570 = vld [vmem:[%s3 + $0x1878] sm:$0xff]
  %v1571 = vld [vmem:[%s3 + $0x1880] sm:$0xff]
  %v1572 = vld [vmem:[%s3 + $0x1888] sm:$0xff]
  %v1573 = vld [vmem:[%s3 + $0x1890] sm:$0xff]
  %v1574 = vld [vmem:[%s3 + $0x1898] sm:$0xff]
  %v1575 = vld [vmem:[%s3 + $0x18a0] sm:$0xff]
  %v1576 = vld [vmem:[%s3 + $0x18a8] sm:$0xff]
  %v1577 = vld [vmem:[%s3 + $0x18b0] sm:$0xff]
  %v1578 = vld [vmem:[%s3 + $0x18b8] sm:$0xff]
  %v1579 = vld [vmem:[%s3 + $0x18c0] sm:$0xff]
  %v1580 = vld [vmem:[%s3 + $0x18c8] sm:$0xff]
  %v1581 = vld [vmem:[%s3 + $0x18d0] sm:$0xff]
  %v1582 = vld [vmem:[%s3 + $0x18d8] sm:$0xff]
  %v1583 = vld [vmem:[%s3 + $0x18e0] sm:$0xff]
  %v1584 = vld [vmem:[%s3 + $0x18e8] sm:$0xff]
  %v1585 = vld [vmem:[%s3 + $0x18f0] sm:$0xff]
  %v1586 = vld [vmem:[%s3 + $0x18f8] sm:$0xff]
  %v1587 = vld [vmem:[%s4] sm:$0xff]
  %v1588 = vld [vmem:[%s4 + $0x8] sm:$0x3]
  %v1591 = vlaneseq
  %v1592 = vshrl.u32 %v1591, 7
  %v1593 = vsub.s32 0, %v1592
  %v1594 = vrot.slane %v1587, %v1593
  %v1595 = vlaneseq
  %v1596 = vshrl.u32 %v1595, 7
  %v1597 = vsub.s32 1, %v1596
  %v1598 = vrot.slane %v1587, %v1597
  %v1599 = vlaneseq
  %v1600 = vshrl.u32 %v1599, 7
  %v1601 = vsub.s32 2, %v1600
  %v1602 = vrot.slane %v1587, %v1601
  %v1603 = vlaneseq
  %v1604 = vshrl.u32 %v1603, 7
  %v1605 = vsub.s32 3, %v1604
  %v1606 = vrot.slane %v1587, %v1605
  %v1607 = vlaneseq
  %v1608 = vshrl.u32 %v1607, 7
  %v1609 = vsub.s32 4, %v1608
  %v1610 = vrot.slane %v1587, %v1609
  %v1611 = vlaneseq
  %v1612 = vshrl.u32 %v1611, 7
  %v1613 = vsub.s32 5, %v1612
  %v1614 = vrot.slane %v1587, %v1613
  %v1615 = vlaneseq
  %v1616 = vshrl.u32 %v1615, 7
  %v1617 = vsub.s32 6, %v1616
  %v1618 = vrot.slane %v1587, %v1617
  %v1619 = vlaneseq
  %v1620 = vshrl.u32 %v1619, 7
  %v1621 = vsub.s32 7, %v1620
  %v1622 = vrot.slane %v1587, %v1621
  %v1623 = vlaneseq
  %v1624 = vshrl.u32 %v1623, 7
  %v1625 = vsub.s32 0, %v1624
  %v1626 = vrot.slane %v1588, %v1625
  %v1627 = vlaneseq
  %v1628 = vshrl.u32 %v1627, 7
  %v1629 = vsub.s32 1, %v1628
  %v1630 = vrot.slane %v1588, %v1629
  %v2441 = vunpack.c.l.b16 %v787
  %v2442 = vunpack.c.h.b16 %v787
  %v2443 = vunpack.c.l.b16 %v788
  %v2444 = vunpack.c.h.b16 %v788
  %v2445 = vunpack.c.l.b16 %v789
  %v2446 = vunpack.c.h.b16 %v789
  %v2447 = vunpack.c.l.b16 %v790
  %v2448 = vunpack.c.h.b16 %v790
  %v2449 = vunpack.c.l.b16 %v791
  %v2450 = vunpack.c.h.b16 %v791
  %v2451 = vunpack.c.l.b16 %v792
  %v2452 = vunpack.c.h.b16 %v792
  %v2453 = vunpack.c.l.b16 %v793
  %v2454 = vunpack.c.h.b16 %v793
  %v2455 = vunpack.c.l.b16 %v794
  %v2456 = vunpack.c.h.b16 %v794
  %v2457 = vunpack.c.l.b16 %v795
  %v2458 = vunpack.c.h.b16 %v795
  %v2459 = vunpack.c.l.b16 %v796
  %v2460 = vunpack.c.h.b16 %v796
  %v2461 = vunpack.c.l.b16 %v797
  %v2462 = vunpack.c.h.b16 %v797
  %v2463 = vunpack.c.l.b16 %v798
  %v2464 = vunpack.c.h.b16 %v798
  %v2465 = vunpack.c.l.b16 %v799
  %v2466 = vunpack.c.h.b16 %v799
  %v2467 = vunpack.c.l.b16 %v800
  %v2468 = vunpack.c.h.b16 %v800
  %v2469 = vunpack.c.l.b16 %v801
  %v2470 = vunpack.c.h.b16 %v801
  %v2471 = vunpack.c.l.b16 %v802
  %v2472 = vunpack.c.h.b16 %v802
  %v2473 = vunpack.c.l.b16 %v803
  %v2474 = vunpack.c.h.b16 %v803
  %v2475 = vunpack.c.l.b16 %v804
  %v2476 = vunpack.c.h.b16 %v804
  %v2477 = vunpack.c.l.b16 %v805
  %v2478 = vunpack.c.h.b16 %v805
  %v2479 = vunpack.c.l.b16 %v806
  %v2480 = vunpack.c.h.b16 %v806
  %v2481 = vunpack.c.l.b16 %v807
  %v2482 = vunpack.c.h.b16 %v807
  %v2483 = vunpack.c.l.b16 %v808
  %v2484 = vunpack.c.h.b16 %v808
  %v2485 = vunpack.c.l.b16 %v809
  %v2486 = vunpack.c.h.b16 %v809
  %v2487 = vunpack.c.l.b16 %v810
  %v2488 = vunpack.c.h.b16 %v810
  %v2489 = vunpack.c.l.b16 %v811
  %v2490 = vunpack.c.h.b16 %v811
  %v2491 = vunpack.c.l.b16 %v812
  %v2492 = vunpack.c.h.b16 %v812
  %v2493 = vunpack.c.l.b16 %v813
  %v2494 = vunpack.c.h.b16 %v813
  %v2495 = vunpack.c.l.b16 %v814
  %v2496 = vunpack.c.h.b16 %v814
  %v2497 = vunpack.c.l.b16 %v815
  %v2498 = vunpack.c.h.b16 %v815
  %v2499 = vunpack.c.l.b16 %v816
  %v2500 = vunpack.c.h.b16 %v816
  %v2501 = vunpack.c.l.b16 %v817
  %v2502 = vunpack.c.h.b16 %v817
  %v2503 = vunpack.c.l.b16 %v818
  %v2504 = vunpack.c.h.b16 %v818
  %v2505 = vunpack.c.l.b16 %v819
  %v2506 = vunpack.c.h.b16 %v819
  %v2507 = vunpack.c.l.b16 %v820
  %v2508 = vunpack.c.h.b16 %v820
  %v2509 = vunpack.c.l.b16 %v821
  %v2510 = vunpack.c.h.b16 %v821
  %v2511 = vunpack.c.l.b16 %v822
  %v2512 = vunpack.c.h.b16 %v822
  %v2513 = vunpack.c.l.b16 %v823
  %v2514 = vunpack.c.h.b16 %v823
  %v2515 = vunpack.c.l.b16 %v824
  %v2516 = vunpack.c.h.b16 %v824
  %v2517 = vunpack.c.l.b16 %v825
  %v2518 = vunpack.c.h.b16 %v825
  %v2519 = vunpack.c.l.b16 %v826
  %v2520 = vunpack.c.h.b16 %v826
  %v2521 = vunpack.c.l.b16 %v827
  %v2522 = vunpack.c.h.b16 %v827
  %v2523 = vunpack.c.l.b16 %v828
  %v2524 = vunpack.c.h.b16 %v828
  %v2525 = vunpack.c.l.b16 %v829
  %v2526 = vunpack.c.h.b16 %v829
  %v2527 = vunpack.c.l.b16 %v830
  %v2528 = vunpack.c.h.b16 %v830
  %v2529 = vunpack.c.l.b16 %v831
  %v2530 = vunpack.c.h.b16 %v831
  %v2531 = vunpack.c.l.b16 %v832
  %v2532 = vunpack.c.h.b16 %v832
  %v2533 = vunpack.c.l.b16 %v833
  %v2534 = vunpack.c.h.b16 %v833
  %v2535 = vunpack.c.l.b16 %v834
  %v2536 = vunpack.c.h.b16 %v834
  %v2537 = vunpack.c.l.b16 %v835
  %v2538 = vunpack.c.h.b16 %v835
  %v2539 = vunpack.c.l.b16 %v836
  %v2540 = vunpack.c.h.b16 %v836
  %v2541 = vunpack.c.l.b16 %v837
  %v2542 = vunpack.c.h.b16 %v837
  %v2543 = vunpack.c.l.b16 %v838
  %v2544 = vunpack.c.h.b16 %v838
  %v2545 = vunpack.c.l.b16 %v839
  %v2546 = vunpack.c.h.b16 %v839
  %v2547 = vunpack.c.l.b16 %v840
  %v2548 = vunpack.c.h.b16 %v840
  %v2549 = vunpack.c.l.b16 %v841
  %v2550 = vunpack.c.h.b16 %v841
  %v2551 = vunpack.c.l.b16 %v842
  %v2552 = vunpack.c.h.b16 %v842
  %v2553 = vunpack.c.l.b16 %v843
  %v2554 = vunpack.c.h.b16 %v843
  %v2555 = vunpack.c.l.b16 %v844
  %v2556 = vunpack.c.h.b16 %v844
  %v2557 = vunpack.c.l.b16 %v845
  %v2558 = vunpack.c.h.b16 %v845
  %v2559 = vunpack.c.l.b16 %v846
  %v2560 = vunpack.c.h.b16 %v846
  %v2561 = vunpack.c.l.b16 %v847
  %v2562 = vunpack.c.h.b16 %v847
  %v2563 = vunpack.c.l.b16 %v848
  %v2564 = vunpack.c.h.b16 %v848
  %v2565 = vunpack.c.l.b16 %v849
  %v2566 = vunpack.c.h.b16 %v849
  %v2567 = vunpack.c.l.b16 %v850
  %v2568 = vunpack.c.h.b16 %v850
  %v2569 = vunpack.c.l.b16 %v851
  %v2570 = vunpack.c.h.b16 %v851
  %v2571 = vunpack.c.l.b16 %v852
  %v2572 = vunpack.c.h.b16 %v852
  %v2573 = vunpack.c.l.b16 %v853
  %v2574 = vunpack.c.h.b16 %v853
  %v2575 = vunpack.c.l.b16 %v854
  %v2576 = vunpack.c.h.b16 %v854
  %v2577 = vunpack.c.l.b16 %v855
  %v2578 = vunpack.c.h.b16 %v855
  %v2579 = vunpack.c.l.b16 %v856
  %v2580 = vunpack.c.h.b16 %v856
  %v2581 = vunpack.c.l.b16 %v857
  %v2582 = vunpack.c.h.b16 %v857
  %v2583 = vunpack.c.l.b16 %v858
  %v2584 = vunpack.c.h.b16 %v858
  %v2585 = vunpack.c.l.b16 %v859
  %v2586 = vunpack.c.h.b16 %v859
  %v2587 = vunpack.c.l.b16 %v860
  %v2588 = vunpack.c.h.b16 %v860
  %v2589 = vunpack.c.l.b16 %v861
  %v2590 = vunpack.c.h.b16 %v861
  %v2591 = vunpack.c.l.b16 %v862
  %v2592 = vunpack.c.h.b16 %v862
  %v2593 = vunpack.c.l.b16 %v863
  %v2594 = vunpack.c.h.b16 %v863
  %v2595 = vunpack.c.l.b16 %v864
  %v2596 = vunpack.c.h.b16 %v864
  %v2597 = vunpack.c.l.b16 %v865
  %v2598 = vunpack.c.h.b16 %v865
  %v2599 = vunpack.c.l.b16 %v866
  %v2600 = vunpack.c.h.b16 %v866
  %v2601 = vunpack.c.l.b16 %v867
  %v2602 = vunpack.c.h.b16 %v867
  %v2603 = vunpack.c.l.b16 %v868
  %v2604 = vunpack.c.h.b16 %v868
  %v2605 = vunpack.c.l.b16 %v869
  %v2606 = vunpack.c.h.b16 %v869
  %v2607 = vunpack.c.l.b16 %v870
  %v2608 = vunpack.c.h.b16 %v870
  %v2609 = vunpack.c.l.b16 %v871
  %v2610 = vunpack.c.h.b16 %v871
  %v2611 = vunpack.c.l.b16 %v872
  %v2612 = vunpack.c.h.b16 %v872
  %v2613 = vunpack.c.l.b16 %v873
  %v2614 = vunpack.c.h.b16 %v873
  %v2615 = vunpack.c.l.b16 %v874
  %v2616 = vunpack.c.h.b16 %v874
  %v2617 = vunpack.c.l.b16 %v875
  %v2618 = vunpack.c.h.b16 %v875
  %v2619 = vunpack.c.l.b16 %v876
  %v2620 = vunpack.c.h.b16 %v876
  %v2621 = vunpack.c.l.b16 %v877
  %v2622 = vunpack.c.h.b16 %v877
  %v2623 = vunpack.c.l.b16 %v878
  %v2624 = vunpack.c.h.b16 %v878
  %v2625 = vunpack.c.l.b16 %v879
  %v2626 = vunpack.c.h.b16 %v879
  %v2627 = vunpack.c.l.b16 %v880
  %v2628 = vunpack.c.h.b16 %v880
  %v2629 = vunpack.c.l.b16 %v881
  %v2630 = vunpack.c.h.b16 %v881
  %v2631 = vunpack.c.l.b16 %v882
  %v2632 = vunpack.c.h.b16 %v882
  %v2633 = vunpack.c.l.b16 %v883
  %v2634 = vunpack.c.h.b16 %v883
  %v2635 = vunpack.c.l.b16 %v884
  %v2636 = vunpack.c.h.b16 %v884
  %v2637 = vunpack.c.l.b16 %v885
  %v2638 = vunpack.c.h.b16 %v885
  %v2639 = vunpack.c.l.b16 %v886
  %v2640 = vunpack.c.h.b16 %v886
  %v2641 = vunpack.c.l.b16 %v887
  %v2642 = vunpack.c.h.b16 %v887
  %v2643 = vunpack.c.l.b16 %v888
  %v2644 = vunpack.c.h.b16 %v888
  %v2645 = vunpack.c.l.b16 %v889
  %v2646 = vunpack.c.h.b16 %v889
  %v2647 = vunpack.c.l.b16 %v890
  %v2648 = vunpack.c.h.b16 %v890
  %v2649 = vunpack.c.l.b16 %v891
  %v2650 = vunpack.c.h.b16 %v891
  %v2651 = vunpack.c.l.b16 %v892
  %v2652 = vunpack.c.h.b16 %v892
  %v2653 = vunpack.c.l.b16 %v893
  %v2654 = vunpack.c.h.b16 %v893
  %v2655 = vunpack.c.l.b16 %v894
  %v2656 = vunpack.c.h.b16 %v894
  %v2657 = vunpack.c.l.b16 %v895
  %v2658 = vunpack.c.h.b16 %v895
  %v2659 = vunpack.c.l.b16 %v896
  %v2660 = vunpack.c.h.b16 %v896
  %v2661 = vunpack.c.l.b16 %v897
  %v2662 = vunpack.c.h.b16 %v897
  %v2663 = vunpack.c.l.b16 %v898
  %v2664 = vunpack.c.h.b16 %v898
  %v2665 = vunpack.c.l.b16 %v899
  %v2666 = vunpack.c.h.b16 %v899
  %v2667 = vunpack.c.l.b16 %v900
  %v2668 = vunpack.c.h.b16 %v900
  %v2669 = vunpack.c.l.b16 %v901
  %v2670 = vunpack.c.h.b16 %v901
  %v2671 = vunpack.c.l.b16 %v902
  %v2672 = vunpack.c.h.b16 %v902
  %v2673 = vunpack.c.l.b16 %v903
  %v2674 = vunpack.c.h.b16 %v903
  %v2675 = vunpack.c.l.b16 %v904
  %v2676 = vunpack.c.h.b16 %v904
  %v2677 = vunpack.c.l.b16 %v905
  %v2678 = vunpack.c.h.b16 %v905
  %v2679 = vunpack.c.l.b16 %v906
  %v2680 = vunpack.c.h.b16 %v906
  %v2681 = vunpack.c.l.b16 %v907
  %v2682 = vunpack.c.h.b16 %v907
  %v2683 = vunpack.c.l.b16 %v908
  %v2684 = vunpack.c.h.b16 %v908
  %v2685 = vunpack.c.l.b16 %v909
  %v2686 = vunpack.c.h.b16 %v909
  %v2687 = vunpack.c.l.b16 %v910
  %v2688 = vunpack.c.h.b16 %v910
  %v2689 = vunpack.c.l.b16 %v911
  %v2690 = vunpack.c.h.b16 %v911
  %v2691 = vunpack.c.l.b16 %v912
  %v2692 = vunpack.c.h.b16 %v912
  %v2693 = vunpack.c.l.b16 %v913
  %v2694 = vunpack.c.h.b16 %v913
  %v2695 = vunpack.c.l.b16 %v914
  %v2696 = vunpack.c.h.b16 %v914
  %v2697 = vunpack.c.l.b16 %v915
  %v2698 = vunpack.c.h.b16 %v915
  %v2699 = vunpack.c.l.b16 %v916
  %v2700 = vunpack.c.h.b16 %v916
  %v2701 = vunpack.c.l.b16 %v917
  %v2702 = vunpack.c.h.b16 %v917
  %v2703 = vunpack.c.l.b16 %v918
  %v2704 = vunpack.c.h.b16 %v918
  %v2705 = vunpack.c.l.b16 %v919
  %v2706 = vunpack.c.h.b16 %v919
  %v2707 = vunpack.c.l.b16 %v920
  %v2708 = vunpack.c.h.b16 %v920
  %v2709 = vunpack.c.l.b16 %v921
  %v2710 = vunpack.c.h.b16 %v921
  %v2711 = vunpack.c.l.b16 %v922
  %v2712 = vunpack.c.h.b16 %v922
  %v2713 = vunpack.c.l.b16 %v923
  %v2714 = vunpack.c.h.b16 %v923
  %v2715 = vunpack.c.l.b16 %v924
  %v2716 = vunpack.c.h.b16 %v924
  %v2717 = vunpack.c.l.b16 %v925
  %v2718 = vunpack.c.h.b16 %v925
  %v2719 = vunpack.c.l.b16 %v926
  %v2720 = vunpack.c.h.b16 %v926
  %v2721 = vunpack.c.l.b16 %v927
  %v2722 = vunpack.c.h.b16 %v927
  %v2723 = vunpack.c.l.b16 %v928
  %v2724 = vunpack.c.h.b16 %v928
  %v2725 = vunpack.c.l.b16 %v929
  %v2726 = vunpack.c.h.b16 %v929
  %v2727 = vunpack.c.l.b16 %v930
  %v2728 = vunpack.c.h.b16 %v930
  %v2729 = vunpack.c.l.b16 %v931
  %v2730 = vunpack.c.h.b16 %v931
  %v2731 = vunpack.c.l.b16 %v932
  %v2732 = vunpack.c.h.b16 %v932
  %v2733 = vunpack.c.l.b16 %v933
  %v2734 = vunpack.c.h.b16 %v933
  %v2735 = vunpack.c.l.b16 %v934
  %v2736 = vunpack.c.h.b16 %v934
  %v2737 = vunpack.c.l.b16 %v935
  %v2738 = vunpack.c.h.b16 %v935
  %v2739 = vunpack.c.l.b16 %v936
  %v2740 = vunpack.c.h.b16 %v936
  %v2741 = vunpack.c.l.b16 %v937
  %v2742 = vunpack.c.h.b16 %v937
  %v2743 = vunpack.c.l.b16 %v938
  %v2744 = vunpack.c.h.b16 %v938
  %v2745 = vunpack.c.l.b16 %v939
  %v2746 = vunpack.c.h.b16 %v939
  %v2747 = vunpack.c.l.b16 %v940
  %v2748 = vunpack.c.h.b16 %v940
  %v2749 = vunpack.c.l.b16 %v941
  %v2750 = vunpack.c.h.b16 %v941
  %v2751 = vunpack.c.l.b16 %v942
  %v2752 = vunpack.c.h.b16 %v942
  %v2753 = vunpack.c.l.b16 %v943
  %v2754 = vunpack.c.h.b16 %v943
  %v2755 = vunpack.c.l.b16 %v944
  %v2756 = vunpack.c.h.b16 %v944
  %v2757 = vunpack.c.l.b16 %v945
  %v2758 = vunpack.c.h.b16 %v945
  %v2759 = vunpack.c.l.b16 %v946
  %v2760 = vunpack.c.h.b16 %v946
  %v2761 = vunpack.c.l.b16 %v947
  %v2762 = vunpack.c.h.b16 %v947
  %v2763 = vunpack.c.l.b16 %v948
  %v2764 = vunpack.c.h.b16 %v948
  %v2765 = vunpack.c.l.b16 %v949
  %v2766 = vunpack.c.h.b16 %v949
  %v2767 = vunpack.c.l.b16 %v950
  %v2768 = vunpack.c.h.b16 %v950
  %v2769 = vunpack.c.l.b16 %v951
  %v2770 = vunpack.c.h.b16 %v951
  %v2771 = vunpack.c.l.b16 %v952
  %v2772 = vunpack.c.h.b16 %v952
  %v2773 = vunpack.c.l.b16 %v953
  %v2774 = vunpack.c.h.b16 %v953
  %v2775 = vunpack.c.l.b16 %v954
  %v2776 = vunpack.c.h.b16 %v954
  %v2777 = vunpack.c.l.b16 %v955
  %v2778 = vunpack.c.h.b16 %v955
  %v2779 = vunpack.c.l.b16 %v956
  %v2780 = vunpack.c.h.b16 %v956
  %v2781 = vunpack.c.l.b16 %v957
  %v2782 = vunpack.c.h.b16 %v957
  %v2783 = vunpack.c.l.b16 %v958
  %v2784 = vunpack.c.h.b16 %v958
  %v2785 = vunpack.c.l.b16 %v959
  %v2786 = vunpack.c.h.b16 %v959
  %v2787 = vunpack.c.l.b16 %v960
  %v2788 = vunpack.c.h.b16 %v960
  %v2789 = vunpack.c.l.b16 %v961
  %v2790 = vunpack.c.h.b16 %v961
  %v2791 = vunpack.c.l.b16 %v962
  %v2792 = vunpack.c.h.b16 %v962
  %v2793 = vunpack.c.l.b16 %v963
  %v2794 = vunpack.c.h.b16 %v963
  %v2795 = vunpack.c.l.b16 %v964
  %v2796 = vunpack.c.h.b16 %v964
  %v2797 = vunpack.c.l.b16 %v965
  %v2798 = vunpack.c.h.b16 %v965
  %v2799 = vunpack.c.l.b16 %v966
  %v2800 = vunpack.c.h.b16 %v966
  %v2801 = vunpack.c.l.b16 %v967
  %v2802 = vunpack.c.h.b16 %v967
  %v2803 = vunpack.c.l.b16 %v968
  %v2804 = vunpack.c.h.b16 %v968
  %v2805 = vunpack.c.l.b16 %v969
  %v2806 = vunpack.c.h.b16 %v969
  %v2807 = vunpack.c.l.b16 %v970
  %v2808 = vunpack.c.h.b16 %v970
  %v2809 = vunpack.c.l.b16 %v971
  %v2810 = vunpack.c.h.b16 %v971
  %v2811 = vunpack.c.l.b16 %v972
  %v2812 = vunpack.c.h.b16 %v972
  %v2813 = vunpack.c.l.b16 %v973
  %v2814 = vunpack.c.h.b16 %v973
  %v2815 = vunpack.c.l.b16 %v974
  %v2816 = vunpack.c.h.b16 %v974
  %v2817 = vunpack.c.l.b16 %v975
  %v2818 = vunpack.c.h.b16 %v975
  %v2819 = vunpack.c.l.b16 %v976
  %v2820 = vunpack.c.h.b16 %v976
  %v2821 = vunpack.c.l.b16 %v977
  %v2822 = vunpack.c.h.b16 %v977
  %v2823 = vunpack.c.l.b16 %v978
  %v2824 = vunpack.c.h.b16 %v978
  %v2825 = vunpack.c.l.b16 %v979
  %v2826 = vunpack.c.h.b16 %v979
  %v2827 = vunpack.c.l.b16 %v980
  %v2828 = vunpack.c.h.b16 %v980
  %v2829 = vunpack.c.l.b16 %v981
  %v2830 = vunpack.c.h.b16 %v981
  %v2831 = vunpack.c.l.b16 %v982
  %v2832 = vunpack.c.h.b16 %v982
  %v2833 = vunpack.c.l.b16 %v983
  %v2834 = vunpack.c.h.b16 %v983
  %v2835 = vunpack.c.l.b16 %v984
  %v2836 = vunpack.c.h.b16 %v984
  %v2837 = vunpack.c.l.b16 %v985
  %v2838 = vunpack.c.h.b16 %v985
  %v2839 = vunpack.c.l.b16 %v986
  %v2840 = vunpack.c.h.b16 %v986
  %v2841 = vunpack.c.l.b16 %v987
  %v2842 = vunpack.c.h.b16 %v987
  %v2843 = vunpack.c.l.b16 %v988
  %v2844 = vunpack.c.h.b16 %v988
  %v2845 = vunpack.c.l.b16 %v989
  %v2846 = vunpack.c.h.b16 %v989
  %v2847 = vunpack.c.l.b16 %v990
  %v2848 = vunpack.c.h.b16 %v990
  %v2849 = vunpack.c.l.b16 %v991
  %v2850 = vunpack.c.h.b16 %v991
  %v2851 = vunpack.c.l.b16 %v992
  %v2852 = vunpack.c.h.b16 %v992
  %v2853 = vunpack.c.l.b16 %v993
  %v2854 = vunpack.c.h.b16 %v993
  %v2855 = vunpack.c.l.b16 %v994
  %v2856 = vunpack.c.h.b16 %v994
  %v2857 = vunpack.c.l.b16 %v995
  %v2858 = vunpack.c.h.b16 %v995
  %v2859 = vunpack.c.l.b16 %v996
  %v2860 = vunpack.c.h.b16 %v996
  %v2861 = vunpack.c.l.b16 %v997
  %v2862 = vunpack.c.h.b16 %v997
  %v2863 = vunpack.c.l.b16 %v998
  %v2864 = vunpack.c.h.b16 %v998
  %v2865 = vunpack.c.l.b16 %v999
  %v2866 = vunpack.c.h.b16 %v999
  %v2867 = vunpack.c.l.b16 %v1000
  %v2868 = vunpack.c.h.b16 %v1000
  %v2869 = vunpack.c.l.b16 %v1001
  %v2870 = vunpack.c.h.b16 %v1001
  %v2871 = vunpack.c.l.b16 %v1002
  %v2872 = vunpack.c.h.b16 %v1002
  %v2873 = vunpack.c.l.b16 %v1003
  %v2874 = vunpack.c.h.b16 %v1003
  %v2875 = vunpack.c.l.b16 %v1004
  %v2876 = vunpack.c.h.b16 %v1004
  %v2877 = vunpack.c.l.b16 %v1005
  %v2878 = vunpack.c.h.b16 %v1005
  %v2879 = vunpack.c.l.b16 %v1006
  %v2880 = vunpack.c.h.b16 %v1006
  %v2881 = vunpack.c.l.b16 %v1007
  %v2882 = vunpack.c.h.b16 %v1007
  %v2883 = vunpack.c.l.b16 %v1008
  %v2884 = vunpack.c.h.b16 %v1008
  %v2885 = vunpack.c.l.b16 %v1009
  %v2886 = vunpack.c.h.b16 %v1009
  %v2887 = vunpack.c.l.b16 %v1010
  %v2888 = vunpack.c.h.b16 %v1010
  %v2889 = vunpack.c.l.b16 %v1011
  %v2890 = vunpack.c.h.b16 %v1011
  %v2891 = vunpack.c.l.b16 %v1012
  %v2892 = vunpack.c.h.b16 %v1012
  %v2893 = vunpack.c.l.b16 %v1013
  %v2894 = vunpack.c.h.b16 %v1013
  %v2895 = vunpack.c.l.b16 %v1014
  %v2896 = vunpack.c.h.b16 %v1014
  %v2897 = vunpack.c.l.b16 %v1015
  %v2898 = vunpack.c.h.b16 %v1015
  %v2899 = vunpack.c.l.b16 %v1016
  %v2900 = vunpack.c.h.b16 %v1016
  %v2901 = vunpack.c.l.b16 %v1017
  %v2902 = vunpack.c.h.b16 %v1017
  %v2903 = vunpack.c.l.b16 %v1018
  %v2904 = vunpack.c.h.b16 %v1018
  %v2905 = vunpack.c.l.b16 %v1019
  %v2906 = vunpack.c.h.b16 %v1019
  %v2907 = vunpack.c.l.b16 %v1020
  %v2908 = vunpack.c.h.b16 %v1020
  %v2909 = vunpack.c.l.b16 %v1021
  %v2910 = vunpack.c.h.b16 %v1021
  %v2911 = vunpack.c.l.b16 %v1022
  %v2912 = vunpack.c.h.b16 %v1022
  %v2913 = vunpack.c.l.b16 %v1023
  %v2914 = vunpack.c.h.b16 %v1023
  %v2915 = vunpack.c.l.b16 %v1024
  %v2916 = vunpack.c.h.b16 %v1024
  %v2917 = vunpack.c.l.b16 %v1025
  %v2918 = vunpack.c.h.b16 %v1025
  %v2919 = vunpack.c.l.b16 %v1026
  %v2920 = vunpack.c.h.b16 %v1026
  %v2921 = vunpack.c.l.b16 %v1027
  %v2922 = vunpack.c.h.b16 %v1027
  %v2923 = vunpack.c.l.b16 %v1028
  %v2924 = vunpack.c.h.b16 %v1028
  %v2925 = vunpack.c.l.b16 %v1029
  %v2926 = vunpack.c.h.b16 %v1029
  %v2927 = vunpack.c.l.b16 %v1030
  %v2928 = vunpack.c.h.b16 %v1030
  %v2929 = vunpack.c.l.b16 %v1031
  %v2930 = vunpack.c.h.b16 %v1031
  %v2931 = vunpack.c.l.b16 %v1032
  %v2932 = vunpack.c.h.b16 %v1032
  %v2933 = vunpack.c.l.b16 %v1033
  %v2934 = vunpack.c.h.b16 %v1033
  %v2935 = vunpack.c.l.b16 %v1034
  %v2936 = vunpack.c.h.b16 %v1034
  %v2937 = vunpack.c.l.b16 %v1035
  %v2938 = vunpack.c.h.b16 %v1035
  %v2939 = vunpack.c.l.b16 %v1036
  %v2940 = vunpack.c.h.b16 %v1036
  %v2941 = vunpack.c.l.b16 %v1037
  %v2942 = vunpack.c.h.b16 %v1037
  %v2943 = vunpack.c.l.b16 %v1038
  %v2944 = vunpack.c.h.b16 %v1038
  %v2945 = vunpack.c.l.b16 %v1039
  %v2946 = vunpack.c.h.b16 %v1039
  %v2947 = vunpack.c.l.b16 %v1040
  %v2948 = vunpack.c.h.b16 %v1040
  %v2949 = vunpack.c.l.b16 %v1041
  %v2950 = vunpack.c.h.b16 %v1041
  %v2951 = vunpack.c.l.b16 %v1042
  %v2952 = vunpack.c.h.b16 %v1042
  %v2953 = vunpack.c.l.b16 %v1043
  %v2954 = vunpack.c.h.b16 %v1043
  %v2955 = vunpack.c.l.b16 %v1044
  %v2956 = vunpack.c.h.b16 %v1044
  %v2957 = vunpack.c.l.b16 %v1045
  %v2958 = vunpack.c.h.b16 %v1045
  %v2959 = vunpack.c.l.b16 %v1046
  %v2960 = vunpack.c.h.b16 %v1046
  %v2961 = vunpack.c.l.b16 %v1047
  %v2962 = vunpack.c.h.b16 %v1047
  %v2963 = vunpack.c.l.b16 %v1048
  %v2964 = vunpack.c.h.b16 %v1048
  %v2965 = vunpack.c.l.b16 %v1049
  %v2966 = vunpack.c.h.b16 %v1049
  %v2967 = vunpack.c.l.b16 %v1050
  %v2968 = vunpack.c.h.b16 %v1050
  %v2969 = vunpack.c.l.b16 %v1051
  %v2970 = vunpack.c.h.b16 %v1051
  %v2971 = vunpack.c.l.b16 %v1052
  %v2972 = vunpack.c.h.b16 %v1052
  %v2973 = vunpack.c.l.b16 %v1053
  %v2974 = vunpack.c.h.b16 %v1053
  %v2975 = vunpack.c.l.b16 %v1054
  %v2976 = vunpack.c.h.b16 %v1054
  %v2977 = vunpack.c.l.b16 %v1055
  %v2978 = vunpack.c.h.b16 %v1055
  %v2979 = vunpack.c.l.b16 %v1056
  %v2980 = vunpack.c.h.b16 %v1056
  %v2981 = vunpack.c.l.b16 %v1057
  %v2982 = vunpack.c.h.b16 %v1057
  %v2983 = vunpack.c.l.b16 %v1058
  %v2984 = vunpack.c.h.b16 %v1058
  %v2985 = vunpack.c.l.b16 %v1059
  %v2986 = vunpack.c.h.b16 %v1059
  %v2987 = vunpack.c.l.b16 %v1060
  %v2988 = vunpack.c.h.b16 %v1060
  %v2989 = vunpack.c.l.b16 %v1061
  %v2990 = vunpack.c.h.b16 %v1061
  %v2991 = vunpack.c.l.b16 %v1062
  %v2992 = vunpack.c.h.b16 %v1062
  %v2993 = vunpack.c.l.b16 %v1063
  %v2994 = vunpack.c.h.b16 %v1063
  %v2995 = vunpack.c.l.b16 %v1064
  %v2996 = vunpack.c.h.b16 %v1064
  %v2997 = vunpack.c.l.b16 %v1065
  %v2998 = vunpack.c.h.b16 %v1065
  %v2999 = vunpack.c.l.b16 %v1066
  %v3000 = vunpack.c.h.b16 %v1066
  %v3001 = vunpack.c.l.b16 %v1067
  %v3002 = vunpack.c.h.b16 %v1067
  %v3003 = vunpack.c.l.b16 %v1068
  %v3004 = vunpack.c.h.b16 %v1068
  %v3005 = vunpack.c.l.b16 %v1069
  %v3006 = vunpack.c.h.b16 %v1069
  %v3007 = vunpack.c.l.b16 %v1070
  %v3008 = vunpack.c.h.b16 %v1070
  %v3009 = vunpack.c.l.b16 %v1071
  %v3010 = vunpack.c.h.b16 %v1071
  %v3011 = vunpack.c.l.b16 %v1072
  %v3012 = vunpack.c.h.b16 %v1072
  %v3013 = vunpack.c.l.b16 %v1073
  %v3014 = vunpack.c.h.b16 %v1073
  %v3015 = vunpack.c.l.b16 %v1074
  %v3016 = vunpack.c.h.b16 %v1074
  %v3017 = vunpack.c.l.b16 %v1075
  %v3018 = vunpack.c.h.b16 %v1075
  %v3019 = vunpack.c.l.b16 %v1076
  %v3020 = vunpack.c.h.b16 %v1076
  %v3021 = vunpack.c.l.b16 %v1077
  %v3022 = vunpack.c.h.b16 %v1077
  %v3023 = vunpack.c.l.b16 %v1078
  %v3024 = vunpack.c.h.b16 %v1078
  %v3025 = vunpack.c.l.b16 %v1079
  %v3026 = vunpack.c.h.b16 %v1079
  %v3027 = vunpack.c.l.b16 %v1080
  %v3028 = vunpack.c.h.b16 %v1080
  %v3029 = vunpack.c.l.b16 %v1081
  %v3030 = vunpack.c.h.b16 %v1081
  %v3031 = vunpack.c.l.b16 %v1082
  %v3032 = vunpack.c.h.b16 %v1082
  %v3033 = vunpack.c.l.b16 %v1083
  %v3034 = vunpack.c.h.b16 %v1083
  %v3035 = vunpack.c.l.b16 %v1084
  %v3036 = vunpack.c.h.b16 %v1084
  %v3037 = vunpack.c.l.b16 %v1085
  %v3038 = vunpack.c.h.b16 %v1085
  %v3039 = vunpack.c.l.b16 %v1086
  %v3040 = vunpack.c.h.b16 %v1086
  %v3041 = vunpack.c.l.b16 %v1087
  %v3042 = vunpack.c.h.b16 %v1087
  %v3043 = vunpack.c.l.b16 %v1088
  %v3044 = vunpack.c.h.b16 %v1088
  %v3045 = vunpack.c.l.b16 %v1089
  %v3046 = vunpack.c.h.b16 %v1089
  %v3047 = vunpack.c.l.b16 %v1090
  %v3048 = vunpack.c.h.b16 %v1090
  %v3049 = vunpack.c.l.b16 %v1091
  %v3050 = vunpack.c.h.b16 %v1091
  %v3051 = vunpack.c.l.b16 %v1092
  %v3052 = vunpack.c.h.b16 %v1092
  %v3053 = vunpack.c.l.b16 %v1093
  %v3054 = vunpack.c.h.b16 %v1093
  %v3055 = vunpack.c.l.b16 %v1094
  %v3056 = vunpack.c.h.b16 %v1094
  %v3057 = vunpack.c.l.b16 %v1095
  %v3058 = vunpack.c.h.b16 %v1095
  %v3059 = vunpack.c.l.b16 %v1096
  %v3060 = vunpack.c.h.b16 %v1096
  %v3061 = vunpack.c.l.b16 %v1097
  %v3062 = vunpack.c.h.b16 %v1097
  %v3063 = vunpack.c.l.b16 %v1098
  %v3064 = vunpack.c.h.b16 %v1098
  %v3065 = vunpack.c.l.b16 %v1099
  %v3066 = vunpack.c.h.b16 %v1099
  %v3067 = vunpack.c.l.b16 %v1100
  %v3068 = vunpack.c.h.b16 %v1100
  %v3069 = vunpack.c.l.b16 %v1101
  %v3070 = vunpack.c.h.b16 %v1101
  %v3071 = vunpack.c.l.b16 %v1102
  %v3072 = vunpack.c.h.b16 %v1102
  %v3073 = vunpack.c.l.b16 %v1103
  %v3074 = vunpack.c.h.b16 %v1103
  %v3075 = vunpack.c.l.b16 %v1104
  %v3076 = vunpack.c.h.b16 %v1104
  %v3077 = vunpack.c.l.b16 %v1105
  %v3078 = vunpack.c.h.b16 %v1105
  %v3079 = vunpack.c.l.b16 %v1106
  %v3080 = vunpack.c.h.b16 %v1106
  %v3081 = vunpack.c.l.b16 %v1107
  %v3082 = vunpack.c.h.b16 %v1107
  %v3083 = vunpack.c.l.b16 %v1108
  %v3084 = vunpack.c.h.b16 %v1108
  %v3085 = vunpack.c.l.b16 %v1109
  %v3086 = vunpack.c.h.b16 %v1109
  %v3087 = vunpack.c.l.b16 %v1110
  %v3088 = vunpack.c.h.b16 %v1110
  %v3089 = vunpack.c.l.b16 %v1111
  %v3090 = vunpack.c.h.b16 %v1111
  %v3091 = vunpack.c.l.b16 %v1112
  %v3092 = vunpack.c.h.b16 %v1112
  %v3093 = vunpack.c.l.b16 %v1113
  %v3094 = vunpack.c.h.b16 %v1113
  %v3095 = vunpack.c.l.b16 %v1114
  %v3096 = vunpack.c.h.b16 %v1114
  %v3097 = vunpack.c.l.b16 %v1115
  %v3098 = vunpack.c.h.b16 %v1115
  %v3099 = vunpack.c.l.b16 %v1116
  %v3100 = vunpack.c.h.b16 %v1116
  %v3101 = vunpack.c.l.b16 %v1117
  %v3102 = vunpack.c.h.b16 %v1117
  %v3103 = vunpack.c.l.b16 %v1118
  %v3104 = vunpack.c.h.b16 %v1118
  %v3105 = vunpack.c.l.b16 %v1119
  %v3106 = vunpack.c.h.b16 %v1119
  %v3107 = vunpack.c.l.b16 %v1120
  %v3108 = vunpack.c.h.b16 %v1120
  %v3109 = vunpack.c.l.b16 %v1121
  %v3110 = vunpack.c.h.b16 %v1121
  %v3111 = vunpack.c.l.b16 %v1122
  %v3112 = vunpack.c.h.b16 %v1122
  %v3113 = vunpack.c.l.b16 %v1123
  %v3114 = vunpack.c.h.b16 %v1123
  %v3115 = vunpack.c.l.b16 %v1124
  %v3116 = vunpack.c.h.b16 %v1124
  %v3117 = vunpack.c.l.b16 %v1125
  %v3118 = vunpack.c.h.b16 %v1125
  %v3119 = vunpack.c.l.b16 %v1126
  %v3120 = vunpack.c.h.b16 %v1126
  %v3121 = vunpack.c.l.b16 %v1127
  %v3122 = vunpack.c.h.b16 %v1127
  %v3123 = vunpack.c.l.b16 %v1128
  %v3124 = vunpack.c.h.b16 %v1128
  %v3125 = vunpack.c.l.b16 %v1129
  %v3126 = vunpack.c.h.b16 %v1129
  %v3127 = vunpack.c.l.b16 %v1130
  %v3128 = vunpack.c.h.b16 %v1130
  %v3129 = vunpack.c.l.b16 %v1131
  %v3130 = vunpack.c.h.b16 %v1131
  %v3131 = vunpack.c.l.b16 %v1132
  %v3132 = vunpack.c.h.b16 %v1132
  %v3133 = vunpack.c.l.b16 %v1133
  %v3134 = vunpack.c.h.b16 %v1133
  %v3135 = vunpack.c.l.b16 %v1134
  %v3136 = vunpack.c.h.b16 %v1134
  %v3137 = vunpack.c.l.b16 %v1135
  %v3138 = vunpack.c.h.b16 %v1135
  %v3139 = vunpack.c.l.b16 %v1136
  %v3140 = vunpack.c.h.b16 %v1136
  %v3141 = vunpack.c.l.b16 %v1137
  %v3142 = vunpack.c.h.b16 %v1137
  %v3143 = vunpack.c.l.b16 %v1138
  %v3144 = vunpack.c.h.b16 %v1138
  %v3145 = vunpack.c.l.b16 %v1139
  %v3146 = vunpack.c.h.b16 %v1139
  %v3147 = vunpack.c.l.b16 %v1140
  %v3148 = vunpack.c.h.b16 %v1140
  %v3149 = vunpack.c.l.b16 %v1141
  %v3150 = vunpack.c.h.b16 %v1141
  %v3151 = vunpack.c.l.b16 %v1142
  %v3152 = vunpack.c.h.b16 %v1142
  %v3153 = vunpack.c.l.b16 %v1143
  %v3154 = vunpack.c.h.b16 %v1143
  %v3155 = vunpack.c.l.b16 %v1144
  %v3156 = vunpack.c.h.b16 %v1144
  %v3157 = vunpack.c.l.b16 %v1145
  %v3158 = vunpack.c.h.b16 %v1145
  %v3159 = vunpack.c.l.b16 %v1146
  %v3160 = vunpack.c.h.b16 %v1146
  %v3161 = vunpack.c.l.b16 %v1147
  %v3162 = vunpack.c.h.b16 %v1147
  %v3163 = vunpack.c.l.b16 %v1148
  %v3164 = vunpack.c.h.b16 %v1148
  %v3165 = vunpack.c.l.b16 %v1149
  %v3166 = vunpack.c.h.b16 %v1149
  %v3167 = vunpack.c.l.b16 %v1150
  %v3168 = vunpack.c.h.b16 %v1150
  %v3169 = vunpack.c.l.b16 %v1151
  %v3170 = vunpack.c.h.b16 %v1151
  %v3171 = vunpack.c.l.b16 %v1152
  %v3172 = vunpack.c.h.b16 %v1152
  %v3173 = vunpack.c.l.b16 %v1153
  %v3174 = vunpack.c.h.b16 %v1153
  %v3175 = vunpack.c.l.b16 %v1154
  %v3176 = vunpack.c.h.b16 %v1154
  %v3177 = vunpack.c.l.b16 %v1155
  %v3178 = vunpack.c.h.b16 %v1155
  %v3179 = vunpack.c.l.b16 %v1156
  %v3180 = vunpack.c.h.b16 %v1156
  %v3181 = vunpack.c.l.b16 %v1157
  %v3182 = vunpack.c.h.b16 %v1157
  %v3183 = vunpack.c.l.b16 %v1158
  %v3184 = vunpack.c.h.b16 %v1158
  %v3185 = vunpack.c.l.b16 %v1159
  %v3186 = vunpack.c.h.b16 %v1159
  %v3187 = vunpack.c.l.b16 %v1160
  %v3188 = vunpack.c.h.b16 %v1160
  %v3189 = vunpack.c.l.b16 %v1161
  %v3190 = vunpack.c.h.b16 %v1161
  %v3191 = vunpack.c.l.b16 %v1162
  %v3192 = vunpack.c.h.b16 %v1162
  %v3193 = vunpack.c.l.b16 %v1163
  %v3194 = vunpack.c.h.b16 %v1163
  %v3195 = vunpack.c.l.b16 %v1164
  %v3196 = vunpack.c.h.b16 %v1164
  %v3197 = vunpack.c.l.b16 %v1165
  %v3198 = vunpack.c.h.b16 %v1165
  %v3199 = vunpack.c.l.b16 %v1166
  %v3200 = vunpack.c.h.b16 %v1166
  %v3201 = vunpack.c.l.b16 %v1167
  %v3202 = vunpack.c.h.b16 %v1167
  %v3203 = vunpack.c.l.b16 %v1168
  %v3204 = vunpack.c.h.b16 %v1168
  %v3205 = vunpack.c.l.b16 %v1169
  %v3206 = vunpack.c.h.b16 %v1169
  %v3207 = vunpack.c.l.b16 %v1170
  %v3208 = vunpack.c.h.b16 %v1170
  %v3209 = vunpack.c.l.b16 %v1171
  %v3210 = vunpack.c.h.b16 %v1171
  %v3211 = vunpack.c.l.b16 %v1172
  %v3212 = vunpack.c.h.b16 %v1172
  %v3213 = vunpack.c.l.b16 %v1173
  %v3214 = vunpack.c.h.b16 %v1173
  %v3215 = vunpack.c.l.b16 %v1174
  %v3216 = vunpack.c.h.b16 %v1174
  %v3217 = vunpack.c.l.b16 %v1175
  %v3218 = vunpack.c.h.b16 %v1175
  %v3219 = vunpack.c.l.b16 %v1176
  %v3220 = vunpack.c.h.b16 %v1176
  %v3221 = vunpack.c.l.b16 %v1177
  %v3222 = vunpack.c.h.b16 %v1177
  %v3223 = vunpack.c.l.b16 %v1178
  %v3224 = vunpack.c.h.b16 %v1178
  %v3225 = vunpack.c.l.b16 %v1179
  %v3226 = vunpack.c.h.b16 %v1179
  %v3227 = vunpack.c.l.b16 %v1180
  %v3228 = vunpack.c.h.b16 %v1180
  %v3229 = vunpack.c.l.b16 %v1181
  %v3230 = vunpack.c.h.b16 %v1181
  %v3231 = vunpack.c.l.b16 %v1182
  %v3232 = vunpack.c.h.b16 %v1182
  %v3233 = vunpack.c.l.b16 %v1183
  %v3234 = vunpack.c.h.b16 %v1183
  %v3235 = vunpack.c.l.b16 %v1184
  %v3236 = vunpack.c.h.b16 %v1184
  %v3237 = vunpack.c.l.b16 %v1185
  %v3238 = vunpack.c.h.b16 %v1185
  %v3239 = vunpack.c.l.b16 %v1186
  %v3240 = vunpack.c.h.b16 %v1186
  %v3241 = vunpack.c.l.b16 %v1187
  %v3242 = vunpack.c.h.b16 %v1187
  %v3243 = vunpack.c.l.b16 %v1188
  %v3244 = vunpack.c.h.b16 %v1188
  %v3245 = vunpack.c.l.b16 %v1189
  %v3246 = vunpack.c.h.b16 %v1189
  %v3247 = vunpack.c.l.b16 %v1190
  %v3248 = vunpack.c.h.b16 %v1190
  %v3249 = vunpack.c.l.b16 %v1191
  %v3250 = vunpack.c.h.b16 %v1191
  %v3251 = vunpack.c.l.b16 %v1192
  %v3252 = vunpack.c.h.b16 %v1192
  %v3253 = vunpack.c.l.b16 %v1193
  %v3254 = vunpack.c.h.b16 %v1193
  %v3255 = vunpack.c.l.b16 %v1194
  %v3256 = vunpack.c.h.b16 %v1194
  %v3257 = vunpack.c.l.b16 %v1195
  %v3258 = vunpack.c.h.b16 %v1195
  %v3259 = vunpack.c.l.b16 %v1196
  %v3260 = vunpack.c.h.b16 %v1196
  %v3261 = vunpack.c.l.b16 %v1197
  %v3262 = vunpack.c.h.b16 %v1197
  %v3263 = vunpack.c.l.b16 %v1198
  %v3264 = vunpack.c.h.b16 %v1198
  %v3265 = vunpack.c.l.b16 %v1199
  %v3266 = vunpack.c.h.b16 %v1199
  %v3267 = vunpack.c.l.b16 %v1200
  %v3268 = vunpack.c.h.b16 %v1200
  %v3269 = vunpack.c.l.b16 %v1201
  %v3270 = vunpack.c.h.b16 %v1201
  %v3271 = vunpack.c.l.b16 %v1202
  %v3272 = vunpack.c.h.b16 %v1202
  %v3273 = vunpack.c.l.b16 %v1203
  %v3274 = vunpack.c.h.b16 %v1203
  %v3275 = vunpack.c.l.b16 %v1204
  %v3276 = vunpack.c.h.b16 %v1204
  %v3277 = vunpack.c.l.b16 %v1205
  %v3278 = vunpack.c.h.b16 %v1205
  %v3279 = vunpack.c.l.b16 %v1206
  %v3280 = vunpack.c.h.b16 %v1206
  %v3281 = vunpack.c.l.b16 %v1207
  %v3282 = vunpack.c.h.b16 %v1207
  %v3283 = vunpack.c.l.b16 %v1208
  %v3284 = vunpack.c.h.b16 %v1208
  %v3285 = vunpack.c.l.b16 %v1209
  %v3286 = vunpack.c.h.b16 %v1209
  %v3287 = vunpack.c.l.b16 %v1210
  %v3288 = vunpack.c.h.b16 %v1210
  %v3289 = vunpack.c.l.b16 %v1211
  %v3290 = vunpack.c.h.b16 %v1211
  %v3291 = vunpack.c.l.b16 %v1212
  %v3292 = vunpack.c.h.b16 %v1212
  %v3293 = vunpack.c.l.b16 %v1213
  %v3294 = vunpack.c.h.b16 %v1213
  %v3295 = vunpack.c.l.b16 %v1214
  %v3296 = vunpack.c.h.b16 %v1214
  %v3297 = vunpack.c.l.b16 %v1215
  %v3298 = vunpack.c.h.b16 %v1215
  %v3299 = vunpack.c.l.b16 %v1216
  %v3300 = vunpack.c.h.b16 %v1216
  %v3301 = vunpack.c.l.b16 %v1217
  %v3302 = vunpack.c.h.b16 %v1217
  %v3303 = vunpack.c.l.b16 %v1218
  %v3304 = vunpack.c.h.b16 %v1218
  %v3305 = vunpack.c.l.b16 %v1219
  %v3306 = vunpack.c.h.b16 %v1219
  %v3307 = vunpack.c.l.b16 %v1220
  %v3308 = vunpack.c.h.b16 %v1220
  %v3309 = vunpack.c.l.b16 %v1221
  %v3310 = vunpack.c.h.b16 %v1221
  %v3311 = vunpack.c.l.b16 %v1222
  %v3312 = vunpack.c.h.b16 %v1222
  %v3313 = vunpack.c.l.b16 %v1223
  %v3314 = vunpack.c.h.b16 %v1223
  %v3315 = vunpack.c.l.b16 %v1224
  %v3316 = vunpack.c.h.b16 %v1224
  %v3317 = vunpack.c.l.b16 %v1225
  %v3318 = vunpack.c.h.b16 %v1225
  %v3319 = vunpack.c.l.b16 %v1226
  %v3320 = vunpack.c.h.b16 %v1226
  %v3321 = vunpack.c.l.b16 %v1227
  %v3322 = vunpack.c.h.b16 %v1227
  %v3323 = vunpack.c.l.b16 %v1228
  %v3324 = vunpack.c.h.b16 %v1228
  %v3325 = vunpack.c.l.b16 %v1229
  %v3326 = vunpack.c.h.b16 %v1229
  %v3327 = vunpack.c.l.b16 %v1230
  %v3328 = vunpack.c.h.b16 %v1230
  %v3329 = vunpack.c.l.b16 %v1231
  %v3330 = vunpack.c.h.b16 %v1231
  %v3331 = vunpack.c.l.b16 %v1232
  %v3332 = vunpack.c.h.b16 %v1232
  %v3333 = vunpack.c.l.b16 %v1233
  %v3334 = vunpack.c.h.b16 %v1233
  %v3335 = vunpack.c.l.b16 %v1234
  %v3336 = vunpack.c.h.b16 %v1234
  %v3337 = vunpack.c.l.b16 %v1235
  %v3338 = vunpack.c.h.b16 %v1235
  %v3339 = vunpack.c.l.b16 %v1236
  %v3340 = vunpack.c.h.b16 %v1236
  %v3341 = vunpack.c.l.b16 %v1237
  %v3342 = vunpack.c.h.b16 %v1237
  %v3343 = vunpack.c.l.b16 %v1238
  %v3344 = vunpack.c.h.b16 %v1238
  %v3345 = vunpack.c.l.b16 %v1239
  %v3346 = vunpack.c.h.b16 %v1239
  %v3347 = vunpack.c.l.b16 %v1240
  %v3348 = vunpack.c.h.b16 %v1240
  %v3349 = vunpack.c.l.b16 %v1241
  %v3350 = vunpack.c.h.b16 %v1241
  %v3351 = vunpack.c.l.b16 %v1242
  %v3352 = vunpack.c.h.b16 %v1242
  %v3353 = vunpack.c.l.b16 %v1243
  %v3354 = vunpack.c.h.b16 %v1243
  %v3355 = vunpack.c.l.b16 %v1244
  %v3356 = vunpack.c.h.b16 %v1244
  %v3357 = vunpack.c.l.b16 %v1245
  %v3358 = vunpack.c.h.b16 %v1245
  %v3359 = vunpack.c.l.b16 %v1246
  %v3360 = vunpack.c.h.b16 %v1246
  %v3361 = vunpack.c.l.b16 %v1247
  %v3362 = vunpack.c.h.b16 %v1247
  %v3363 = vunpack.c.l.b16 %v1248
  %v3364 = vunpack.c.h.b16 %v1248
  %v3365 = vunpack.c.l.b16 %v1249
  %v3366 = vunpack.c.h.b16 %v1249
  %v3367 = vunpack.c.l.b16 %v1250
  %v3368 = vunpack.c.h.b16 %v1250
  %v3369 = vunpack.c.l.b16 %v1251
  %v3370 = vunpack.c.h.b16 %v1251
  %v3371 = vunpack.c.l.b16 %v1252
  %v3372 = vunpack.c.h.b16 %v1252
  %v3373 = vunpack.c.l.b16 %v1253
  %v3374 = vunpack.c.h.b16 %v1253
  %v3375 = vunpack.c.l.b16 %v1254
  %v3376 = vunpack.c.h.b16 %v1254
  %v3377 = vunpack.c.l.b16 %v1255
  %v3378 = vunpack.c.h.b16 %v1255
  %v3379 = vunpack.c.l.b16 %v1256
  %v3380 = vunpack.c.h.b16 %v1256
  %v3381 = vunpack.c.l.b16 %v1257
  %v3382 = vunpack.c.h.b16 %v1257
  %v3383 = vunpack.c.l.b16 %v1258
  %v3384 = vunpack.c.h.b16 %v1258
  %v3385 = vunpack.c.l.b16 %v1259
  %v3386 = vunpack.c.h.b16 %v1259
  %v3387 = vunpack.c.l.b16 %v1260
  %v3388 = vunpack.c.h.b16 %v1260
  %v3389 = vunpack.c.l.b16 %v1261
  %v3390 = vunpack.c.h.b16 %v1261
  %v3391 = vunpack.c.l.b16 %v1262
  %v3392 = vunpack.c.h.b16 %v1262
  %v3393 = vunpack.c.l.b16 %v1263
  %v3394 = vunpack.c.h.b16 %v1263
  %v3395 = vunpack.c.l.b16 %v1264
  %v3396 = vunpack.c.h.b16 %v1264
  %v3397 = vunpack.c.l.b16 %v1265
  %v3398 = vunpack.c.h.b16 %v1265
  %v3399 = vunpack.c.l.b16 %v1266
  %v3400 = vunpack.c.h.b16 %v1266
  %v3401 = vunpack.c.l.b16 %v1267
  %v3402 = vunpack.c.h.b16 %v1267
  %v3403 = vunpack.c.l.b16 %v1268
  %v3404 = vunpack.c.h.b16 %v1268
  %v3405 = vunpack.c.l.b16 %v1269
  %v3406 = vunpack.c.h.b16 %v1269
  %v3407 = vunpack.c.l.b16 %v1270
  %v3408 = vunpack.c.h.b16 %v1270
  %v3409 = vunpack.c.l.b16 %v1271
  %v3410 = vunpack.c.h.b16 %v1271
  %v3411 = vunpack.c.l.b16 %v1272
  %v3412 = vunpack.c.h.b16 %v1272
  %v3413 = vunpack.c.l.b16 %v1273
  %v3414 = vunpack.c.h.b16 %v1273
  %v3415 = vunpack.c.l.b16 %v1274
  %v3416 = vunpack.c.h.b16 %v1274
  %v3417 = vunpack.c.l.b16 %v1275
  %v3418 = vunpack.c.h.b16 %v1275
  %v3419 = vunpack.c.l.b16 %v1276
  %v3420 = vunpack.c.h.b16 %v1276
  %v3421 = vunpack.c.l.b16 %v1277
  %v3422 = vunpack.c.h.b16 %v1277
  %v3423 = vunpack.c.l.b16 %v1278
  %v3424 = vunpack.c.h.b16 %v1278
  %v3425 = vunpack.c.l.b16 %v1279
  %v3426 = vunpack.c.h.b16 %v1279
  %v3427 = vunpack.c.l.b16 %v1280
  %v3428 = vunpack.c.h.b16 %v1280
  %v3429 = vunpack.c.l.b16 %v1281
  %v3430 = vunpack.c.h.b16 %v1281
  %v3431 = vunpack.c.l.b16 %v1282
  %v3432 = vunpack.c.h.b16 %v1282
  %v3433 = vunpack.c.l.b16 %v1283
  %v3434 = vunpack.c.h.b16 %v1283
  %v3435 = vunpack.c.l.b16 %v1284
  %v3436 = vunpack.c.h.b16 %v1284
  %v3437 = vunpack.c.l.b16 %v1285
  %v3438 = vunpack.c.h.b16 %v1285
  %v3439 = vunpack.c.l.b16 %v1286
  %v3440 = vunpack.c.h.b16 %v1286
  %v3441 = vunpack.c.l.b16 %v1287
  %v3442 = vunpack.c.h.b16 %v1287
  %v3443 = vunpack.c.l.b16 %v1288
  %v3444 = vunpack.c.h.b16 %v1288
  %v3445 = vunpack.c.l.b16 %v1289
  %v3446 = vunpack.c.h.b16 %v1289
  %v3447 = vunpack.c.l.b16 %v1290
  %v3448 = vunpack.c.h.b16 %v1290
  %v3449 = vunpack.c.l.b16 %v1291
  %v3450 = vunpack.c.h.b16 %v1291
  %v3451 = vunpack.c.l.b16 %v1292
  %v3452 = vunpack.c.h.b16 %v1292
  %v3453 = vunpack.c.l.b16 %v1293
  %v3454 = vunpack.c.h.b16 %v1293
  %v3455 = vunpack.c.l.b16 %v1294
  %v3456 = vunpack.c.h.b16 %v1294
  %v3457 = vunpack.c.l.b16 %v1295
  %v3458 = vunpack.c.h.b16 %v1295
  %v3459 = vunpack.c.l.b16 %v1296
  %v3460 = vunpack.c.h.b16 %v1296
  %v3461 = vunpack.c.l.b16 %v1297
  %v3462 = vunpack.c.h.b16 %v1297
  %v3463 = vunpack.c.l.b16 %v1298
  %v3464 = vunpack.c.h.b16 %v1298
  %v3465 = vunpack.c.l.b16 %v1299
  %v3466 = vunpack.c.h.b16 %v1299
  %v3467 = vunpack.c.l.b16 %v1300
  %v3468 = vunpack.c.h.b16 %v1300
  %v3469 = vunpack.c.l.b16 %v1301
  %v3470 = vunpack.c.h.b16 %v1301
  %v3471 = vunpack.c.l.b16 %v1302
  %v3472 = vunpack.c.h.b16 %v1302
  %v3473 = vunpack.c.l.b16 %v1303
  %v3474 = vunpack.c.h.b16 %v1303
  %v3475 = vunpack.c.l.b16 %v1304
  %v3476 = vunpack.c.h.b16 %v1304
  %v3477 = vunpack.c.l.b16 %v1305
  %v3478 = vunpack.c.h.b16 %v1305
  %v3479 = vunpack.c.l.b16 %v1306
  %v3480 = vunpack.c.h.b16 %v1306
  %v3481 = vunpack.c.l.b16 %v1307
  %v3482 = vunpack.c.h.b16 %v1307
  %v3483 = vunpack.c.l.b16 %v1308
  %v3484 = vunpack.c.h.b16 %v1308
  %v3485 = vunpack.c.l.b16 %v1309
  %v3486 = vunpack.c.h.b16 %v1309
  %v3487 = vunpack.c.l.b16 %v1310
  %v3488 = vunpack.c.h.b16 %v1310
  %v3489 = vunpack.c.l.b16 %v1311
  %v3490 = vunpack.c.h.b16 %v1311
  %v3491 = vunpack.c.l.b16 %v1312
  %v3492 = vunpack.c.h.b16 %v1312
  %v3493 = vunpack.c.l.b16 %v1313
  %v3494 = vunpack.c.h.b16 %v1313
  %v3495 = vunpack.c.l.b16 %v1314
  %v3496 = vunpack.c.h.b16 %v1314
  %v3497 = vunpack.c.l.b16 %v1315
  %v3498 = vunpack.c.h.b16 %v1315
  %v3499 = vunpack.c.l.b16 %v1316
  %v3500 = vunpack.c.h.b16 %v1316
  %v3501 = vunpack.c.l.b16 %v1317
  %v3502 = vunpack.c.h.b16 %v1317
  %v3503 = vunpack.c.l.b16 %v1318
  %v3504 = vunpack.c.h.b16 %v1318
  %v3505 = vunpack.c.l.b16 %v1319
  %v3506 = vunpack.c.h.b16 %v1319
  %v3507 = vunpack.c.l.b16 %v1320
  %v3508 = vunpack.c.h.b16 %v1320
  %v3509 = vunpack.c.l.b16 %v1321
  %v3510 = vunpack.c.h.b16 %v1321
  %v3511 = vunpack.c.l.b16 %v1322
  %v3512 = vunpack.c.h.b16 %v1322
  %v3513 = vunpack.c.l.b16 %v1323
  %v3514 = vunpack.c.h.b16 %v1323
  %v3515 = vunpack.c.l.b16 %v1324
  %v3516 = vunpack.c.h.b16 %v1324
  %v3517 = vunpack.c.l.b16 %v1325
  %v3518 = vunpack.c.h.b16 %v1325
  %v3519 = vunpack.c.l.b16 %v1326
  %v3520 = vunpack.c.h.b16 %v1326
  %v3521 = vunpack.c.l.b16 %v1327
  %v3522 = vunpack.c.h.b16 %v1327
  %v3523 = vunpack.c.l.b16 %v1328
  %v3524 = vunpack.c.h.b16 %v1328
  %v3525 = vunpack.c.l.b16 %v1329
  %v3526 = vunpack.c.h.b16 %v1329
  %v3527 = vunpack.c.l.b16 %v1330
  %v3528 = vunpack.c.h.b16 %v1330
  %v3529 = vunpack.c.l.b16 %v1331
  %v3530 = vunpack.c.h.b16 %v1331
  %v3531 = vunpack.c.l.b16 %v1332
  %v3532 = vunpack.c.h.b16 %v1332
  %v3533 = vunpack.c.l.b16 %v1333
  %v3534 = vunpack.c.h.b16 %v1333
  %v3535 = vunpack.c.l.b16 %v1334
  %v3536 = vunpack.c.h.b16 %v1334
  %v3537 = vunpack.c.l.b16 %v1335
  %v3538 = vunpack.c.h.b16 %v1335
  %v3539 = vunpack.c.l.b16 %v1336
  %v3540 = vunpack.c.h.b16 %v1336
  %v3541 = vunpack.c.l.b16 %v1337
  %v3542 = vunpack.c.h.b16 %v1337
  %v3543 = vunpack.c.l.b16 %v1338
  %v3544 = vunpack.c.h.b16 %v1338
  %v3545 = vunpack.c.l.b16 %v1339
  %v3546 = vunpack.c.h.b16 %v1339
  %v3547 = vunpack.c.l.b16 %v1340
  %v3548 = vunpack.c.h.b16 %v1340
  %v3549 = vunpack.c.l.b16 %v1341
  %v3550 = vunpack.c.h.b16 %v1341
  %v3551 = vunpack.c.l.b16 %v1342
  %v3552 = vunpack.c.h.b16 %v1342
  %v3553 = vunpack.c.l.b16 %v1343
  %v3554 = vunpack.c.h.b16 %v1343
  %v3555 = vunpack.c.l.b16 %v1344
  %v3556 = vunpack.c.h.b16 %v1344
  %v3557 = vunpack.c.l.b16 %v1345
  %v3558 = vunpack.c.h.b16 %v1345
  %v3559 = vunpack.c.l.b16 %v1346
  %v3560 = vunpack.c.h.b16 %v1346
  %v3561 = vunpack.c.l.b16 %v1347
  %v3562 = vunpack.c.h.b16 %v1347
  %v3563 = vunpack.c.l.b16 %v1348
  %v3564 = vunpack.c.h.b16 %v1348
  %v3565 = vunpack.c.l.b16 %v1349
  %v3566 = vunpack.c.h.b16 %v1349
  %v3567 = vunpack.c.l.b16 %v1350
  %v3568 = vunpack.c.h.b16 %v1350
  %v3569 = vunpack.c.l.b16 %v1351
  %v3570 = vunpack.c.h.b16 %v1351
  %v3571 = vunpack.c.l.b16 %v1352
  %v3572 = vunpack.c.h.b16 %v1352
  %v3573 = vunpack.c.l.b16 %v1353
  %v3574 = vunpack.c.h.b16 %v1353
  %v3575 = vunpack.c.l.b16 %v1354
  %v3576 = vunpack.c.h.b16 %v1354
  %v3577 = vunpack.c.l.b16 %v1355
  %v3578 = vunpack.c.h.b16 %v1355
  %v3579 = vunpack.c.l.b16 %v1356
  %v3580 = vunpack.c.h.b16 %v1356
  %v3581 = vunpack.c.l.b16 %v1357
  %v3582 = vunpack.c.h.b16 %v1357
  %v3583 = vunpack.c.l.b16 %v1358
  %v3584 = vunpack.c.h.b16 %v1358
  %v3585 = vunpack.c.l.b16 %v1359
  %v3586 = vunpack.c.h.b16 %v1359
  %v3587 = vunpack.c.l.b16 %v1360
  %v3588 = vunpack.c.h.b16 %v1360
  %v3589 = vunpack.c.l.b16 %v1361
  %v3590 = vunpack.c.h.b16 %v1361
  %v3591 = vunpack.c.l.b16 %v1362
  %v3592 = vunpack.c.h.b16 %v1362
  %v3593 = vunpack.c.l.b16 %v1363
  %v3594 = vunpack.c.h.b16 %v1363
  %v3595 = vunpack.c.l.b16 %v1364
  %v3596 = vunpack.c.h.b16 %v1364
  %v3597 = vunpack.c.l.b16 %v1365
  %v3598 = vunpack.c.h.b16 %v1365
  %v3599 = vunpack.c.l.b16 %v1366
  %v3600 = vunpack.c.h.b16 %v1366
  %v3601 = vunpack.c.l.b16 %v1367
  %v3602 = vunpack.c.h.b16 %v1367
  %v3603 = vunpack.c.l.b16 %v1368
  %v3604 = vunpack.c.h.b16 %v1368
  %v3605 = vunpack.c.l.b16 %v1369
  %v3606 = vunpack.c.h.b16 %v1369
  %v3607 = vunpack.c.l.b16 %v1370
  %v3608 = vunpack.c.h.b16 %v1370
  %v3609 = vunpack.c.l.b16 %v1371
  %v3610 = vunpack.c.h.b16 %v1371
  %v3611 = vunpack.c.l.b16 %v1372
  %v3612 = vunpack.c.h.b16 %v1372
  %v3613 = vunpack.c.l.b16 %v1373
  %v3614 = vunpack.c.h.b16 %v1373
  %v3615 = vunpack.c.l.b16 %v1374
  %v3616 = vunpack.c.h.b16 %v1374
  %v3617 = vunpack.c.l.b16 %v1375
  %v3618 = vunpack.c.h.b16 %v1375
  %v3619 = vunpack.c.l.b16 %v1376
  %v3620 = vunpack.c.h.b16 %v1376
  %v3621 = vunpack.c.l.b16 %v1377
  %v3622 = vunpack.c.h.b16 %v1377
  %v3623 = vunpack.c.l.b16 %v1378
  %v3624 = vunpack.c.h.b16 %v1378
  %v3625 = vunpack.c.l.b16 %v1379
  %v3626 = vunpack.c.h.b16 %v1379
  %v3627 = vunpack.c.l.b16 %v1380
  %v3628 = vunpack.c.h.b16 %v1380
  %v3629 = vunpack.c.l.b16 %v1381
  %v3630 = vunpack.c.h.b16 %v1381
  %v3631 = vunpack.c.l.b16 %v1382
  %v3632 = vunpack.c.h.b16 %v1382
  %v3633 = vunpack.c.l.b16 %v1383
  %v3634 = vunpack.c.h.b16 %v1383
  %v3635 = vunpack.c.l.b16 %v1384
  %v3636 = vunpack.c.h.b16 %v1384
  %v3637 = vunpack.c.l.b16 %v1385
  %v3638 = vunpack.c.h.b16 %v1385
  %v3639 = vunpack.c.l.b16 %v1386
  %v3640 = vunpack.c.h.b16 %v1386
  %v3641 = vunpack.c.l.b16 %v1387
  %v3642 = vunpack.c.h.b16 %v1387
  %v3643 = vunpack.c.l.b16 %v1388
  %v3644 = vunpack.c.h.b16 %v1388
  %v3645 = vunpack.c.l.b16 %v1389
  %v3646 = vunpack.c.h.b16 %v1389
  %v3647 = vunpack.c.l.b16 %v1390
  %v3648 = vunpack.c.h.b16 %v1390
  %v3649 = vunpack.c.l.b16 %v1391
  %v3650 = vunpack.c.h.b16 %v1391
  %v3651 = vunpack.c.l.b16 %v1392
  %v3652 = vunpack.c.h.b16 %v1392
  %v3653 = vunpack.c.l.b16 %v1393
  %v3654 = vunpack.c.h.b16 %v1393
  %v3655 = vunpack.c.l.b16 %v1394
  %v3656 = vunpack.c.h.b16 %v1394
  %v3657 = vunpack.c.l.b16 %v1395
  %v3658 = vunpack.c.h.b16 %v1395
  %v3659 = vunpack.c.l.b16 %v1396
  %v3660 = vunpack.c.h.b16 %v1396
  %v3661 = vunpack.c.l.b16 %v1397
  %v3662 = vunpack.c.h.b16 %v1397
  %v3663 = vunpack.c.l.b16 %v1398
  %v3664 = vunpack.c.h.b16 %v1398
  %v3665 = vunpack.c.l.b16 %v1399
  %v3666 = vunpack.c.h.b16 %v1399
  %v3667 = vunpack.c.l.b16 %v1400
  %v3668 = vunpack.c.h.b16 %v1400
  %v3669 = vunpack.c.l.b16 %v1401
  %v3670 = vunpack.c.h.b16 %v1401
  %v3671 = vunpack.c.l.b16 %v1402
  %v3672 = vunpack.c.h.b16 %v1402
  %v3673 = vunpack.c.l.b16 %v1403
  %v3674 = vunpack.c.h.b16 %v1403
  %v3675 = vunpack.c.l.b16 %v1404
  %v3676 = vunpack.c.h.b16 %v1404
  %v3677 = vunpack.c.l.b16 %v1405
  %v3678 = vunpack.c.h.b16 %v1405
  %v3679 = vunpack.c.l.b16 %v1406
  %v3680 = vunpack.c.h.b16 %v1406
  %v3681 = vunpack.c.l.b16 %v1407
  %v3682 = vunpack.c.h.b16 %v1407
  %v3683 = vunpack.c.l.b16 %v1408
  %v3684 = vunpack.c.h.b16 %v1408
  %v3685 = vunpack.c.l.b16 %v1409
  %v3686 = vunpack.c.h.b16 %v1409
  %v3687 = vunpack.c.l.b16 %v1410
  %v3688 = vunpack.c.h.b16 %v1410
  %v3689 = vunpack.c.l.b16 %v1411
  %v3690 = vunpack.c.h.b16 %v1411
  %v3691 = vunpack.c.l.b16 %v1412
  %v3692 = vunpack.c.h.b16 %v1412
  %v3693 = vunpack.c.l.b16 %v1413
  %v3694 = vunpack.c.h.b16 %v1413
  %v3695 = vunpack.c.l.b16 %v1414
  %v3696 = vunpack.c.h.b16 %v1414
  %v3697 = vunpack.c.l.b16 %v1415
  %v3698 = vunpack.c.h.b16 %v1415
  %v3699 = vunpack.c.l.b16 %v1416
  %v3700 = vunpack.c.h.b16 %v1416
  %v3701 = vunpack.c.l.b16 %v1417
  %v3702 = vunpack.c.h.b16 %v1417
  %v3703 = vunpack.c.l.b16 %v1418
  %v3704 = vunpack.c.h.b16 %v1418
  %v3705 = vunpack.c.l.b16 %v1419
  %v3706 = vunpack.c.h.b16 %v1419
  %v3707 = vunpack.c.l.b16 %v1420
  %v3708 = vunpack.c.h.b16 %v1420
  %v3709 = vunpack.c.l.b16 %v1421
  %v3710 = vunpack.c.h.b16 %v1421
  %v3711 = vunpack.c.l.b16 %v1422
  %v3712 = vunpack.c.h.b16 %v1422
  %v3713 = vunpack.c.l.b16 %v1423
  %v3714 = vunpack.c.h.b16 %v1423
  %v3715 = vunpack.c.l.b16 %v1424
  %v3716 = vunpack.c.h.b16 %v1424
  %v3717 = vunpack.c.l.b16 %v1425
  %v3718 = vunpack.c.h.b16 %v1425
  %v3719 = vunpack.c.l.b16 %v1426
  %v3720 = vunpack.c.h.b16 %v1426
  %v3721 = vunpack.c.l.b16 %v1427
  %v3722 = vunpack.c.h.b16 %v1427
  %v3723 = vunpack.c.l.b16 %v1428
  %v3724 = vunpack.c.h.b16 %v1428
  %v3725 = vunpack.c.l.b16 %v1429
  %v3726 = vunpack.c.h.b16 %v1429
  %v3727 = vunpack.c.l.b16 %v1430
  %v3728 = vunpack.c.h.b16 %v1430
  %v3729 = vunpack.c.l.b16 %v1431
  %v3730 = vunpack.c.h.b16 %v1431
  %v3731 = vunpack.c.l.b16 %v1432
  %v3732 = vunpack.c.h.b16 %v1432
  %v3733 = vunpack.c.l.b16 %v1433
  %v3734 = vunpack.c.h.b16 %v1433
  %v3735 = vunpack.c.l.b16 %v1434
  %v3736 = vunpack.c.h.b16 %v1434
  %v3737 = vunpack.c.l.b16 %v1435
  %v3738 = vunpack.c.h.b16 %v1435
  %v3739 = vunpack.c.l.b16 %v1436
  %v3740 = vunpack.c.h.b16 %v1436
  %v3741 = vunpack.c.l.b16 %v1437
  %v3742 = vunpack.c.h.b16 %v1437
  %v3743 = vunpack.c.l.b16 %v1438
  %v3744 = vunpack.c.h.b16 %v1438
  %v3745 = vunpack.c.l.b16 %v1439
  %v3746 = vunpack.c.h.b16 %v1439
  %v3747 = vunpack.c.l.b16 %v1440
  %v3748 = vunpack.c.h.b16 %v1440
  %v3749 = vunpack.c.l.b16 %v1441
  %v3750 = vunpack.c.h.b16 %v1441
  %v3751 = vunpack.c.l.b16 %v1442
  %v3752 = vunpack.c.h.b16 %v1442
  %v3753 = vunpack.c.l.b16 %v1443
  %v3754 = vunpack.c.h.b16 %v1443
  %v3755 = vunpack.c.l.b16 %v1444
  %v3756 = vunpack.c.h.b16 %v1444
  %v3757 = vunpack.c.l.b16 %v1445
  %v3758 = vunpack.c.h.b16 %v1445
  %v3759 = vunpack.c.l.b16 %v1446
  %v3760 = vunpack.c.h.b16 %v1446
  %v3761 = vunpack.c.l.b16 %v1447
  %v3762 = vunpack.c.h.b16 %v1447
  %v3763 = vunpack.c.l.b16 %v1448
  %v3764 = vunpack.c.h.b16 %v1448
  %v3765 = vunpack.c.l.b16 %v1449
  %v3766 = vunpack.c.h.b16 %v1449
  %v3767 = vunpack.c.l.b16 %v1450
  %v3768 = vunpack.c.h.b16 %v1450
  %v3769 = vunpack.c.l.b16 %v1451
  %v3770 = vunpack.c.h.b16 %v1451
  %v3771 = vunpack.c.l.b16 %v1452
  %v3772 = vunpack.c.h.b16 %v1452
  %v3773 = vunpack.c.l.b16 %v1453
  %v3774 = vunpack.c.h.b16 %v1453
  %v3775 = vunpack.c.l.b16 %v1454
  %v3776 = vunpack.c.h.b16 %v1454
  %v3777 = vunpack.c.l.b16 %v1455
  %v3778 = vunpack.c.h.b16 %v1455
  %v3779 = vunpack.c.l.b16 %v1456
  %v3780 = vunpack.c.h.b16 %v1456
  %v3781 = vunpack.c.l.b16 %v1457
  %v3782 = vunpack.c.h.b16 %v1457
  %v3783 = vunpack.c.l.b16 %v1458
  %v3784 = vunpack.c.h.b16 %v1458
  %v3785 = vunpack.c.l.b16 %v1459
  %v3786 = vunpack.c.h.b16 %v1459
  %v3787 = vunpack.c.l.b16 %v1460
  %v3788 = vunpack.c.h.b16 %v1460
  %v3789 = vunpack.c.l.b16 %v1461
  %v3790 = vunpack.c.h.b16 %v1461
  %v3791 = vunpack.c.l.b16 %v1462
  %v3792 = vunpack.c.h.b16 %v1462
  %v3793 = vunpack.c.l.b16 %v1463
  %v3794 = vunpack.c.h.b16 %v1463
  %v3795 = vunpack.c.l.b16 %v1464
  %v3796 = vunpack.c.h.b16 %v1464
  %v3797 = vunpack.c.l.b16 %v1465
  %v3798 = vunpack.c.h.b16 %v1465
  %v3799 = vunpack.c.l.b16 %v1466
  %v3800 = vunpack.c.h.b16 %v1466
  %v3801 = vunpack.c.l.b16 %v1467
  %v3802 = vunpack.c.h.b16 %v1467
  %v3803 = vunpack.c.l.b16 %v1468
  %v3804 = vunpack.c.h.b16 %v1468
  %v3805 = vunpack.c.l.b16 %v1469
  %v3806 = vunpack.c.h.b16 %v1469
  %v3807 = vunpack.c.l.b16 %v1470
  %v3808 = vunpack.c.h.b16 %v1470
  %v3809 = vunpack.c.l.b16 %v1471
  %v3810 = vunpack.c.h.b16 %v1471
  %v3811 = vunpack.c.l.b16 %v1472
  %v3812 = vunpack.c.h.b16 %v1472
  %v3813 = vunpack.c.l.b16 %v1473
  %v3814 = vunpack.c.h.b16 %v1473
  %v3815 = vunpack.c.l.b16 %v1474
  %v3816 = vunpack.c.h.b16 %v1474
  %v3817 = vunpack.c.l.b16 %v1475
  %v3818 = vunpack.c.h.b16 %v1475
  %v3819 = vunpack.c.l.b16 %v1476
  %v3820 = vunpack.c.h.b16 %v1476
  %v3821 = vunpack.c.l.b16 %v1477
  %v3822 = vunpack.c.h.b16 %v1477
  %v3823 = vunpack.c.l.b16 %v1478
  %v3824 = vunpack.c.h.b16 %v1478
  %v3825 = vunpack.c.l.b16 %v1479
  %v3826 = vunpack.c.h.b16 %v1479
  %v3827 = vunpack.c.l.b16 %v1480
  %v3828 = vunpack.c.h.b16 %v1480
  %v3829 = vunpack.c.l.b16 %v1481
  %v3830 = vunpack.c.h.b16 %v1481
  %v3831 = vunpack.c.l.b16 %v1482
  %v3832 = vunpack.c.h.b16 %v1482
  %v3833 = vunpack.c.l.b16 %v1483
  %v3834 = vunpack.c.h.b16 %v1483
  %v3835 = vunpack.c.l.b16 %v1484
  %v3836 = vunpack.c.h.b16 %v1484
  %v3837 = vunpack.c.l.b16 %v1485
  %v3838 = vunpack.c.h.b16 %v1485
  %v3839 = vunpack.c.l.b16 %v1486
  %v3840 = vunpack.c.h.b16 %v1486
  %v3841 = vunpack.c.l.b16 %v1487
  %v3842 = vunpack.c.h.b16 %v1487
  %v3843 = vunpack.c.l.b16 %v1488
  %v3844 = vunpack.c.h.b16 %v1488
  %v3845 = vunpack.c.l.b16 %v1489
  %v3846 = vunpack.c.h.b16 %v1489
  %v3847 = vunpack.c.l.b16 %v1490
  %v3848 = vunpack.c.h.b16 %v1490
  %v3849 = vunpack.c.l.b16 %v1491
  %v3850 = vunpack.c.h.b16 %v1491
  %v3851 = vunpack.c.l.b16 %v1492
  %v3852 = vunpack.c.h.b16 %v1492
  %v3853 = vunpack.c.l.b16 %v1493
  %v3854 = vunpack.c.h.b16 %v1493
  %v3855 = vunpack.c.l.b16 %v1494
  %v3856 = vunpack.c.h.b16 %v1494
  %v3857 = vunpack.c.l.b16 %v1495
  %v3858 = vunpack.c.h.b16 %v1495
  %v3859 = vunpack.c.l.b16 %v1496
  %v3860 = vunpack.c.h.b16 %v1496
  %v3861 = vunpack.c.l.b16 %v1497
  %v3862 = vunpack.c.h.b16 %v1497
  %v3863 = vunpack.c.l.b16 %v1498
  %v3864 = vunpack.c.h.b16 %v1498
  %v3865 = vunpack.c.l.b16 %v1499
  %v3866 = vunpack.c.h.b16 %v1499
  %v3867 = vunpack.c.l.b16 %v1500
  %v3868 = vunpack.c.h.b16 %v1500
  %v3869 = vunpack.c.l.b16 %v1501
  %v3870 = vunpack.c.h.b16 %v1501
  %v3871 = vunpack.c.l.b16 %v1502
  %v3872 = vunpack.c.h.b16 %v1502
  %v3873 = vunpack.c.l.b16 %v1503
  %v3874 = vunpack.c.h.b16 %v1503
  %v3875 = vunpack.c.l.b16 %v1504
  %v3876 = vunpack.c.h.b16 %v1504
  %v3877 = vunpack.c.l.b16 %v1505
  %v3878 = vunpack.c.h.b16 %v1505
  %v3879 = vunpack.c.l.b16 %v1506
  %v3880 = vunpack.c.h.b16 %v1506
  %v3881 = vunpack.c.l.b16 %v1507
  %v3882 = vunpack.c.h.b16 %v1507
  %v3883 = vunpack.c.l.b16 %v1508
  %v3884 = vunpack.c.h.b16 %v1508
  %v3885 = vunpack.c.l.b16 %v1509
  %v3886 = vunpack.c.h.b16 %v1509
  %v3887 = vunpack.c.l.b16 %v1510
  %v3888 = vunpack.c.h.b16 %v1510
  %v3889 = vunpack.c.l.b16 %v1511
  %v3890 = vunpack.c.h.b16 %v1511
  %v3891 = vunpack.c.l.b16 %v1512
  %v3892 = vunpack.c.h.b16 %v1512
  %v3893 = vunpack.c.l.b16 %v1513
  %v3894 = vunpack.c.h.b16 %v1513
  %v3895 = vunpack.c.l.b16 %v1514
  %v3896 = vunpack.c.h.b16 %v1514
  %v3897 = vunpack.c.l.b16 %v1515
  %v3898 = vunpack.c.h.b16 %v1515
  %v3899 = vunpack.c.l.b16 %v1516
  %v3900 = vunpack.c.h.b16 %v1516
  %v3901 = vunpack.c.l.b16 %v1517
  %v3902 = vunpack.c.h.b16 %v1517
  %v3903 = vunpack.c.l.b16 %v1518
  %v3904 = vunpack.c.h.b16 %v1518
  %v3905 = vunpack.c.l.b16 %v1519
  %v3906 = vunpack.c.h.b16 %v1519
  %v3907 = vunpack.c.l.b16 %v1520
  %v3908 = vunpack.c.h.b16 %v1520
  %v3909 = vunpack.c.l.b16 %v1521
  %v3910 = vunpack.c.h.b16 %v1521
  %v3911 = vunpack.c.l.b16 %v1522
  %v3912 = vunpack.c.h.b16 %v1522
  %v3913 = vunpack.c.l.b16 %v1523
  %v3914 = vunpack.c.h.b16 %v1523
  %v3915 = vunpack.c.l.b16 %v1524
  %v3916 = vunpack.c.h.b16 %v1524
  %v3917 = vunpack.c.l.b16 %v1525
  %v3918 = vunpack.c.h.b16 %v1525
  %v3919 = vunpack.c.l.b16 %v1526
  %v3920 = vunpack.c.h.b16 %v1526
  %v3921 = vunpack.c.l.b16 %v1527
  %v3922 = vunpack.c.h.b16 %v1527
  %v3923 = vunpack.c.l.b16 %v1528
  %v3924 = vunpack.c.h.b16 %v1528
  %v3925 = vunpack.c.l.b16 %v1529
  %v3926 = vunpack.c.h.b16 %v1529
  %v3927 = vunpack.c.l.b16 %v1530
  %v3928 = vunpack.c.h.b16 %v1530
  %v3929 = vunpack.c.l.b16 %v1531
  %v3930 = vunpack.c.h.b16 %v1531
  %v3931 = vunpack.c.l.b16 %v1532
  %v3932 = vunpack.c.h.b16 %v1532
  %v3933 = vunpack.c.l.b16 %v1533
  %v3934 = vunpack.c.h.b16 %v1533
  %v3935 = vunpack.c.l.b16 %v1534
  %v3936 = vunpack.c.h.b16 %v1534
  %v3937 = vunpack.c.l.b16 %v1535
  %v3938 = vunpack.c.h.b16 %v1535
  %v3939 = vunpack.c.l.b16 %v1536
  %v3940 = vunpack.c.h.b16 %v1536
  %v3941 = vunpack.c.l.b16 %v1537
  %v3942 = vunpack.c.h.b16 %v1537
  %v3943 = vunpack.c.l.b16 %v1538
  %v3944 = vunpack.c.h.b16 %v1538
  %v3945 = vunpack.c.l.b16 %v1539
  %v3946 = vunpack.c.h.b16 %v1539
  %v3947 = vunpack.c.l.b16 %v1540
  %v3948 = vunpack.c.h.b16 %v1540
  %v3949 = vunpack.c.l.b16 %v1541
  %v3950 = vunpack.c.h.b16 %v1541
  %v3951 = vunpack.c.l.b16 %v1542
  %v3952 = vunpack.c.h.b16 %v1542
  %v3953 = vunpack.c.l.b16 %v1543
  %v3954 = vunpack.c.h.b16 %v1543
  %v3955 = vunpack.c.l.b16 %v1544
  %v3956 = vunpack.c.h.b16 %v1544
  %v3957 = vunpack.c.l.b16 %v1545
  %v3958 = vunpack.c.h.b16 %v1545
  %v3959 = vunpack.c.l.b16 %v1546
  %v3960 = vunpack.c.h.b16 %v1546
  %v3961 = vunpack.c.l.b16 %v1547
  %v3962 = vunpack.c.h.b16 %v1547
  %v3963 = vunpack.c.l.b16 %v1548
  %v3964 = vunpack.c.h.b16 %v1548
  %v3965 = vunpack.c.l.b16 %v1549
  %v3966 = vunpack.c.h.b16 %v1549
  %v3967 = vunpack.c.l.b16 %v1550
  %v3968 = vunpack.c.h.b16 %v1550
  %v3969 = vunpack.c.l.b16 %v1551
  %v3970 = vunpack.c.h.b16 %v1551
  %v3971 = vunpack.c.l.b16 %v1552
  %v3972 = vunpack.c.h.b16 %v1552
  %v3973 = vunpack.c.l.b16 %v1553
  %v3974 = vunpack.c.h.b16 %v1553
  %v3975 = vunpack.c.l.b16 %v1554
  %v3976 = vunpack.c.h.b16 %v1554
  %v3977 = vunpack.c.l.b16 %v1555
  %v3978 = vunpack.c.h.b16 %v1555
  %v3979 = vunpack.c.l.b16 %v1556
  %v3980 = vunpack.c.h.b16 %v1556
  %v3981 = vunpack.c.l.b16 %v1557
  %v3982 = vunpack.c.h.b16 %v1557
  %v3983 = vunpack.c.l.b16 %v1558
  %v3984 = vunpack.c.h.b16 %v1558
  %v3985 = vunpack.c.l.b16 %v1559
  %v3986 = vunpack.c.h.b16 %v1559
  %v3987 = vunpack.c.l.b16 %v1560
  %v3988 = vunpack.c.h.b16 %v1560
  %v3989 = vunpack.c.l.b16 %v1561
  %v3990 = vunpack.c.h.b16 %v1561
  %v3991 = vunpack.c.l.b16 %v1562
  %v3992 = vunpack.c.h.b16 %v1562
  %v3993 = vunpack.c.l.b16 %v1563
  %v3994 = vunpack.c.h.b16 %v1563
  %v3995 = vunpack.c.l.b16 %v1564
  %v3996 = vunpack.c.h.b16 %v1564
  %v3997 = vunpack.c.l.b16 %v1565
  %v3998 = vunpack.c.h.b16 %v1565
  %v3999 = vunpack.c.l.b16 %v1566
  %v4000 = vunpack.c.h.b16 %v1566
  %v4001 = vunpack.c.l.b16 %v1567
  %v4002 = vunpack.c.h.b16 %v1567
  %v4003 = vunpack.c.l.b16 %v1568
  %v4004 = vunpack.c.h.b16 %v1568
  %v4005 = vunpack.c.l.b16 %v1569
  %v4006 = vunpack.c.h.b16 %v1569
  %v4007 = vunpack.c.l.b16 %v1570
  %v4008 = vunpack.c.h.b16 %v1570
  %v4009 = vunpack.c.l.b16 %v1571
  %v4010 = vunpack.c.h.b16 %v1571
  %v4011 = vunpack.c.l.b16 %v1572
  %v4012 = vunpack.c.h.b16 %v1572
  %v4013 = vunpack.c.l.b16 %v1573
  %v4014 = vunpack.c.h.b16 %v1573
  %v4015 = vunpack.c.l.b16 %v1574
  %v4016 = vunpack.c.h.b16 %v1574
  %v4017 = vunpack.c.l.b16 %v1575
  %v4018 = vunpack.c.h.b16 %v1575
  %v4019 = vunpack.c.l.b16 %v1576
  %v4020 = vunpack.c.h.b16 %v1576
  %v4021 = vunpack.c.l.b16 %v1577
  %v4022 = vunpack.c.h.b16 %v1577
  %v4023 = vunpack.c.l.b16 %v1578
  %v4024 = vunpack.c.h.b16 %v1578
  %v4025 = vunpack.c.l.b16 %v1579
  %v4026 = vunpack.c.h.b16 %v1579
  %v4027 = vunpack.c.l.b16 %v1580
  %v4028 = vunpack.c.h.b16 %v1580
  %v4029 = vunpack.c.l.b16 %v1581
  %v4030 = vunpack.c.h.b16 %v1581
  %v4031 = vunpack.c.l.b16 %v1582
  %v4032 = vunpack.c.h.b16 %v1582
  %v4033 = vunpack.c.l.b16 %v1583
  %v4034 = vunpack.c.h.b16 %v1583
  %v4035 = vunpack.c.l.b16 %v1584
  %v4036 = vunpack.c.h.b16 %v1584
  %v4037 = vunpack.c.l.b16 %v1585
  %v4038 = vunpack.c.h.b16 %v1585
  %v4039 = vunpack.c.l.b16 %v1586
  %v4040 = vunpack.c.h.b16 %v1586
  %v4041 = vpack.c.b16 %v2451, %v2441
  %v4042 = vpack.c.b16 %v2452, %v2442
  %v4043 = vpack.c.b16 %v2453, %v2443
  %v4044 = vpack.c.b16 %v2454, %v2444
  %v4045 = vpack.c.b16 %v2455, %v2445
  %v4046 = vpack.c.b16 %v2456, %v2446
  %v4047 = vpack.c.b16 %v2457, %v2447
  %v4048 = vpack.c.b16 %v2458, %v2448
  %v4049 = vpack.c.b16 %v2459, %v2449
  %v4050 = vpack.c.b16 %v2460, %v2450
  %v4051 = vpack.c.b16 %v2471, %v2461
  %v4052 = vpack.c.b16 %v2472, %v2462
  %v4053 = vpack.c.b16 %v2473, %v2463
  %v4054 = vpack.c.b16 %v2474, %v2464
  %v4055 = vpack.c.b16 %v2475, %v2465
  %v4056 = vpack.c.b16 %v2476, %v2466
  %v4057 = vpack.c.b16 %v2477, %v2467
  %v4058 = vpack.c.b16 %v2478, %v2468
  %v4059 = vpack.c.b16 %v2479, %v2469
  %v4060 = vpack.c.b16 %v2480, %v2470
  %v4061 = vpack.c.b16 %v2491, %v2481
  %v4062 = vpack.c.b16 %v2492, %v2482
  %v4063 = vpack.c.b16 %v2493, %v2483
  %v4064 = vpack.c.b16 %v2494, %v2484
  %v4065 = vpack.c.b16 %v2495, %v2485
  %v4066 = vpack.c.b16 %v2496, %v2486
  %v4067 = vpack.c.b16 %v2497, %v2487
  %v4068 = vpack.c.b16 %v2498, %v2488
  %v4069 = vpack.c.b16 %v2499, %v2489
  %v4070 = vpack.c.b16 %v2500, %v2490
  %v4071 = vpack.c.b16 %v2511, %v2501
  %v4072 = vpack.c.b16 %v2512, %v2502
  %v4073 = vpack.c.b16 %v2513, %v2503
  %v4074 = vpack.c.b16 %v2514, %v2504
  %v4075 = vpack.c.b16 %v2515, %v2505
  %v4076 = vpack.c.b16 %v2516, %v2506
  %v4077 = vpack.c.b16 %v2517, %v2507
  %v4078 = vpack.c.b16 %v2518, %v2508
  %v4079 = vpack.c.b16 %v2519, %v2509
  %v4080 = vpack.c.b16 %v2520, %v2510
  %v4081 = vpack.c.b16 %v2531, %v2521
  %v4082 = vpack.c.b16 %v2532, %v2522
  %v4083 = vpack.c.b16 %v2533, %v2523
  %v4084 = vpack.c.b16 %v2534, %v2524
  %v4085 = vpack.c.b16 %v2535, %v2525
  %v4086 = vpack.c.b16 %v2536, %v2526
  %v4087 = vpack.c.b16 %v2537, %v2527
  %v4088 = vpack.c.b16 %v2538, %v2528
  %v4089 = vpack.c.b16 %v2539, %v2529
  %v4090 = vpack.c.b16 %v2540, %v2530
  %v4091 = vpack.c.b16 %v2551, %v2541
  %v4092 = vpack.c.b16 %v2552, %v2542
  %v4093 = vpack.c.b16 %v2553, %v2543
  %v4094 = vpack.c.b16 %v2554, %v2544
  %v4095 = vpack.c.b16 %v2555, %v2545
  %v4096 = vpack.c.b16 %v2556, %v2546
  %v4097 = vpack.c.b16 %v2557, %v2547
  %v4098 = vpack.c.b16 %v2558, %v2548
  %v4099 = vpack.c.b16 %v2559, %v2549
  %v4100 = vpack.c.b16 %v2560, %v2550
  %v4101 = vpack.c.b16 %v2571, %v2561
  %v4102 = vpack.c.b16 %v2572, %v2562
  %v4103 = vpack.c.b16 %v2573, %v2563
  %v4104 = vpack.c.b16 %v2574, %v2564
  %v4105 = vpack.c.b16 %v2575, %v2565
  %v4106 = vpack.c.b16 %v2576, %v2566
  %v4107 = vpack.c.b16 %v2577, %v2567
  %v4108 = vpack.c.b16 %v2578, %v2568
  %v4109 = vpack.c.b16 %v2579, %v2569
  %v4110 = vpack.c.b16 %v2580, %v2570
  %v4111 = vpack.c.b16 %v2591, %v2581
  %v4112 = vpack.c.b16 %v2592, %v2582
  %v4113 = vpack.c.b16 %v2593, %v2583
  %v4114 = vpack.c.b16 %v2594, %v2584
  %v4115 = vpack.c.b16 %v2595, %v2585
  %v4116 = vpack.c.b16 %v2596, %v2586
  %v4117 = vpack.c.b16 %v2597, %v2587
  %v4118 = vpack.c.b16 %v2598, %v2588
  %v4119 = vpack.c.b16 %v2599, %v2589
  %v4120 = vpack.c.b16 %v2600, %v2590
  %v4121 = vpack.c.b16 %v2611, %v2601
  %v4122 = vpack.c.b16 %v2612, %v2602
  %v4123 = vpack.c.b16 %v2613, %v2603
  %v4124 = vpack.c.b16 %v2614, %v2604
  %v4125 = vpack.c.b16 %v2615, %v2605
  %v4126 = vpack.c.b16 %v2616, %v2606
  %v4127 = vpack.c.b16 %v2617, %v2607
  %v4128 = vpack.c.b16 %v2618, %v2608
  %v4129 = vpack.c.b16 %v2619, %v2609
  %v4130 = vpack.c.b16 %v2620, %v2610
  %v4131 = vpack.c.b16 %v2631, %v2621
  %v4132 = vpack.c.b16 %v2632, %v2622
  %v4133 = vpack.c.b16 %v2633, %v2623
  %v4134 = vpack.c.b16 %v2634, %v2624
  %v4135 = vpack.c.b16 %v2635, %v2625
  %v4136 = vpack.c.b16 %v2636, %v2626
  %v4137 = vpack.c.b16 %v2637, %v2627
  %v4138 = vpack.c.b16 %v2638, %v2628
  %v4139 = vpack.c.b16 %v2639, %v2629
  %v4140 = vpack.c.b16 %v2640, %v2630
  %v4141 = vpack.c.b16 %v2651, %v2641
  %v4142 = vpack.c.b16 %v2652, %v2642
  %v4143 = vpack.c.b16 %v2653, %v2643
  %v4144 = vpack.c.b16 %v2654, %v2644
  %v4145 = vpack.c.b16 %v2655, %v2645
  %v4146 = vpack.c.b16 %v2656, %v2646
  %v4147 = vpack.c.b16 %v2657, %v2647
  %v4148 = vpack.c.b16 %v2658, %v2648
  %v4149 = vpack.c.b16 %v2659, %v2649
  %v4150 = vpack.c.b16 %v2660, %v2650
  %v4151 = vpack.c.b16 %v2671, %v2661
  %v4152 = vpack.c.b16 %v2672, %v2662
  %v4153 = vpack.c.b16 %v2673, %v2663
  %v4154 = vpack.c.b16 %v2674, %v2664
  %v4155 = vpack.c.b16 %v2675, %v2665
  %v4156 = vpack.c.b16 %v2676, %v2666
  %v4157 = vpack.c.b16 %v2677, %v2667
  %v4158 = vpack.c.b16 %v2678, %v2668
  %v4159 = vpack.c.b16 %v2679, %v2669
  %v4160 = vpack.c.b16 %v2680, %v2670
  %v4161 = vpack.c.b16 %v2691, %v2681
  %v4162 = vpack.c.b16 %v2692, %v2682
  %v4163 = vpack.c.b16 %v2693, %v2683
  %v4164 = vpack.c.b16 %v2694, %v2684
  %v4165 = vpack.c.b16 %v2695, %v2685
  %v4166 = vpack.c.b16 %v2696, %v2686
  %v4167 = vpack.c.b16 %v2697, %v2687
  %v4168 = vpack.c.b16 %v2698, %v2688
  %v4169 = vpack.c.b16 %v2699, %v2689
  %v4170 = vpack.c.b16 %v2700, %v2690
  %v4171 = vpack.c.b16 %v2711, %v2701
  %v4172 = vpack.c.b16 %v2712, %v2702
  %v4173 = vpack.c.b16 %v2713, %v2703
  %v4174 = vpack.c.b16 %v2714, %v2704
  %v4175 = vpack.c.b16 %v2715, %v2705
  %v4176 = vpack.c.b16 %v2716, %v2706
  %v4177 = vpack.c.b16 %v2717, %v2707
  %v4178 = vpack.c.b16 %v2718, %v2708
  %v4179 = vpack.c.b16 %v2719, %v2709
  %v4180 = vpack.c.b16 %v2720, %v2710
  %v4181 = vpack.c.b16 %v2731, %v2721
  %v4182 = vpack.c.b16 %v2732, %v2722
  %v4183 = vpack.c.b16 %v2733, %v2723
  %v4184 = vpack.c.b16 %v2734, %v2724
  %v4185 = vpack.c.b16 %v2735, %v2725
  %v4186 = vpack.c.b16 %v2736, %v2726
  %v4187 = vpack.c.b16 %v2737, %v2727
  %v4188 = vpack.c.b16 %v2738, %v2728
  %v4189 = vpack.c.b16 %v2739, %v2729
  %v4190 = vpack.c.b16 %v2740, %v2730
  %v4191 = vpack.c.b16 %v2751, %v2741
  %v4192 = vpack.c.b16 %v2752, %v2742
  %v4193 = vpack.c.b16 %v2753, %v2743
  %v4194 = vpack.c.b16 %v2754, %v2744
  %v4195 = vpack.c.b16 %v2755, %v2745
  %v4196 = vpack.c.b16 %v2756, %v2746
  %v4197 = vpack.c.b16 %v2757, %v2747
  %v4198 = vpack.c.b16 %v2758, %v2748
  %v4199 = vpack.c.b16 %v2759, %v2749
  %v4200 = vpack.c.b16 %v2760, %v2750
  %v4201 = vpack.c.b16 %v2771, %v2761
  %v4202 = vpack.c.b16 %v2772, %v2762
  %v4203 = vpack.c.b16 %v2773, %v2763
  %v4204 = vpack.c.b16 %v2774, %v2764
  %v4205 = vpack.c.b16 %v2775, %v2765
  %v4206 = vpack.c.b16 %v2776, %v2766
  %v4207 = vpack.c.b16 %v2777, %v2767
  %v4208 = vpack.c.b16 %v2778, %v2768
  %v4209 = vpack.c.b16 %v2779, %v2769
  %v4210 = vpack.c.b16 %v2780, %v2770
  %v4211 = vpack.c.b16 %v2791, %v2781
  %v4212 = vpack.c.b16 %v2792, %v2782
  %v4213 = vpack.c.b16 %v2793, %v2783
  %v4214 = vpack.c.b16 %v2794, %v2784
  %v4215 = vpack.c.b16 %v2795, %v2785
  %v4216 = vpack.c.b16 %v2796, %v2786
  %v4217 = vpack.c.b16 %v2797, %v2787
  %v4218 = vpack.c.b16 %v2798, %v2788
  %v4219 = vpack.c.b16 %v2799, %v2789
  %v4220 = vpack.c.b16 %v2800, %v2790
  %v4221 = vpack.c.b16 %v2811, %v2801
  %v4222 = vpack.c.b16 %v2812, %v2802
  %v4223 = vpack.c.b16 %v2813, %v2803
  %v4224 = vpack.c.b16 %v2814, %v2804
  %v4225 = vpack.c.b16 %v2815, %v2805
  %v4226 = vpack.c.b16 %v2816, %v2806
  %v4227 = vpack.c.b16 %v2817, %v2807
  %v4228 = vpack.c.b16 %v2818, %v2808
  %v4229 = vpack.c.b16 %v2819, %v2809
  %v4230 = vpack.c.b16 %v2820, %v2810
  %v4231 = vpack.c.b16 %v2831, %v2821
  %v4232 = vpack.c.b16 %v2832, %v2822
  %v4233 = vpack.c.b16 %v2833, %v2823
  %v4234 = vpack.c.b16 %v2834, %v2824
  %v4235 = vpack.c.b16 %v2835, %v2825
  %v4236 = vpack.c.b16 %v2836, %v2826
  %v4237 = vpack.c.b16 %v2837, %v2827
  %v4238 = vpack.c.b16 %v2838, %v2828
  %v4239 = vpack.c.b16 %v2839, %v2829
  %v4240 = vpack.c.b16 %v2840, %v2830
  %v4241 = vpack.c.b16 %v2851, %v2841
  %v4242 = vpack.c.b16 %v2852, %v2842
  %v4243 = vpack.c.b16 %v2853, %v2843
  %v4244 = vpack.c.b16 %v2854, %v2844
  %v4245 = vpack.c.b16 %v2855, %v2845
  %v4246 = vpack.c.b16 %v2856, %v2846
  %v4247 = vpack.c.b16 %v2857, %v2847
  %v4248 = vpack.c.b16 %v2858, %v2848
  %v4249 = vpack.c.b16 %v2859, %v2849
  %v4250 = vpack.c.b16 %v2860, %v2850
  %v4251 = vpack.c.b16 %v2871, %v2861
  %v4252 = vpack.c.b16 %v2872, %v2862
  %v4253 = vpack.c.b16 %v2873, %v2863
  %v4254 = vpack.c.b16 %v2874, %v2864
  %v4255 = vpack.c.b16 %v2875, %v2865
  %v4256 = vpack.c.b16 %v2876, %v2866
  %v4257 = vpack.c.b16 %v2877, %v2867
  %v4258 = vpack.c.b16 %v2878, %v2868
  %v4259 = vpack.c.b16 %v2879, %v2869
  %v4260 = vpack.c.b16 %v2880, %v2870
  %v4261 = vpack.c.b16 %v2891, %v2881
  %v4262 = vpack.c.b16 %v2892, %v2882
  %v4263 = vpack.c.b16 %v2893, %v2883
  %v4264 = vpack.c.b16 %v2894, %v2884
  %v4265 = vpack.c.b16 %v2895, %v2885
  %v4266 = vpack.c.b16 %v2896, %v2886
  %v4267 = vpack.c.b16 %v2897, %v2887
  %v4268 = vpack.c.b16 %v2898, %v2888
  %v4269 = vpack.c.b16 %v2899, %v2889
  %v4270 = vpack.c.b16 %v2900, %v2890
  %v4271 = vpack.c.b16 %v2911, %v2901
  %v4272 = vpack.c.b16 %v2912, %v2902
  %v4273 = vpack.c.b16 %v2913, %v2903
  %v4274 = vpack.c.b16 %v2914, %v2904
  %v4275 = vpack.c.b16 %v2915, %v2905
  %v4276 = vpack.c.b16 %v2916, %v2906
  %v4277 = vpack.c.b16 %v2917, %v2907
  %v4278 = vpack.c.b16 %v2918, %v2908
  %v4279 = vpack.c.b16 %v2919, %v2909
  %v4280 = vpack.c.b16 %v2920, %v2910
  %v4281 = vpack.c.b16 %v2931, %v2921
  %v4282 = vpack.c.b16 %v2932, %v2922
  %v4283 = vpack.c.b16 %v2933, %v2923
  %v4284 = vpack.c.b16 %v2934, %v2924
  %v4285 = vpack.c.b16 %v2935, %v2925
  %v4286 = vpack.c.b16 %v2936, %v2926
  %v4287 = vpack.c.b16 %v2937, %v2927
  %v4288 = vpack.c.b16 %v2938, %v2928
  %v4289 = vpack.c.b16 %v2939, %v2929
  %v4290 = vpack.c.b16 %v2940, %v2930
  %v4291 = vpack.c.b16 %v2951, %v2941
  %v4292 = vpack.c.b16 %v2952, %v2942
  %v4293 = vpack.c.b16 %v2953, %v2943
  %v4294 = vpack.c.b16 %v2954, %v2944
  %v4295 = vpack.c.b16 %v2955, %v2945
  %v4296 = vpack.c.b16 %v2956, %v2946
  %v4297 = vpack.c.b16 %v2957, %v2947
  %v4298 = vpack.c.b16 %v2958, %v2948
  %v4299 = vpack.c.b16 %v2959, %v2949
  %v4300 = vpack.c.b16 %v2960, %v2950
  %v4301 = vpack.c.b16 %v2971, %v2961
  %v4302 = vpack.c.b16 %v2972, %v2962
  %v4303 = vpack.c.b16 %v2973, %v2963
  %v4304 = vpack.c.b16 %v2974, %v2964
  %v4305 = vpack.c.b16 %v2975, %v2965
  %v4306 = vpack.c.b16 %v2976, %v2966
  %v4307 = vpack.c.b16 %v2977, %v2967
  %v4308 = vpack.c.b16 %v2978, %v2968
  %v4309 = vpack.c.b16 %v2979, %v2969
  %v4310 = vpack.c.b16 %v2980, %v2970
  %v4311 = vpack.c.b16 %v2991, %v2981
  %v4312 = vpack.c.b16 %v2992, %v2982
  %v4313 = vpack.c.b16 %v2993, %v2983
  %v4314 = vpack.c.b16 %v2994, %v2984
  %v4315 = vpack.c.b16 %v2995, %v2985
  %v4316 = vpack.c.b16 %v2996, %v2986
  %v4317 = vpack.c.b16 %v2997, %v2987
  %v4318 = vpack.c.b16 %v2998, %v2988
  %v4319 = vpack.c.b16 %v2999, %v2989
  %v4320 = vpack.c.b16 %v3000, %v2990
  %v4321 = vpack.c.b16 %v3011, %v3001
  %v4322 = vpack.c.b16 %v3012, %v3002
  %v4323 = vpack.c.b16 %v3013, %v3003
  %v4324 = vpack.c.b16 %v3014, %v3004
  %v4325 = vpack.c.b16 %v3015, %v3005
  %v4326 = vpack.c.b16 %v3016, %v3006
  %v4327 = vpack.c.b16 %v3017, %v3007
  %v4328 = vpack.c.b16 %v3018, %v3008
  %v4329 = vpack.c.b16 %v3019, %v3009
  %v4330 = vpack.c.b16 %v3020, %v3010
  %v4331 = vpack.c.b16 %v3031, %v3021
  %v4332 = vpack.c.b16 %v3032, %v3022
  %v4333 = vpack.c.b16 %v3033, %v3023
  %v4334 = vpack.c.b16 %v3034, %v3024
  %v4335 = vpack.c.b16 %v3035, %v3025
  %v4336 = vpack.c.b16 %v3036, %v3026
  %v4337 = vpack.c.b16 %v3037, %v3027
  %v4338 = vpack.c.b16 %v3038, %v3028
  %v4339 = vpack.c.b16 %v3039, %v3029
  %v4340 = vpack.c.b16 %v3040, %v3030
  %v4341 = vpack.c.b16 %v3051, %v3041
  %v4342 = vpack.c.b16 %v3052, %v3042
  %v4343 = vpack.c.b16 %v3053, %v3043
  %v4344 = vpack.c.b16 %v3054, %v3044
  %v4345 = vpack.c.b16 %v3055, %v3045
  %v4346 = vpack.c.b16 %v3056, %v3046
  %v4347 = vpack.c.b16 %v3057, %v3047
  %v4348 = vpack.c.b16 %v3058, %v3048
  %v4349 = vpack.c.b16 %v3059, %v3049
  %v4350 = vpack.c.b16 %v3060, %v3050
  %v4351 = vpack.c.b16 %v3071, %v3061
  %v4352 = vpack.c.b16 %v3072, %v3062
  %v4353 = vpack.c.b16 %v3073, %v3063
  %v4354 = vpack.c.b16 %v3074, %v3064
  %v4355 = vpack.c.b16 %v3075, %v3065
  %v4356 = vpack.c.b16 %v3076, %v3066
  %v4357 = vpack.c.b16 %v3077, %v3067
  %v4358 = vpack.c.b16 %v3078, %v3068
  %v4359 = vpack.c.b16 %v3079, %v3069
  %v4360 = vpack.c.b16 %v3080, %v3070
  %v4361 = vpack.c.b16 %v3091, %v3081
  %v4362 = vpack.c.b16 %v3092, %v3082
  %v4363 = vpack.c.b16 %v3093, %v3083
  %v4364 = vpack.c.b16 %v3094, %v3084
  %v4365 = vpack.c.b16 %v3095, %v3085
  %v4366 = vpack.c.b16 %v3096, %v3086
  %v4367 = vpack.c.b16 %v3097, %v3087
  %v4368 = vpack.c.b16 %v3098, %v3088
  %v4369 = vpack.c.b16 %v3099, %v3089
  %v4370 = vpack.c.b16 %v3100, %v3090
  %v4371 = vpack.c.b16 %v3111, %v3101
  %v4372 = vpack.c.b16 %v3112, %v3102
  %v4373 = vpack.c.b16 %v3113, %v3103
  %v4374 = vpack.c.b16 %v3114, %v3104
  %v4375 = vpack.c.b16 %v3115, %v3105
  %v4376 = vpack.c.b16 %v3116, %v3106
  %v4377 = vpack.c.b16 %v3117, %v3107
  %v4378 = vpack.c.b16 %v3118, %v3108
  %v4379 = vpack.c.b16 %v3119, %v3109
  %v4380 = vpack.c.b16 %v3120, %v3110
  %v4381 = vpack.c.b16 %v3131, %v3121
  %v4382 = vpack.c.b16 %v3132, %v3122
  %v4383 = vpack.c.b16 %v3133, %v3123
  %v4384 = vpack.c.b16 %v3134, %v3124
  %v4385 = vpack.c.b16 %v3135, %v3125
  %v4386 = vpack.c.b16 %v3136, %v3126
  %v4387 = vpack.c.b16 %v3137, %v3127
  %v4388 = vpack.c.b16 %v3138, %v3128
  %v4389 = vpack.c.b16 %v3139, %v3129
  %v4390 = vpack.c.b16 %v3140, %v3130
  %v4391 = vpack.c.b16 %v3151, %v3141
  %v4392 = vpack.c.b16 %v3152, %v3142
  %v4393 = vpack.c.b16 %v3153, %v3143
  %v4394 = vpack.c.b16 %v3154, %v3144
  %v4395 = vpack.c.b16 %v3155, %v3145
  %v4396 = vpack.c.b16 %v3156, %v3146
  %v4397 = vpack.c.b16 %v3157, %v3147
  %v4398 = vpack.c.b16 %v3158, %v3148
  %v4399 = vpack.c.b16 %v3159, %v3149
  %v4400 = vpack.c.b16 %v3160, %v3150
  %v4401 = vpack.c.b16 %v3171, %v3161
  %v4402 = vpack.c.b16 %v3172, %v3162
  %v4403 = vpack.c.b16 %v3173, %v3163
  %v4404 = vpack.c.b16 %v3174, %v3164
  %v4405 = vpack.c.b16 %v3175, %v3165
  %v4406 = vpack.c.b16 %v3176, %v3166
  %v4407 = vpack.c.b16 %v3177, %v3167
  %v4408 = vpack.c.b16 %v3178, %v3168
  %v4409 = vpack.c.b16 %v3179, %v3169
  %v4410 = vpack.c.b16 %v3180, %v3170
  %v4411 = vpack.c.b16 %v3191, %v3181
  %v4412 = vpack.c.b16 %v3192, %v3182
  %v4413 = vpack.c.b16 %v3193, %v3183
  %v4414 = vpack.c.b16 %v3194, %v3184
  %v4415 = vpack.c.b16 %v3195, %v3185
  %v4416 = vpack.c.b16 %v3196, %v3186
  %v4417 = vpack.c.b16 %v3197, %v3187
  %v4418 = vpack.c.b16 %v3198, %v3188
  %v4419 = vpack.c.b16 %v3199, %v3189
  %v4420 = vpack.c.b16 %v3200, %v3190
  %v4421 = vpack.c.b16 %v3211, %v3201
  %v4422 = vpack.c.b16 %v3212, %v3202
  %v4423 = vpack.c.b16 %v3213, %v3203
  %v4424 = vpack.c.b16 %v3214, %v3204
  %v4425 = vpack.c.b16 %v3215, %v3205
  %v4426 = vpack.c.b16 %v3216, %v3206
  %v4427 = vpack.c.b16 %v3217, %v3207
  %v4428 = vpack.c.b16 %v3218, %v3208
  %v4429 = vpack.c.b16 %v3219, %v3209
  %v4430 = vpack.c.b16 %v3220, %v3210
  %v4431 = vpack.c.b16 %v3231, %v3221
  %v4432 = vpack.c.b16 %v3232, %v3222
  %v4433 = vpack.c.b16 %v3233, %v3223
  %v4434 = vpack.c.b16 %v3234, %v3224
  %v4435 = vpack.c.b16 %v3235, %v3225
  %v4436 = vpack.c.b16 %v3236, %v3226
  %v4437 = vpack.c.b16 %v3237, %v3227
  %v4438 = vpack.c.b16 %v3238, %v3228
  %v4439 = vpack.c.b16 %v3239, %v3229
  %v4440 = vpack.c.b16 %v3240, %v3230
  %v4441 = vpack.c.b16 %v3251, %v3241
  %v4442 = vpack.c.b16 %v3252, %v3242
  %v4443 = vpack.c.b16 %v3253, %v3243
  %v4444 = vpack.c.b16 %v3254, %v3244
  %v4445 = vpack.c.b16 %v3255, %v3245
  %v4446 = vpack.c.b16 %v3256, %v3246
  %v4447 = vpack.c.b16 %v3257, %v3247
  %v4448 = vpack.c.b16 %v3258, %v3248
  %v4449 = vpack.c.b16 %v3259, %v3249
  %v4450 = vpack.c.b16 %v3260, %v3250
  %v4451 = vpack.c.b16 %v3271, %v3261
  %v4452 = vpack.c.b16 %v3272, %v3262
  %v4453 = vpack.c.b16 %v3273, %v3263
  %v4454 = vpack.c.b16 %v3274, %v3264
  %v4455 = vpack.c.b16 %v3275, %v3265
  %v4456 = vpack.c.b16 %v3276, %v3266
  %v4457 = vpack.c.b16 %v3277, %v3267
  %v4458 = vpack.c.b16 %v3278, %v3268
  %v4459 = vpack.c.b16 %v3279, %v3269
  %v4460 = vpack.c.b16 %v3280, %v3270
  %v4461 = vpack.c.b16 %v3291, %v3281
  %v4462 = vpack.c.b16 %v3292, %v3282
  %v4463 = vpack.c.b16 %v3293, %v3283
  %v4464 = vpack.c.b16 %v3294, %v3284
  %v4465 = vpack.c.b16 %v3295, %v3285
  %v4466 = vpack.c.b16 %v3296, %v3286
  %v4467 = vpack.c.b16 %v3297, %v3287
  %v4468 = vpack.c.b16 %v3298, %v3288
  %v4469 = vpack.c.b16 %v3299, %v3289
  %v4470 = vpack.c.b16 %v3300, %v3290
  %v4471 = vpack.c.b16 %v3311, %v3301
  %v4472 = vpack.c.b16 %v3312, %v3302
  %v4473 = vpack.c.b16 %v3313, %v3303
  %v4474 = vpack.c.b16 %v3314, %v3304
  %v4475 = vpack.c.b16 %v3315, %v3305
  %v4476 = vpack.c.b16 %v3316, %v3306
  %v4477 = vpack.c.b16 %v3317, %v3307
  %v4478 = vpack.c.b16 %v3318, %v3308
  %v4479 = vpack.c.b16 %v3319, %v3309
  %v4480 = vpack.c.b16 %v3320, %v3310
  %v4481 = vpack.c.b16 %v3331, %v3321
  %v4482 = vpack.c.b16 %v3332, %v3322
  %v4483 = vpack.c.b16 %v3333, %v3323
  %v4484 = vpack.c.b16 %v3334, %v3324
  %v4485 = vpack.c.b16 %v3335, %v3325
  %v4486 = vpack.c.b16 %v3336, %v3326
  %v4487 = vpack.c.b16 %v3337, %v3327
  %v4488 = vpack.c.b16 %v3338, %v3328
  %v4489 = vpack.c.b16 %v3339, %v3329
  %v4490 = vpack.c.b16 %v3340, %v3330
  %v4491 = vpack.c.b16 %v3351, %v3341
  %v4492 = vpack.c.b16 %v3352, %v3342
  %v4493 = vpack.c.b16 %v3353, %v3343
  %v4494 = vpack.c.b16 %v3354, %v3344
  %v4495 = vpack.c.b16 %v3355, %v3345
  %v4496 = vpack.c.b16 %v3356, %v3346
  %v4497 = vpack.c.b16 %v3357, %v3347
  %v4498 = vpack.c.b16 %v3358, %v3348
  %v4499 = vpack.c.b16 %v3359, %v3349
  %v4500 = vpack.c.b16 %v3360, %v3350
  %v4501 = vpack.c.b16 %v3371, %v3361
  %v4502 = vpack.c.b16 %v3372, %v3362
  %v4503 = vpack.c.b16 %v3373, %v3363
  %v4504 = vpack.c.b16 %v3374, %v3364
  %v4505 = vpack.c.b16 %v3375, %v3365
  %v4506 = vpack.c.b16 %v3376, %v3366
  %v4507 = vpack.c.b16 %v3377, %v3367
  %v4508 = vpack.c.b16 %v3378, %v3368
  %v4509 = vpack.c.b16 %v3379, %v3369
  %v4510 = vpack.c.b16 %v3380, %v3370
  %v4511 = vpack.c.b16 %v3391, %v3381
  %v4512 = vpack.c.b16 %v3392, %v3382
  %v4513 = vpack.c.b16 %v3393, %v3383
  %v4514 = vpack.c.b16 %v3394, %v3384
  %v4515 = vpack.c.b16 %v3395, %v3385
  %v4516 = vpack.c.b16 %v3396, %v3386
  %v4517 = vpack.c.b16 %v3397, %v3387
  %v4518 = vpack.c.b16 %v3398, %v3388
  %v4519 = vpack.c.b16 %v3399, %v3389
  %v4520 = vpack.c.b16 %v3400, %v3390
  %v4521 = vpack.c.b16 %v3411, %v3401
  %v4522 = vpack.c.b16 %v3412, %v3402
  %v4523 = vpack.c.b16 %v3413, %v3403
  %v4524 = vpack.c.b16 %v3414, %v3404
  %v4525 = vpack.c.b16 %v3415, %v3405
  %v4526 = vpack.c.b16 %v3416, %v3406
  %v4527 = vpack.c.b16 %v3417, %v3407
  %v4528 = vpack.c.b16 %v3418, %v3408
  %v4529 = vpack.c.b16 %v3419, %v3409
  %v4530 = vpack.c.b16 %v3420, %v3410
  %v4531 = vpack.c.b16 %v3431, %v3421
  %v4532 = vpack.c.b16 %v3432, %v3422
  %v4533 = vpack.c.b16 %v3433, %v3423
  %v4534 = vpack.c.b16 %v3434, %v3424
  %v4535 = vpack.c.b16 %v3435, %v3425
  %v4536 = vpack.c.b16 %v3436, %v3426
  %v4537 = vpack.c.b16 %v3437, %v3427
  %v4538 = vpack.c.b16 %v3438, %v3428
  %v4539 = vpack.c.b16 %v3439, %v3429
  %v4540 = vpack.c.b16 %v3440, %v3430
  %v4541 = vpack.c.b16 %v3451, %v3441
  %v4542 = vpack.c.b16 %v3452, %v3442
  %v4543 = vpack.c.b16 %v3453, %v3443
  %v4544 = vpack.c.b16 %v3454, %v3444
  %v4545 = vpack.c.b16 %v3455, %v3445
  %v4546 = vpack.c.b16 %v3456, %v3446
  %v4547 = vpack.c.b16 %v3457, %v3447
  %v4548 = vpack.c.b16 %v3458, %v3448
  %v4549 = vpack.c.b16 %v3459, %v3449
  %v4550 = vpack.c.b16 %v3460, %v3450
  %v4551 = vpack.c.b16 %v3471, %v3461
  %v4552 = vpack.c.b16 %v3472, %v3462
  %v4553 = vpack.c.b16 %v3473, %v3463
  %v4554 = vpack.c.b16 %v3474, %v3464
  %v4555 = vpack.c.b16 %v3475, %v3465
  %v4556 = vpack.c.b16 %v3476, %v3466
  %v4557 = vpack.c.b16 %v3477, %v3467
  %v4558 = vpack.c.b16 %v3478, %v3468
  %v4559 = vpack.c.b16 %v3479, %v3469
  %v4560 = vpack.c.b16 %v3480, %v3470
  %v4561 = vpack.c.b16 %v3491, %v3481
  %v4562 = vpack.c.b16 %v3492, %v3482
  %v4563 = vpack.c.b16 %v3493, %v3483
  %v4564 = vpack.c.b16 %v3494, %v3484
  %v4565 = vpack.c.b16 %v3495, %v3485
  %v4566 = vpack.c.b16 %v3496, %v3486
  %v4567 = vpack.c.b16 %v3497, %v3487
  %v4568 = vpack.c.b16 %v3498, %v3488
  %v4569 = vpack.c.b16 %v3499, %v3489
  %v4570 = vpack.c.b16 %v3500, %v3490
  %v4571 = vpack.c.b16 %v3511, %v3501
  %v4572 = vpack.c.b16 %v3512, %v3502
  %v4573 = vpack.c.b16 %v3513, %v3503
  %v4574 = vpack.c.b16 %v3514, %v3504
  %v4575 = vpack.c.b16 %v3515, %v3505
  %v4576 = vpack.c.b16 %v3516, %v3506
  %v4577 = vpack.c.b16 %v3517, %v3507
  %v4578 = vpack.c.b16 %v3518, %v3508
  %v4579 = vpack.c.b16 %v3519, %v3509
  %v4580 = vpack.c.b16 %v3520, %v3510
  %v4581 = vpack.c.b16 %v3531, %v3521
  %v4582 = vpack.c.b16 %v3532, %v3522
  %v4583 = vpack.c.b16 %v3533, %v3523
  %v4584 = vpack.c.b16 %v3534, %v3524
  %v4585 = vpack.c.b16 %v3535, %v3525
  %v4586 = vpack.c.b16 %v3536, %v3526
  %v4587 = vpack.c.b16 %v3537, %v3527
  %v4588 = vpack.c.b16 %v3538, %v3528
  %v4589 = vpack.c.b16 %v3539, %v3529
  %v4590 = vpack.c.b16 %v3540, %v3530
  %v4591 = vpack.c.b16 %v3551, %v3541
  %v4592 = vpack.c.b16 %v3552, %v3542
  %v4593 = vpack.c.b16 %v3553, %v3543
  %v4594 = vpack.c.b16 %v3554, %v3544
  %v4595 = vpack.c.b16 %v3555, %v3545
  %v4596 = vpack.c.b16 %v3556, %v3546
  %v4597 = vpack.c.b16 %v3557, %v3547
  %v4598 = vpack.c.b16 %v3558, %v3548
  %v4599 = vpack.c.b16 %v3559, %v3549
  %v4600 = vpack.c.b16 %v3560, %v3550
  %v4601 = vpack.c.b16 %v3571, %v3561
  %v4602 = vpack.c.b16 %v3572, %v3562
  %v4603 = vpack.c.b16 %v3573, %v3563
  %v4604 = vpack.c.b16 %v3574, %v3564
  %v4605 = vpack.c.b16 %v3575, %v3565
  %v4606 = vpack.c.b16 %v3576, %v3566
  %v4607 = vpack.c.b16 %v3577, %v3567
  %v4608 = vpack.c.b16 %v3578, %v3568
  %v4609 = vpack.c.b16 %v3579, %v3569
  %v4610 = vpack.c.b16 %v3580, %v3570
  %v4611 = vpack.c.b16 %v3591, %v3581
  %v4612 = vpack.c.b16 %v3592, %v3582
  %v4613 = vpack.c.b16 %v3593, %v3583
  %v4614 = vpack.c.b16 %v3594, %v3584
  %v4615 = vpack.c.b16 %v3595, %v3585
  %v4616 = vpack.c.b16 %v3596, %v3586
  %v4617 = vpack.c.b16 %v3597, %v3587
  %v4618 = vpack.c.b16 %v3598, %v3588
  %v4619 = vpack.c.b16 %v3599, %v3589
  %v4620 = vpack.c.b16 %v3600, %v3590
  %v4621 = vpack.c.b16 %v3611, %v3601
  %v4622 = vpack.c.b16 %v3612, %v3602
  %v4623 = vpack.c.b16 %v3613, %v3603
  %v4624 = vpack.c.b16 %v3614, %v3604
  %v4625 = vpack.c.b16 %v3615, %v3605
  %v4626 = vpack.c.b16 %v3616, %v3606
  %v4627 = vpack.c.b16 %v3617, %v3607
  %v4628 = vpack.c.b16 %v3618, %v3608
  %v4629 = vpack.c.b16 %v3619, %v3609
  %v4630 = vpack.c.b16 %v3620, %v3610
  %v4631 = vpack.c.b16 %v3631, %v3621
  %v4632 = vpack.c.b16 %v3632, %v3622
  %v4633 = vpack.c.b16 %v3633, %v3623
  %v4634 = vpack.c.b16 %v3634, %v3624
  %v4635 = vpack.c.b16 %v3635, %v3625
  %v4636 = vpack.c.b16 %v3636, %v3626
  %v4637 = vpack.c.b16 %v3637, %v3627
  %v4638 = vpack.c.b16 %v3638, %v3628
  %v4639 = vpack.c.b16 %v3639, %v3629
  %v4640 = vpack.c.b16 %v3640, %v3630
  %v4641 = vpack.c.b16 %v3651, %v3641
  %v4642 = vpack.c.b16 %v3652, %v3642
  %v4643 = vpack.c.b16 %v3653, %v3643
  %v4644 = vpack.c.b16 %v3654, %v3644
  %v4645 = vpack.c.b16 %v3655, %v3645
  %v4646 = vpack.c.b16 %v3656, %v3646
  %v4647 = vpack.c.b16 %v3657, %v3647
  %v4648 = vpack.c.b16 %v3658, %v3648
  %v4649 = vpack.c.b16 %v3659, %v3649
  %v4650 = vpack.c.b16 %v3660, %v3650
  %v4651 = vpack.c.b16 %v3671, %v3661
  %v4652 = vpack.c.b16 %v3672, %v3662
  %v4653 = vpack.c.b16 %v3673, %v3663
  %v4654 = vpack.c.b16 %v3674, %v3664
  %v4655 = vpack.c.b16 %v3675, %v3665
  %v4656 = vpack.c.b16 %v3676, %v3666
  %v4657 = vpack.c.b16 %v3677, %v3667
  %v4658 = vpack.c.b16 %v3678, %v3668
  %v4659 = vpack.c.b16 %v3679, %v3669
  %v4660 = vpack.c.b16 %v3680, %v3670
  %v4661 = vpack.c.b16 %v3691, %v3681
  %v4662 = vpack.c.b16 %v3692, %v3682
  %v4663 = vpack.c.b16 %v3693, %v3683
  %v4664 = vpack.c.b16 %v3694, %v3684
  %v4665 = vpack.c.b16 %v3695, %v3685
  %v4666 = vpack.c.b16 %v3696, %v3686
  %v4667 = vpack.c.b16 %v3697, %v3687
  %v4668 = vpack.c.b16 %v3698, %v3688
  %v4669 = vpack.c.b16 %v3699, %v3689
  %v4670 = vpack.c.b16 %v3700, %v3690
  %v4671 = vpack.c.b16 %v3711, %v3701
  %v4672 = vpack.c.b16 %v3712, %v3702
  %v4673 = vpack.c.b16 %v3713, %v3703
  %v4674 = vpack.c.b16 %v3714, %v3704
  %v4675 = vpack.c.b16 %v3715, %v3705
  %v4676 = vpack.c.b16 %v3716, %v3706
  %v4677 = vpack.c.b16 %v3717, %v3707
  %v4678 = vpack.c.b16 %v3718, %v3708
  %v4679 = vpack.c.b16 %v3719, %v3709
  %v4680 = vpack.c.b16 %v3720, %v3710
  %v4681 = vpack.c.b16 %v3731, %v3721
  %v4682 = vpack.c.b16 %v3732, %v3722
  %v4683 = vpack.c.b16 %v3733, %v3723
  %v4684 = vpack.c.b16 %v3734, %v3724
  %v4685 = vpack.c.b16 %v3735, %v3725
  %v4686 = vpack.c.b16 %v3736, %v3726
  %v4687 = vpack.c.b16 %v3737, %v3727
  %v4688 = vpack.c.b16 %v3738, %v3728
  %v4689 = vpack.c.b16 %v3739, %v3729
  %v4690 = vpack.c.b16 %v3740, %v3730
  %v4691 = vpack.c.b16 %v3751, %v3741
  %v4692 = vpack.c.b16 %v3752, %v3742
  %v4693 = vpack.c.b16 %v3753, %v3743
  %v4694 = vpack.c.b16 %v3754, %v3744
  %v4695 = vpack.c.b16 %v3755, %v3745
  %v4696 = vpack.c.b16 %v3756, %v3746
  %v4697 = vpack.c.b16 %v3757, %v3747
  %v4698 = vpack.c.b16 %v3758, %v3748
  %v4699 = vpack.c.b16 %v3759, %v3749
  %v4700 = vpack.c.b16 %v3760, %v3750
  %v4701 = vpack.c.b16 %v3771, %v3761
  %v4702 = vpack.c.b16 %v3772, %v3762
  %v4703 = vpack.c.b16 %v3773, %v3763
  %v4704 = vpack.c.b16 %v3774, %v3764
  %v4705 = vpack.c.b16 %v3775, %v3765
  %v4706 = vpack.c.b16 %v3776, %v3766
  %v4707 = vpack.c.b16 %v3777, %v3767
  %v4708 = vpack.c.b16 %v3778, %v3768
  %v4709 = vpack.c.b16 %v3779, %v3769
  %v4710 = vpack.c.b16 %v3780, %v3770
  %v4711 = vpack.c.b16 %v3791, %v3781
  %v4712 = vpack.c.b16 %v3792, %v3782
  %v4713 = vpack.c.b16 %v3793, %v3783
  %v4714 = vpack.c.b16 %v3794, %v3784
  %v4715 = vpack.c.b16 %v3795, %v3785
  %v4716 = vpack.c.b16 %v3796, %v3786
  %v4717 = vpack.c.b16 %v3797, %v3787
  %v4718 = vpack.c.b16 %v3798, %v3788
  %v4719 = vpack.c.b16 %v3799, %v3789
  %v4720 = vpack.c.b16 %v3800, %v3790
  %v4721 = vpack.c.b16 %v3811, %v3801
  %v4722 = vpack.c.b16 %v3812, %v3802
  %v4723 = vpack.c.b16 %v3813, %v3803
  %v4724 = vpack.c.b16 %v3814, %v3804
  %v4725 = vpack.c.b16 %v3815, %v3805
  %v4726 = vpack.c.b16 %v3816, %v3806
  %v4727 = vpack.c.b16 %v3817, %v3807
  %v4728 = vpack.c.b16 %v3818, %v3808
  %v4729 = vpack.c.b16 %v3819, %v3809
  %v4730 = vpack.c.b16 %v3820, %v3810
  %v4731 = vpack.c.b16 %v3831, %v3821
  %v4732 = vpack.c.b16 %v3832, %v3822
  %v4733 = vpack.c.b16 %v3833, %v3823
  %v4734 = vpack.c.b16 %v3834, %v3824
  %v4735 = vpack.c.b16 %v3835, %v3825
  %v4736 = vpack.c.b16 %v3836, %v3826
  %v4737 = vpack.c.b16 %v3837, %v3827
  %v4738 = vpack.c.b16 %v3838, %v3828
  %v4739 = vpack.c.b16 %v3839, %v3829
  %v4740 = vpack.c.b16 %v3840, %v3830
  %v4741 = vpack.c.b16 %v3851, %v3841
  %v4742 = vpack.c.b16 %v3852, %v3842
  %v4743 = vpack.c.b16 %v3853, %v3843
  %v4744 = vpack.c.b16 %v3854, %v3844
  %v4745 = vpack.c.b16 %v3855, %v3845
  %v4746 = vpack.c.b16 %v3856, %v3846
  %v4747 = vpack.c.b16 %v3857, %v3847
  %v4748 = vpack.c.b16 %v3858, %v3848
  %v4749 = vpack.c.b16 %v3859, %v3849
  %v4750 = vpack.c.b16 %v3860, %v3850
  %v4751 = vpack.c.b16 %v3871, %v3861
  %v4752 = vpack.c.b16 %v3872, %v3862
  %v4753 = vpack.c.b16 %v3873, %v3863
  %v4754 = vpack.c.b16 %v3874, %v3864
  %v4755 = vpack.c.b16 %v3875, %v3865
  %v4756 = vpack.c.b16 %v3876, %v3866
  %v4757 = vpack.c.b16 %v3877, %v3867
  %v4758 = vpack.c.b16 %v3878, %v3868
  %v4759 = vpack.c.b16 %v3879, %v3869
  %v4760 = vpack.c.b16 %v3880, %v3870
  %v4761 = vpack.c.b16 %v3891, %v3881
  %v4762 = vpack.c.b16 %v3892, %v3882
  %v4763 = vpack.c.b16 %v3893, %v3883
  %v4764 = vpack.c.b16 %v3894, %v3884
  %v4765 = vpack.c.b16 %v3895, %v3885
  %v4766 = vpack.c.b16 %v3896, %v3886
  %v4767 = vpack.c.b16 %v3897, %v3887
  %v4768 = vpack.c.b16 %v3898, %v3888
  %v4769 = vpack.c.b16 %v3899, %v3889
  %v4770 = vpack.c.b16 %v3900, %v3890
  %v4771 = vpack.c.b16 %v3911, %v3901
  %v4772 = vpack.c.b16 %v3912, %v3902
  %v4773 = vpack.c.b16 %v3913, %v3903
  %v4774 = vpack.c.b16 %v3914, %v3904
  %v4775 = vpack.c.b16 %v3915, %v3905
  %v4776 = vpack.c.b16 %v3916, %v3906
  %v4777 = vpack.c.b16 %v3917, %v3907
  %v4778 = vpack.c.b16 %v3918, %v3908
  %v4779 = vpack.c.b16 %v3919, %v3909
  %v4780 = vpack.c.b16 %v3920, %v3910
  %v4781 = vpack.c.b16 %v3931, %v3921
  %v4782 = vpack.c.b16 %v3932, %v3922
  %v4783 = vpack.c.b16 %v3933, %v3923
  %v4784 = vpack.c.b16 %v3934, %v3924
  %v4785 = vpack.c.b16 %v3935, %v3925
  %v4786 = vpack.c.b16 %v3936, %v3926
  %v4787 = vpack.c.b16 %v3937, %v3927
  %v4788 = vpack.c.b16 %v3938, %v3928
  %v4789 = vpack.c.b16 %v3939, %v3929
  %v4790 = vpack.c.b16 %v3940, %v3930
  %v4791 = vpack.c.b16 %v3951, %v3941
  %v4792 = vpack.c.b16 %v3952, %v3942
  %v4793 = vpack.c.b16 %v3953, %v3943
  %v4794 = vpack.c.b16 %v3954, %v3944
  %v4795 = vpack.c.b16 %v3955, %v3945
  %v4796 = vpack.c.b16 %v3956, %v3946
  %v4797 = vpack.c.b16 %v3957, %v3947
  %v4798 = vpack.c.b16 %v3958, %v3948
  %v4799 = vpack.c.b16 %v3959, %v3949
  %v4800 = vpack.c.b16 %v3960, %v3950
  %v4801 = vpack.c.b16 %v3971, %v3961
  %v4802 = vpack.c.b16 %v3972, %v3962
  %v4803 = vpack.c.b16 %v3973, %v3963
  %v4804 = vpack.c.b16 %v3974, %v3964
  %v4805 = vpack.c.b16 %v3975, %v3965
  %v4806 = vpack.c.b16 %v3976, %v3966
  %v4807 = vpack.c.b16 %v3977, %v3967
  %v4808 = vpack.c.b16 %v3978, %v3968
  %v4809 = vpack.c.b16 %v3979, %v3969
  %v4810 = vpack.c.b16 %v3980, %v3970
  %v4811 = vpack.c.b16 %v3991, %v3981
  %v4812 = vpack.c.b16 %v3992, %v3982
  %v4813 = vpack.c.b16 %v3993, %v3983
  %v4814 = vpack.c.b16 %v3994, %v3984
  %v4815 = vpack.c.b16 %v3995, %v3985
  %v4816 = vpack.c.b16 %v3996, %v3986
  %v4817 = vpack.c.b16 %v3997, %v3987
  %v4818 = vpack.c.b16 %v3998, %v3988
  %v4819 = vpack.c.b16 %v3999, %v3989
  %v4820 = vpack.c.b16 %v4000, %v3990
  %v4821 = vpack.c.b16 %v4011, %v4001
  %v4822 = vpack.c.b16 %v4012, %v4002
  %v4823 = vpack.c.b16 %v4013, %v4003
  %v4824 = vpack.c.b16 %v4014, %v4004
  %v4825 = vpack.c.b16 %v4015, %v4005
  %v4826 = vpack.c.b16 %v4016, %v4006
  %v4827 = vpack.c.b16 %v4017, %v4007
  %v4828 = vpack.c.b16 %v4018, %v4008
  %v4829 = vpack.c.b16 %v4019, %v4009
  %v4830 = vpack.c.b16 %v4020, %v4010
  %v4831 = vpack.c.b16 %v4031, %v4021
  %v4832 = vpack.c.b16 %v4032, %v4022
  %v4833 = vpack.c.b16 %v4033, %v4023
  %v4834 = vpack.c.b16 %v4034, %v4024
  %v4835 = vpack.c.b16 %v4035, %v4025
  %v4836 = vpack.c.b16 %v4036, %v4026
  %v4837 = vpack.c.b16 %v4037, %v4027
  %v4838 = vpack.c.b16 %v4038, %v4028
  %v4839 = vpack.c.b16 %v4039, %v4029
  %v4840 = vpack.c.b16 %v4040, %v4030
  %5641 = vmatprep.subr.bf16.mxu0 %v4042
  %5642 = vmatpush1.bf16.msra.mxu0 %v4041
  %5643 = vmatprep.subr.bf16.mxu0 %v4052
  %5644 = vmatpush1.bf16.msra.mxu0 %v4051
  %5645 = vmatprep.subr.bf16.mxu0 %v4062
  %5646 = vmatpush1.bf16.msra.mxu0 %v4061
  %5647 = vmatprep.subr.bf16.mxu0 %v4072
  %5648 = vmatpush1.bf16.msra.mxu0 %v4071
  %5649 = vmatprep.subr.bf16.mxu0 %v4082
  %5650 = vmatpush1.bf16.msra.mxu0 %v4081
  %5651 = vmatprep.subr.bf16.mxu0 %v4092
  %5652 = vmatpush1.bf16.msra.mxu0 %v4091
  %5653 = vmatprep.subr.bf16.mxu0 %v4102
  %5654 = vmatpush1.bf16.msra.mxu0 %v4101
  %5655 = vmatprep.subr.bf16.mxu0 %v4112
  %5656 = vmatpush1.bf16.msra.mxu0 %v4111
  %5657 = vmatprep.subr.bf16.mxu0 %v4122
  %5658 = vmatpush1.bf16.msra.mxu0 %v4121
  %5659 = vmatprep.subr.bf16.mxu0 %v4132
  %5660 = vmatpush1.bf16.msra.mxu0 %v4131
  %5661 = vmatprep.subr.bf16.mxu0 %v4142
  %5662 = vmatpush1.bf16.msra.mxu0 %v4141
  %5663 = vmatprep.subr.bf16.mxu0 %v4152
  %5664 = vmatpush1.bf16.msra.mxu0 %v4151
  %5665 = vmatprep.subr.bf16.mxu0 %v4162
  %5666 = vmatpush1.bf16.msra.mxu0 %v4161
  %5667 = vmatprep.subr.bf16.mxu0 %v4172
  %5668 = vmatpush1.bf16.msra.mxu0 %v4171
  %5669 = vmatprep.subr.bf16.mxu0 %v4182
  %5670 = vmatpush1.bf16.msra.mxu0 %v4181
  %5671 = vmatprep.subr.bf16.mxu0 %v4192
  %5672 = vmatpush1.bf16.msra.mxu0 %v4191
  %5673 = vmatprep.mubr.bf16.mxu0 %v778
  %5674 = vmatmul.mubr.bf16.gmra.mrb[0].mxu0 %v777
  %v5675 = vpop.f32.mrb[0].mxu0
  %v5676 = vadd.f32 %v1594, %v5675
  %v5677 = vpop.f32.mrb[0].mxu0
  %v5678 = vadd.f32 %v1598, %v5677
  %v5679 = vpop.f32.mrb[0].mxu0
  %v5680 = vpop.f32.mrb[0].mxu0
  %5681 = vdwg.mxu0
  %5682 = vmatprep.subr.bf16.mxu0 %v4202
  %5683 = vmatpush1.bf16.msra.mxu0 %v4201
  %5684 = vmatprep.subr.bf16.mxu0 %v4212
  %5685 = vmatpush1.bf16.msra.mxu0 %v4211
  %5686 = vmatprep.subr.bf16.mxu0 %v4222
  %5687 = vmatpush1.bf16.msra.mxu0 %v4221
  %5688 = vmatprep.subr.bf16.mxu0 %v4232
  %5689 = vmatpush1.bf16.msra.mxu0 %v4231
  %5690 = vmatprep.subr.bf16.mxu0 %v4242
  %5691 = vmatpush1.bf16.msra.mxu0 %v4241
  %5692 = vmatprep.subr.bf16.mxu0 %v4252
  %5693 = vmatpush1.bf16.msra.mxu0 %v4251
  %5694 = vmatprep.subr.bf16.mxu0 %v4262
  %5695 = vmatpush1.bf16.msra.mxu0 %v4261
  %5696 = vmatprep.subr.bf16.mxu0 %v4272
  %5697 = vmatpush1.bf16.msra.mxu0 %v4271
  %5698 = vmatprep.subr.bf16.mxu0 %v4282
  %5699 = vmatpush1.bf16.msra.mxu0 %v4281
  %5700 = vmatprep.subr.bf16.mxu0 %v4292
  %5701 = vmatpush1.bf16.msra.mxu0 %v4291
  %5702 = vmatprep.subr.bf16.mxu0 %v4302
  %5703 = vmatpush1.bf16.msra.mxu0 %v4301
  %5704 = vmatprep.subr.bf16.mxu0 %v4312
  %5705 = vmatpush1.bf16.msra.mxu0 %v4311
  %5706 = vmatprep.subr.bf16.mxu0 %v4322
  %5707 = vmatpush1.bf16.msra.mxu0 %v4321
  %5708 = vmatprep.subr.bf16.mxu0 %v4332
  %5709 = vmatpush1.bf16.msra.mxu0 %v4331
  %5710 = vmatprep.subr.bf16.mxu0 %v4342
  %5711 = vmatpush1.bf16.msra.mxu0 %v4341
  %5712 = vmatprep.subr.bf16.mxu0 %v4352
  %5713 = vmatpush1.bf16.msra.mxu0 %v4351
  %5714 = vmatprep.mubr.bf16.mxu0 %v780
  %5715 = vmatmul.mubr.bf16.gmra.mrb[0].mxu0 %v779
  %v5716 = vpop.f32.mrb[0].mxu0
  %v5717 = vadd.f32 %v5676, %v5716
  %v5718 = vpop.f32.mrb[0].mxu0
  %v5719 = vadd.f32 %v5678, %v5718
  %v5720 = vpop.f32.mrb[0].mxu0
  %v5721 = vpop.f32.mrb[0].mxu0
  %5722 = vdwg.mxu0
  %5723 = vmatprep.subr.bf16.mxu0 %v4362
  %5724 = vmatpush1.bf16.msra.mxu0 %v4361
  %5725 = vmatprep.subr.bf16.mxu0 %v4372
  %5726 = vmatpush1.bf16.msra.mxu0 %v4371
  %5727 = vmatprep.subr.bf16.mxu0 %v4382
  %5728 = vmatpush1.bf16.msra.mxu0 %v4381
  %5729 = vmatprep.subr.bf16.mxu0 %v4392
  %5730 = vmatpush1.bf16.msra.mxu0 %v4391
  %5731 = vmatprep.subr.bf16.mxu0 %v4402
  %5732 = vmatpush1.bf16.msra.mxu0 %v4401
  %5733 = vmatprep.subr.bf16.mxu0 %v4412
  %5734 = vmatpush1.bf16.msra.mxu0 %v4411
  %5735 = vmatprep.subr.bf16.mxu0 %v4422
  %5736 = vmatpush1.bf16.msra.mxu0 %v4421
  %5737 = vmatprep.subr.bf16.mxu0 %v4432
  %5738 = vmatpush1.bf16.msra.mxu0 %v4431
  %5739 = vmatprep.subr.bf16.mxu0 %v4442
  %5740 = vmatpush1.bf16.msra.mxu0 %v4441
  %5741 = vmatprep.subr.bf16.mxu0 %v4452
  %5742 = vmatpush1.bf16.msra.mxu0 %v4451
  %5743 = vmatprep.subr.bf16.mxu0 %v4462
  %5744 = vmatpush1.bf16.msra.mxu0 %v4461
  %5745 = vmatprep.subr.bf16.mxu0 %v4472
  %5746 = vmatpush1.bf16.msra.mxu0 %v4471
  %5747 = vmatprep.subr.bf16.mxu0 %v4482
  %5748 = vmatpush1.bf16.msra.mxu0 %v4481
  %5749 = vmatprep.subr.bf16.mxu0 %v4492
  %5750 = vmatpush1.bf16.msra.mxu0 %v4491
  %5751 = vmatprep.subr.bf16.mxu0 %v4502
  %5752 = vmatpush1.bf16.msra.mxu0 %v4501
  %5753 = vmatprep.subr.bf16.mxu0 %v4512
  %5754 = vmatpush1.bf16.msra.mxu0 %v4511
  %5755 = vmatprep.mubr.bf16.mxu0 %v782
  %5756 = vmatmul.mubr.bf16.gmra.mrb[0].mxu0 %v781
  %v5757 = vpop.f32.mrb[0].mxu0
  %v5758 = vadd.f32 %v5717, %v5757
  %v5759 = vpop.f32.mrb[0].mxu0
  %v5760 = vadd.f32 %v5719, %v5759
  %v5761 = vpop.f32.mrb[0].mxu0
  %v5762 = vpop.f32.mrb[0].mxu0
  %5763 = vdwg.mxu0
  %5764 = vmatprep.subr.bf16.mxu0 %v4522
  %5765 = vmatpush1.bf16.msra.mxu0 %v4521
  %5766 = vmatprep.subr.bf16.mxu0 %v4532
  %5767 = vmatpush1.bf16.msra.mxu0 %v4531
  %5768 = vmatprep.subr.bf16.mxu0 %v4542
  %5769 = vmatpush1.bf16.msra.mxu0 %v4541
  %5770 = vmatprep.subr.bf16.mxu0 %v4552
  %5771 = vmatpush1.bf16.msra.mxu0 %v4551
  %5772 = vmatprep.subr.bf16.mxu0 %v4562
  %5773 = vmatpush1.bf16.msra.mxu0 %v4561
  %5774 = vmatprep.subr.bf16.mxu0 %v4572
  %5775 = vmatpush1.bf16.msra.mxu0 %v4571
  %5776 = vmatprep.subr.bf16.mxu0 %v4582
  %5777 = vmatpush1.bf16.msra.mxu0 %v4581
  %5778 = vmatprep.subr.bf16.mxu0 %v4592
  %5779 = vmatpush1.bf16.msra.mxu0 %v4591
  %5780 = vmatprep.subr.bf16.mxu0 %v4602
  %5781 = vmatpush1.bf16.msra.mxu0 %v4601
  %5782 = vmatprep.subr.bf16.mxu0 %v4612
  %5783 = vmatpush1.bf16.msra.mxu0 %v4611
  %5784 = vmatprep.subr.bf16.mxu0 %v4622
  %5785 = vmatpush1.bf16.msra.mxu0 %v4621
  %5786 = vmatprep.subr.bf16.mxu0 %v4632
  %5787 = vmatpush1.bf16.msra.mxu0 %v4631
  %5788 = vmatprep.subr.bf16.mxu0 %v4642
  %5789 = vmatpush1.bf16.msra.mxu0 %v4641
  %5790 = vmatprep.subr.bf16.mxu0 %v4652
  %5791 = vmatpush1.bf16.msra.mxu0 %v4651
  %5792 = vmatprep.subr.bf16.mxu0 %v4662
  %5793 = vmatpush1.bf16.msra.mxu0 %v4661
  %5794 = vmatprep.subr.bf16.mxu0 %v4672
  %5795 = vmatpush1.bf16.msra.mxu0 %v4671
  %5796 = vmatprep.mubr.bf16.mxu0 %v784
  %5797 = vmatmul.mubr.bf16.gmra.mrb[0].mxu0 %v783
  %v5798 = vpop.f32.mrb[0].mxu0
  %v5799 = vadd.f32 %v5758, %v5798
  %v5800 = vpop.f32.mrb[0].mxu0
  %v5801 = vadd.f32 %v5760, %v5800
  %v5802 = vpop.f32.mrb[0].mxu0
  %v5803 = vpop.f32.mrb[0].mxu0
  %5804 = vdwg.mxu0
  %5805 = vmatprep.subr.bf16.mxu0 %v4682
  %5806 = vmatpush1.bf16.msra.mxu0 %v4681
  %5807 = vmatprep.subr.bf16.mxu0 %v4692
  %5808 = vmatpush1.bf16.msra.mxu0 %v4691
  %5809 = vmatprep.subr.bf16.mxu0 %v4702
  %5810 = vmatpush1.bf16.msra.mxu0 %v4701
  %5811 = vmatprep.subr.bf16.mxu0 %v4712
  %5812 = vmatpush1.bf16.msra.mxu0 %v4711
  %5813 = vmatprep.subr.bf16.mxu0 %v4722
  %5814 = vmatpush1.bf16.msra.mxu0 %v4721
  %5815 = vmatprep.subr.bf16.mxu0 %v4732
  %5816 = vmatpush1.bf16.msra.mxu0 %v4731
  %5817 = vmatprep.subr.bf16.mxu0 %v4742
  %5818 = vmatpush1.bf16.msra.mxu0 %v4741
  %5819 = vmatprep.subr.bf16.mxu0 %v4752
  %5820 = vmatpush1.bf16.msra.mxu0 %v4751
  %5821 = vmatprep.subr.bf16.mxu0 %v4762
  %5822 = vmatpush1.bf16.msra.mxu0 %v4761
  %5823 = vmatprep.subr.bf16.mxu0 %v4772
  %5824 = vmatpush1.bf16.msra.mxu0 %v4771
  %5825 = vmatprep.subr.bf16.mxu0 %v4782
  %5826 = vmatpush1.bf16.msra.mxu0 %v4781
  %5827 = vmatprep.subr.bf16.mxu0 %v4792
  %5828 = vmatpush1.bf16.msra.mxu0 %v4791
  %5829 = vmatprep.subr.bf16.mxu0 %v4802
  %5830 = vmatpush1.bf16.msra.mxu0 %v4801
  %5831 = vmatprep.subr.bf16.mxu0 %v4812
  %5832 = vmatpush1.bf16.msra.mxu0 %v4811
  %5833 = vmatprep.subr.bf16.mxu0 %v4822
  %5834 = vmatpush1.bf16.msra.mxu0 %v4821
  %5835 = vmatprep.subr.bf16.mxu0 %v4832
  %5836 = vmatpush1.bf16.msra.mxu0 %v4831
  %5837 = vmatprep.mubr.bf16.mxu0 %v786
  %5838 = vmatmul.mubr.bf16.gmra.mrb[0].mxu0 %v785
  %v5839 = vpop.f32.mrb[0].mxu0
  %v5840 = vadd.f32 %v5799, %v5839
  %v5841 = vpop.f32.mrb[0].mxu0
  %v5842 = vadd.f32 %v5801, %v5841
  %v5843 = vpop.f32.mrb[0].mxu0
  %v5844 = vpop.f32.mrb[0].mxu0
  %5845 = vdwg.mxu0
  %5846 = vmatprep.subr.bf16.mxu0 %v4044
  %5847 = vmatpush1.bf16.msra.mxu0 %v4043
  %5848 = vmatprep.subr.bf16.mxu0 %v4054
  %5849 = vmatpush1.bf16.msra.mxu0 %v4053
  %5850 = vmatprep.subr.bf16.mxu0 %v4064
  %5851 = vmatpush1.bf16.msra.mxu0 %v4063
  %5852 = vmatprep.subr.bf16.mxu0 %v4074
  %5853 = vmatpush1.bf16.msra.mxu0 %v4073
  %5854 = vmatprep.subr.bf16.mxu0 %v4084
  %5855 = vmatpush1.bf16.msra.mxu0 %v4083
  %5856 = vmatprep.subr.bf16.mxu0 %v4094
  %5857 = vmatpush1.bf16.msra.mxu0 %v4093
  %5858 = vmatprep.subr.bf16.mxu0 %v4104
  %5859 = vmatpush1.bf16.msra.mxu0 %v4103
  %5860 = vmatprep.subr.bf16.mxu0 %v4114
  %5861 = vmatpush1.bf16.msra.mxu0 %v4113
  %5862 = vmatprep.subr.bf16.mxu0 %v4124
  %5863 = vmatpush1.bf16.msra.mxu0 %v4123
  %5864 = vmatprep.subr.bf16.mxu0 %v4134
  %5865 = vmatpush1.bf16.msra.mxu0 %v4133
  %5866 = vmatprep.subr.bf16.mxu0 %v4144
  %5867 = vmatpush1.bf16.msra.mxu0 %v4143
  %5868 = vmatprep.subr.bf16.mxu0 %v4154
  %5869 = vmatpush1.bf16.msra.mxu0 %v4153
  %5870 = vmatprep.subr.bf16.mxu0 %v4164
  %5871 = vmatpush1.bf16.msra.mxu0 %v4163
  %5872 = vmatprep.subr.bf16.mxu0 %v4174
  %5873 = vmatpush1.bf16.msra.mxu0 %v4173
  %5874 = vmatprep.subr.bf16.mxu0 %v4184
  %5875 = vmatpush1.bf16.msra.mxu0 %v4183
  %5876 = vmatprep.subr.bf16.mxu0 %v4194
  %5877 = vmatpush1.bf16.msra.mxu0 %v4193
  %5878 = vmatprep.mubr.bf16.mxu0 %v778
  %5879 = vmatmul.mubr.bf16.gmra.mrb[0].mxu0 %v777
  %v5880 = vpop.f32.mrb[0].mxu0
  %v5881 = vadd.f32 %v1602, %v5880
  %v5882 = vpop.f32.mrb[0].mxu0
  %v5883 = vadd.f32 %v1606, %v5882
  %v5884 = vpop.f32.mrb[0].mxu0
  %v5885 = vpop.f32.mrb[0].mxu0
  %5886 = vdwg.mxu0
  %5887 = vmatprep.subr.bf16.mxu0 %v4204
  %5888 = vmatpush1.bf16.msra.mxu0 %v4203
  %5889 = vmatprep.subr.bf16.mxu0 %v4214
  %5890 = vmatpush1.bf16.msra.mxu0 %v4213
  %5891 = vmatprep.subr.bf16.mxu0 %v4224
  %5892 = vmatpush1.bf16.msra.mxu0 %v4223
  %5893 = vmatprep.subr.bf16.mxu0 %v4234
  %5894 = vmatpush1.bf16.msra.mxu0 %v4233
  %5895 = vmatprep.subr.bf16.mxu0 %v4244
  %5896 = vmatpush1.bf16.msra.mxu0 %v4243
  %5897 = vmatprep.subr.bf16.mxu0 %v4254
  %5898 = vmatpush1.bf16.msra.mxu0 %v4253
  %5899 = vmatprep.subr.bf16.mxu0 %v4264
  %5900 = vmatpush1.bf16.msra.mxu0 %v4263
  %5901 = vmatprep.subr.bf16.mxu0 %v4274
  %5902 = vmatpush1.bf16.msra.mxu0 %v4273
  %5903 = vmatprep.subr.bf16.mxu0 %v4284
  %5904 = vmatpush1.bf16.msra.mxu0 %v4283
  %5905 = vmatprep.subr.bf16.mxu0 %v4294
  %5906 = vmatpush1.bf16.msra.mxu0 %v4293
  %5907 = vmatprep.subr.bf16.mxu0 %v4304
  %5908 = vmatpush1.bf16.msra.mxu0 %v4303
  %5909 = vmatprep.subr.bf16.mxu0 %v4314
  %5910 = vmatpush1.bf16.msra.mxu0 %v4313
  %5911 = vmatprep.subr.bf16.mxu0 %v4324
  %5912 = vmatpush1.bf16.msra.mxu0 %v4323
  %5913 = vmatprep.subr.bf16.mxu0 %v4334
  %5914 = vmatpush1.bf16.msra.mxu0 %v4333
  %5915 = vmatprep.subr.bf16.mxu0 %v4344
  %5916 = vmatpush1.bf16.msra.mxu0 %v4343
  %5917 = vmatprep.subr.bf16.mxu0 %v4354
  %5918 = vmatpush1.bf16.msra.mxu0 %v4353
  %5919 = vmatprep.mubr.bf16.mxu0 %v780
  %5920 = vmatmul.mubr.bf16.gmra.mrb[0].mxu0 %v779
  %v5921 = vpop.f32.mrb[0].mxu0
  %v5922 = vadd.f32 %v5881, %v5921
  %v5923 = vpop.f32.mrb[0].mxu0
  %v5924 = vadd.f32 %v5883, %v5923
  %v5925 = vpop.f32.mrb[0].mxu0
  %v5926 = vpop.f32.mrb[0].mxu0
  %5927 = vdwg.mxu0
  %5928 = vmatprep.subr.bf16.mxu0 %v4364
  %5929 = vmatpush1.bf16.msra.mxu0 %v4363
  %5930 = vmatprep.subr.bf16.mxu0 %v4374
  %5931 = vmatpush1.bf16.msra.mxu0 %v4373
  %5932 = vmatprep.subr.bf16.mxu0 %v4384
  %5933 = vmatpush1.bf16.msra.mxu0 %v4383
  %5934 = vmatprep.subr.bf16.mxu0 %v4394
  %5935 = vmatpush1.bf16.msra.mxu0 %v4393
  %5936 = vmatprep.subr.bf16.mxu0 %v4404
  %5937 = vmatpush1.bf16.msra.mxu0 %v4403
  %5938 = vmatprep.subr.bf16.mxu0 %v4414
  %5939 = vmatpush1.bf16.msra.mxu0 %v4413
  %5940 = vmatprep.subr.bf16.mxu0 %v4424
  %5941 = vmatpush1.bf16.msra.mxu0 %v4423
  %5942 = vmatprep.subr.bf16.mxu0 %v4434
  %5943 = vmatpush1.bf16.msra.mxu0 %v4433
  %5944 = vmatprep.subr.bf16.mxu0 %v4444
  %5945 = vmatpush1.bf16.msra.mxu0 %v4443
  %5946 = vmatprep.subr.bf16.mxu0 %v4454
  %5947 = vmatpush1.bf16.msra.mxu0 %v4453
  %5948 = vmatprep.subr.bf16.mxu0 %v4464
  %5949 = vmatpush1.bf16.msra.mxu0 %v4463
  %5950 = vmatprep.subr.bf16.mxu0 %v4474
  %5951 = vmatpush1.bf16.msra.mxu0 %v4473
  %5952 = vmatprep.subr.bf16.mxu0 %v4484
  %5953 = vmatpush1.bf16.msra.mxu0 %v4483
  %5954 = vmatprep.subr.bf16.mxu0 %v4494
  %5955 = vmatpush1.bf16.msra.mxu0 %v4493
  %5956 = vmatprep.subr.bf16.mxu0 %v4504
  %5957 = vmatpush1.bf16.msra.mxu0 %v4503
  %5958 = vmatprep.subr.bf16.mxu0 %v4514
  %5959 = vmatpush1.bf16.msra.mxu0 %v4513
  %5960 = vmatprep.mubr.bf16.mxu0 %v782
  %5961 = vmatmul.mubr.bf16.gmra.mrb[0].mxu0 %v781
  %v5962 = vpop.f32.mrb[0].mxu0
  %v5963 = vadd.f32 %v5922, %v5962
  %v5964 = vpop.f32.mrb[0].mxu0
  %v5965 = vadd.f32 %v5924, %v5964
  %v5966 = vpop.f32.mrb[0].mxu0
  %v5967 = vpop.f32.mrb[0].mxu0
  %5968 = vdwg.mxu0
  %5969 = vmatprep.subr.bf16.mxu0 %v4524
  %5970 = vmatpush1.bf16.msra.mxu0 %v4523
  %5971 = vmatprep.subr.bf16.mxu0 %v4534
  %5972 = vmatpush1.bf16.msra.mxu0 %v4533
  %5973 = vmatprep.subr.bf16.mxu0 %v4544
  %5974 = vmatpush1.bf16.msra.mxu0 %v4543
  %5975 = vmatprep.subr.bf16.mxu0 %v4554
  %5976 = vmatpush1.bf16.msra.mxu0 %v4553
  %5977 = vmatprep.subr.bf16.mxu0 %v4564
  %5978 = vmatpush1.bf16.msra.mxu0 %v4563
  %5979 = vmatprep.subr.bf16.mxu0 %v4574
  %5980 = vmatpush1.bf16.msra.mxu0 %v4573
  %5981 = vmatprep.subr.bf16.mxu0 %v4584
  %5982 = vmatpush1.bf16.msra.mxu0 %v4583
  %5983 = vmatprep.subr.bf16.mxu0 %v4594
  %5984 = vmatpush1.bf16.msra.mxu0 %v4593
  %5985 = vmatprep.subr.bf16.mxu0 %v4604
  %5986 = vmatpush1.bf16.msra.mxu0 %v4603
  %5987 = vmatprep.subr.bf16.mxu0 %v4614
  %5988 = vmatpush1.bf16.msra.mxu0 %v4613
  %5989 = vmatprep.subr.bf16.mxu0 %v4624
  %5990 = vmatpush1.bf16.msra.mxu0 %v4623
  %5991 = vmatprep.subr.bf16.mxu0 %v4634
  %5992 = vmatpush1.bf16.msra.mxu0 %v4633
  %5993 = vmatprep.subr.bf16.mxu0 %v4644
  %5994 = vmatpush1.bf16.msra.mxu0 %v4643
  %5995 = vmatprep.subr.bf16.mxu0 %v4654
  %5996 = vmatpush1.bf16.msra.mxu0 %v4653
  %5997 = vmatprep.subr.bf16.mxu0 %v4664
  %5998 = vmatpush1.bf16.msra.mxu0 %v4663
  %5999 = vmatprep.subr.bf16.mxu0 %v4674
  %6000 = vmatpush1.bf16.msra.mxu0 %v4673
  %6001 = vmatprep.mubr.bf16.mxu0 %v784
  %6002 = vmatmul.mubr.bf16.gmra.mrb[0].mxu0 %v783
  %v6003 = vpop.f32.mrb[0].mxu0
  %v6004 = vadd.f32 %v5963, %v6003
  %v6005 = vpop.f32.mrb[0].mxu0
  %v6006 = vadd.f32 %v5965, %v6005
  %v6007 = vpop.f32.mrb[0].mxu0
  %v6008 = vpop.f32.mrb[0].mxu0
  %6009 = vdwg.mxu0
  %6010 = vmatprep.subr.bf16.mxu0 %v4684
  %6011 = vmatpush1.bf16.msra.mxu0 %v4683
  %6012 = vmatprep.subr.bf16.mxu0 %v4694
  %6013 = vmatpush1.bf16.msra.mxu0 %v4693
  %6014 = vmatprep.subr.bf16.mxu0 %v4704
  %6015 = vmatpush1.bf16.msra.mxu0 %v4703
  %6016 = vmatprep.subr.bf16.mxu0 %v4714
  %6017 = vmatpush1.bf16.msra.mxu0 %v4713
  %6018 = vmatprep.subr.bf16.mxu0 %v4724
  %6019 = vmatpush1.bf16.msra.mxu0 %v4723
  %6020 = vmatprep.subr.bf16.mxu0 %v4734
  %6021 = vmatpush1.bf16.msra.mxu0 %v4733
  %6022 = vmatprep.subr.bf16.mxu0 %v4744
  %6023 = vmatpush1.bf16.msra.mxu0 %v4743
  %6024 = vmatprep.subr.bf16.mxu0 %v4754
  %6025 = vmatpush1.bf16.msra.mxu0 %v4753
  %6026 = vmatprep.subr.bf16.mxu0 %v4764
  %6027 = vmatpush1.bf16.msra.mxu0 %v4763
  %6028 = vmatprep.subr.bf16.mxu0 %v4774
  %6029 = vmatpush1.bf16.msra.mxu0 %v4773
  %6030 = vmatprep.subr.bf16.mxu0 %v4784
  %6031 = vmatpush1.bf16.msra.mxu0 %v4783
  %6032 = vmatprep.subr.bf16.mxu0 %v4794
  %6033 = vmatpush1.bf16.msra.mxu0 %v4793
  %6034 = vmatprep.subr.bf16.mxu0 %v4804
  %6035 = vmatpush1.bf16.msra.mxu0 %v4803
  %6036 = vmatprep.subr.bf16.mxu0 %v4814
  %6037 = vmatpush1.bf16.msra.mxu0 %v4813
  %6038 = vmatprep.subr.bf16.mxu0 %v4824
  %6039 = vmatpush1.bf16.msra.mxu0 %v4823
  %6040 = vmatprep.subr.bf16.mxu0 %v4834
  %6041 = vmatpush1.bf16.msra.mxu0 %v4833
  %6042 = vmatprep.mubr.bf16.mxu0 %v786
  %6043 = vmatmul.mubr.bf16.gmra.mrb[0].mxu0 %v785
  %v6044 = vpop.f32.mrb[0].mxu0
  %v6045 = vadd.f32 %v6004, %v6044
  %v6046 = vpop.f32.mrb[0].mxu0
  %v6047 = vadd.f32 %v6006, %v6046
  %v6048 = vpop.f32.mrb[0].mxu0
  %v6049 = vpop.f32.mrb[0].mxu0
  %6050 = vdwg.mxu0
  %6051 = vmatprep.subr.bf16.mxu0 %v4046
  %6052 = vmatpush1.bf16.msra.mxu0 %v4045
  %6053 = vmatprep.subr.bf16.mxu0 %v4056
  %6054 = vmatpush1.bf16.msra.mxu0 %v4055
  %6055 = vmatprep.subr.bf16.mxu0 %v4066
  %6056 = vmatpush1.bf16.msra.mxu0 %v4065
  %6057 = vmatprep.subr.bf16.mxu0 %v4076
  %6058 = vmatpush1.bf16.msra.mxu0 %v4075
  %6059 = vmatprep.subr.bf16.mxu0 %v4086
  %6060 = vmatpush1.bf16.msra.mxu0 %v4085
  %6061 = vmatprep.subr.bf16.mxu0 %v4096
  %6062 = vmatpush1.bf16.msra.mxu0 %v4095
  %6063 = vmatprep.subr.bf16.mxu0 %v4106
  %6064 = vmatpush1.bf16.msra.mxu0 %v4105
  %6065 = vmatprep.subr.bf16.mxu0 %v4116
  %6066 = vmatpush1.bf16.msra.mxu0 %v4115
  %6067 = vmatprep.subr.bf16.mxu0 %v4126
  %6068 = vmatpush1.bf16.msra.mxu0 %v4125
  %6069 = vmatprep.subr.bf16.mxu0 %v4136
  %6070 = vmatpush1.bf16.msra.mxu0 %v4135
  %6071 = vmatprep.subr.bf16.mxu0 %v4146
  %6072 = vmatpush1.bf16.msra.mxu0 %v4145
  %6073 = vmatprep.subr.bf16.mxu0 %v4156
  %6074 = vmatpush1.bf16.msra.mxu0 %v4155
  %6075 = vmatprep.subr.bf16.mxu0 %v4166
  %6076 = vmatpush1.bf16.msra.mxu0 %v4165
  %6077 = vmatprep.subr.bf16.mxu0 %v4176
  %6078 = vmatpush1.bf16.msra.mxu0 %v4175
  %6079 = vmatprep.subr.bf16.mxu0 %v4186
  %6080 = vmatpush1.bf16.msra.mxu0 %v4185
  %6081 = vmatprep.subr.bf16.mxu0 %v4196
  %6082 = vmatpush1.bf16.msra.mxu0 %v4195
  %6083 = vmatprep.mubr.bf16.mxu0 %v778
  %6084 = vmatmul.mubr.bf16.gmra.mrb[0].mxu0 %v777
  %v6085 = vpop.f32.mrb[0].mxu0
  %v6086 = vadd.f32 %v1610, %v6085
  %v6087 = vpop.f32.mrb[0].mxu0
  %v6088 = vadd.f32 %v1614, %v6087
  %v6089 = vpop.f32.mrb[0].mxu0
  %v6090 = vpop.f32.mrb[0].mxu0
  %6091 = vdwg.mxu0
  %6092 = vmatprep.subr.bf16.mxu0 %v4206
  %6093 = vmatpush1.bf16.msra.mxu0 %v4205
  %6094 = vmatprep.subr.bf16.mxu0 %v4216
  %6095 = vmatpush1.bf16.msra.mxu0 %v4215
  %6096 = vmatprep.subr.bf16.mxu0 %v4226
  %6097 = vmatpush1.bf16.msra.mxu0 %v4225
  %6098 = vmatprep.subr.bf16.mxu0 %v4236
  %6099 = vmatpush1.bf16.msra.mxu0 %v4235
  %6100 = vmatprep.subr.bf16.mxu0 %v4246
  %6101 = vmatpush1.bf16.msra.mxu0 %v4245
  %6102 = vmatprep.subr.bf16.mxu0 %v4256
  %6103 = vmatpush1.bf16.msra.mxu0 %v4255
  %6104 = vmatprep.subr.bf16.mxu0 %v4266
  %6105 = vmatpush1.bf16.msra.mxu0 %v4265
  %6106 = vmatprep.subr.bf16.mxu0 %v4276
  %6107 = vmatpush1.bf16.msra.mxu0 %v4275
  %6108 = vmatprep.subr.bf16.mxu0 %v4286
  %6109 = vmatpush1.bf16.msra.mxu0 %v4285
  %6110 = vmatprep.subr.bf16.mxu0 %v4296
  %6111 = vmatpush1.bf16.msra.mxu0 %v4295
  %6112 = vmatprep.subr.bf16.mxu0 %v4306
  %6113 = vmatpush1.bf16.msra.mxu0 %v4305
  %6114 = vmatprep.subr.bf16.mxu0 %v4316
  %6115 = vmatpush1.bf16.msra.mxu0 %v4315
  %6116 = vmatprep.subr.bf16.mxu0 %v4326
  %6117 = vmatpush1.bf16.msra.mxu0 %v4325
  %6118 = vmatprep.subr.bf16.mxu0 %v4336
  %6119 = vmatpush1.bf16.msra.mxu0 %v4335
  %6120 = vmatprep.subr.bf16.mxu0 %v4346
  %6121 = vmatpush1.bf16.msra.mxu0 %v4345
  %6122 = vmatprep.subr.bf16.mxu0 %v4356
  %6123 = vmatpush1.bf16.msra.mxu0 %v4355
  %6124 = vmatprep.mubr.bf16.mxu0 %v780
  %6125 = vmatmul.mubr.bf16.gmra.mrb[0].mxu0 %v779
  %v6126 = vpop.f32.mrb[0].mxu0
  %v6127 = vadd.f32 %v6086, %v6126
  %v6128 = vpop.f32.mrb[0].mxu0
  %v6129 = vadd.f32 %v6088, %v6128
  %v6130 = vpop.f32.mrb[0].mxu0
  %v6131 = vpop.f32.mrb[0].mxu0
  %6132 = vdwg.mxu0
  %6133 = vmatprep.subr.bf16.mxu0 %v4366
  %6134 = vmatpush1.bf16.msra.mxu0 %v4365
  %6135 = vmatprep.subr.bf16.mxu0 %v4376
  %6136 = vmatpush1.bf16.msra.mxu0 %v4375
  %6137 = vmatprep.subr.bf16.mxu0 %v4386
  %6138 = vmatpush1.bf16.msra.mxu0 %v4385
  %6139 = vmatprep.subr.bf16.mxu0 %v4396
  %6140 = vmatpush1.bf16.msra.mxu0 %v4395
  %6141 = vmatprep.subr.bf16.mxu0 %v4406
  %6142 = vmatpush1.bf16.msra.mxu0 %v4405
  %6143 = vmatprep.subr.bf16.mxu0 %v4416
  %6144 = vmatpush1.bf16.msra.mxu0 %v4415
  %6145 = vmatprep.subr.bf16.mxu0 %v4426
  %6146 = vmatpush1.bf16.msra.mxu0 %v4425
  %6147 = vmatprep.subr.bf16.mxu0 %v4436
  %6148 = vmatpush1.bf16.msra.mxu0 %v4435
  %6149 = vmatprep.subr.bf16.mxu0 %v4446
  %6150 = vmatpush1.bf16.msra.mxu0 %v4445
  %6151 = vmatprep.subr.bf16.mxu0 %v4456
  %6152 = vmatpush1.bf16.msra.mxu0 %v4455
  %6153 = vmatprep.subr.bf16.mxu0 %v4466
  %6154 = vmatpush1.bf16.msra.mxu0 %v4465
  %6155 = vmatprep.subr.bf16.mxu0 %v4476
  %6156 = vmatpush1.bf16.msra.mxu0 %v4475
  %6157 = vmatprep.subr.bf16.mxu0 %v4486
  %6158 = vmatpush1.bf16.msra.mxu0 %v4485
  %6159 = vmatprep.subr.bf16.mxu0 %v4496
  %6160 = vmatpush1.bf16.msra.mxu0 %v4495
  %6161 = vmatprep.subr.bf16.mxu0 %v4506
  %6162 = vmatpush1.bf16.msra.mxu0 %v4505
  %6163 = vmatprep.subr.bf16.mxu0 %v4516
  %6164 = vmatpush1.bf16.msra.mxu0 %v4515
  %6165 = vmatprep.mubr.bf16.mxu0 %v782
  %6166 = vmatmul.mubr.bf16.gmra.mrb[0].mxu0 %v781
  %v6167 = vpop.f32.mrb[0].mxu0
  %v6168 = vadd.f32 %v6127, %v6167
  %v6169 = vpop.f32.mrb[0].mxu0
  %v6170 = vadd.f32 %v6129, %v6169
  %v6171 = vpop.f32.mrb[0].mxu0
  %v6172 = vpop.f32.mrb[0].mxu0
  %6173 = vdwg.mxu0
  %6174 = vmatprep.subr.bf16.mxu0 %v4526
  %6175 = vmatpush1.bf16.msra.mxu0 %v4525
  %6176 = vmatprep.subr.bf16.mxu0 %v4536
  %6177 = vmatpush1.bf16.msra.mxu0 %v4535
  %6178 = vmatprep.subr.bf16.mxu0 %v4546
  %6179 = vmatpush1.bf16.msra.mxu0 %v4545
  %6180 = vmatprep.subr.bf16.mxu0 %v4556
  %6181 = vmatpush1.bf16.msra.mxu0 %v4555
  %6182 = vmatprep.subr.bf16.mxu0 %v4566
  %6183 = vmatpush1.bf16.msra.mxu0 %v4565
  %6184 = vmatprep.subr.bf16.mxu0 %v4576
  %6185 = vmatpush1.bf16.msra.mxu0 %v4575
  %6186 = vmatprep.subr.bf16.mxu0 %v4586
  %6187 = vmatpush1.bf16.msra.mxu0 %v4585
  %6188 = vmatprep.subr.bf16.mxu0 %v4596
  %6189 = vmatpush1.bf16.msra.mxu0 %v4595
  %6190 = vmatprep.subr.bf16.mxu0 %v4606
  %6191 = vmatpush1.bf16.msra.mxu0 %v4605
  %6192 = vmatprep.subr.bf16.mxu0 %v4616
  %6193 = vmatpush1.bf16.msra.mxu0 %v4615
  %6194 = vmatprep.subr.bf16.mxu0 %v4626
  %6195 = vmatpush1.bf16.msra.mxu0 %v4625
  %6196 = vmatprep.subr.bf16.mxu0 %v4636
  %6197 = vmatpush1.bf16.msra.mxu0 %v4635
  %6198 = vmatprep.subr.bf16.mxu0 %v4646
  %6199 = vmatpush1.bf16.msra.mxu0 %v4645
  %6200 = vmatprep.subr.bf16.mxu0 %v4656
  %6201 = vmatpush1.bf16.msra.mxu0 %v4655
  %6202 = vmatprep.subr.bf16.mxu0 %v4666
  %6203 = vmatpush1.bf16.msra.mxu0 %v4665
  %6204 = vmatprep.subr.bf16.mxu0 %v4676
  %6205 = vmatpush1.bf16.msra.mxu0 %v4675
  %6206 = vmatprep.mubr.bf16.mxu0 %v784
  %6207 = vmatmul.mubr.bf16.gmra.mrb[0].mxu0 %v783
  %v6208 = vpop.f32.mrb[0].mxu0
  %v6209 = vadd.f32 %v6168, %v6208
  %v6210 = vpop.f32.mrb[0].mxu0
  %v6211 = vadd.f32 %v6170, %v6210
  %v6212 = vpop.f32.mrb[0].mxu0
  %v6213 = vpop.f32.mrb[0].mxu0
  %6214 = vdwg.mxu0
  %6215 = vmatprep.subr.bf16.mxu0 %v4686
  %6216 = vmatpush1.bf16.msra.mxu0 %v4685
  %6217 = vmatprep.subr.bf16.mxu0 %v4696
  %6218 = vmatpush1.bf16.msra.mxu0 %v4695
  %6219 = vmatprep.subr.bf16.mxu0 %v4706
  %6220 = vmatpush1.bf16.msra.mxu0 %v4705
  %6221 = vmatprep.subr.bf16.mxu0 %v4716
  %6222 = vmatpush1.bf16.msra.mxu0 %v4715
  %6223 = vmatprep.subr.bf16.mxu0 %v4726
  %6224 = vmatpush1.bf16.msra.mxu0 %v4725
  %6225 = vmatprep.subr.bf16.mxu0 %v4736
  %6226 = vmatpush1.bf16.msra.mxu0 %v4735
  %6227 = vmatprep.subr.bf16.mxu0 %v4746
  %6228 = vmatpush1.bf16.msra.mxu0 %v4745
  %6229 = vmatprep.subr.bf16.mxu0 %v4756
  %6230 = vmatpush1.bf16.msra.mxu0 %v4755
  %6231 = vmatprep.subr.bf16.mxu0 %v4766
  %6232 = vmatpush1.bf16.msra.mxu0 %v4765
  %6233 = vmatprep.subr.bf16.mxu0 %v4776
  %6234 = vmatpush1.bf16.msra.mxu0 %v4775
  %6235 = vmatprep.subr.bf16.mxu0 %v4786
  %6236 = vmatpush1.bf16.msra.mxu0 %v4785
  %6237 = vmatprep.subr.bf16.mxu0 %v4796
  %6238 = vmatpush1.bf16.msra.mxu0 %v4795
  %6239 = vmatprep.subr.bf16.mxu0 %v4806
  %6240 = vmatpush1.bf16.msra.mxu0 %v4805
  %6241 = vmatprep.subr.bf16.mxu0 %v4816
  %6242 = vmatpush1.bf16.msra.mxu0 %v4815
  %6243 = vmatprep.subr.bf16.mxu0 %v4826
  %6244 = vmatpush1.bf16.msra.mxu0 %v4825
  %6245 = vmatprep.subr.bf16.mxu0 %v4836
  %6246 = vmatpush1.bf16.msra.mxu0 %v4835
  %6247 = vmatprep.mubr.bf16.mxu0 %v786
  %6248 = vmatmul.mubr.bf16.gmra.mrb[0].mxu0 %v785
  %v6249 = vpop.f32.mrb[0].mxu0
  %v6250 = vadd.f32 %v6209, %v6249
  %v6251 = vpop.f32.mrb[0].mxu0
  %v6252 = vadd.f32 %v6211, %v6251
  %v6253 = vpop.f32.mrb[0].mxu0
  %v6254 = vpop.f32.mrb[0].mxu0
  %6255 = vdwg.mxu0
  %6256 = vmatprep.subr.bf16.mxu0 %v4048
  %6257 = vmatpush1.bf16.msra.mxu0 %v4047
  %6258 = vmatprep.subr.bf16.mxu0 %v4058
  %6259 = vmatpush1.bf16.msra.mxu0 %v4057
  %6260 = vmatprep.subr.bf16.mxu0 %v4068
  %6261 = vmatpush1.bf16.msra.mxu0 %v4067
  %6262 = vmatprep.subr.bf16.mxu0 %v4078
  %6263 = vmatpush1.bf16.msra.mxu0 %v4077
  %6264 = vmatprep.subr.bf16.mxu0 %v4088
  %6265 = vmatpush1.bf16.msra.mxu0 %v4087
  %6266 = vmatprep.subr.bf16.mxu0 %v4098
  %6267 = vmatpush1.bf16.msra.mxu0 %v4097
  %6268 = vmatprep.subr.bf16.mxu0 %v4108
  %6269 = vmatpush1.bf16.msra.mxu0 %v4107
  %6270 = vmatprep.subr.bf16.mxu0 %v4118
  %6271 = vmatpush1.bf16.msra.mxu0 %v4117
  %6272 = vmatprep.subr.bf16.mxu0 %v4128
  %6273 = vmatpush1.bf16.msra.mxu0 %v4127
  %6274 = vmatprep.subr.bf16.mxu0 %v4138
  %6275 = vmatpush1.bf16.msra.mxu0 %v4137
  %6276 = vmatprep.subr.bf16.mxu0 %v4148
  %6277 = vmatpush1.bf16.msra.mxu0 %v4147
  %6278 = vmatprep.subr.bf16.mxu0 %v4158
  %6279 = vmatpush1.bf16.msra.mxu0 %v4157
  %6280 = vmatprep.subr.bf16.mxu0 %v4168
  %6281 = vmatpush1.bf16.msra.mxu0 %v4167
  %6282 = vmatprep.subr.bf16.mxu0 %v4178
  %6283 = vmatpush1.bf16.msra.mxu0 %v4177
  %6284 = vmatprep.subr.bf16.mxu0 %v4188
  %6285 = vmatpush1.bf16.msra.mxu0 %v4187
  %6286 = vmatprep.subr.bf16.mxu0 %v4198
  %6287 = vmatpush1.bf16.msra.mxu0 %v4197
  %6288 = vmatprep.mubr.bf16.mxu0 %v778
  %6289 = vmatmul.mubr.bf16.gmra.mrb[0].mxu0 %v777
  %v6290 = vpop.f32.mrb[0].mxu0
  %v6291 = vadd.f32 %v1618, %v6290
  %v6292 = vpop.f32.mrb[0].mxu0
  %v6293 = vadd.f32 %v1622, %v6292
  %v6294 = vpop.f32.mrb[0].mxu0
  %v6295 = vpop.f32.mrb[0].mxu0
  %6296 = vdwg.mxu0
  %6297 = vmatprep.subr.bf16.mxu0 %v4208
  %6298 = vmatpush1.bf16.msra.mxu0 %v4207
  %6299 = vmatprep.subr.bf16.mxu0 %v4218
  %6300 = vmatpush1.bf16.msra.mxu0 %v4217
  %6301 = vmatprep.subr.bf16.mxu0 %v4228
  %6302 = vmatpush1.bf16.msra.mxu0 %v4227
  %6303 = vmatprep.subr.bf16.mxu0 %v4238
  %6304 = vmatpush1.bf16.msra.mxu0 %v4237
  %6305 = vmatprep.subr.bf16.mxu0 %v4248
  %6306 = vmatpush1.bf16.msra.mxu0 %v4247
  %6307 = vmatprep.subr.bf16.mxu0 %v4258
  %6308 = vmatpush1.bf16.msra.mxu0 %v4257
  %6309 = vmatprep.subr.bf16.mxu0 %v4268
  %6310 = vmatpush1.bf16.msra.mxu0 %v4267
  %6311 = vmatprep.subr.bf16.mxu0 %v4278
  %6312 = vmatpush1.bf16.msra.mxu0 %v4277
  %6313 = vmatprep.subr.bf16.mxu0 %v4288
  %6314 = vmatpush1.bf16.msra.mxu0 %v4287
  %6315 = vmatprep.subr.bf16.mxu0 %v4298
  %6316 = vmatpush1.bf16.msra.mxu0 %v4297
  %6317 = vmatprep.subr.bf16.mxu0 %v4308
  %6318 = vmatpush1.bf16.msra.mxu0 %v4307
  %6319 = vmatprep.subr.bf16.mxu0 %v4318
  %6320 = vmatpush1.bf16.msra.mxu0 %v4317
  %6321 = vmatprep.subr.bf16.mxu0 %v4328
  %6322 = vmatpush1.bf16.msra.mxu0 %v4327
  %6323 = vmatprep.subr.bf16.mxu0 %v4338
  %6324 = vmatpush1.bf16.msra.mxu0 %v4337
  %6325 = vmatprep.subr.bf16.mxu0 %v4348
  %6326 = vmatpush1.bf16.msra.mxu0 %v4347
  %6327 = vmatprep.subr.bf16.mxu0 %v4358
  %6328 = vmatpush1.bf16.msra.mxu0 %v4357
  %6329 = vmatprep.mubr.bf16.mxu0 %v780
  %6330 = vmatmul.mubr.bf16.gmra.mrb[0].mxu0 %v779
  %v6331 = vpop.f32.mrb[0].mxu0
  %v6332 = vadd.f32 %v6291, %v6331
  %v6333 = vpop.f32.mrb[0].mxu0
  %v6334 = vadd.f32 %v6293, %v6333
  %v6335 = vpop.f32.mrb[0].mxu0
  %v6336 = vpop.f32.mrb[0].mxu0
  %6337 = vdwg.mxu0
  %6338 = vmatprep.subr.bf16.mxu0 %v4368
  %6339 = vmatpush1.bf16.msra.mxu0 %v4367
  %6340 = vmatprep.subr.bf16.mxu0 %v4378
  %6341 = vmatpush1.bf16.msra.mxu0 %v4377
  %6342 = vmatprep.subr.bf16.mxu0 %v4388
  %6343 = vmatpush1.bf16.msra.mxu0 %v4387
  %6344 = vmatprep.subr.bf16.mxu0 %v4398
  %6345 = vmatpush1.bf16.msra.mxu0 %v4397
  %6346 = vmatprep.subr.bf16.mxu0 %v4408
  %6347 = vmatpush1.bf16.msra.mxu0 %v4407
  %6348 = vmatprep.subr.bf16.mxu0 %v4418
  %6349 = vmatpush1.bf16.msra.mxu0 %v4417
  %6350 = vmatprep.subr.bf16.mxu0 %v4428
  %6351 = vmatpush1.bf16.msra.mxu0 %v4427
  %6352 = vmatprep.subr.bf16.mxu0 %v4438
  %6353 = vmatpush1.bf16.msra.mxu0 %v4437
  %6354 = vmatprep.subr.bf16.mxu0 %v4448
  %6355 = vmatpush1.bf16.msra.mxu0 %v4447
  %6356 = vmatprep.subr.bf16.mxu0 %v4458
  %6357 = vmatpush1.bf16.msra.mxu0 %v4457
  %6358 = vmatprep.subr.bf16.mxu0 %v4468
  %6359 = vmatpush1.bf16.msra.mxu0 %v4467
  %6360 = vmatprep.subr.bf16.mxu0 %v4478
  %6361 = vmatpush1.bf16.msra.mxu0 %v4477
  %6362 = vmatprep.subr.bf16.mxu0 %v4488
  %6363 = vmatpush1.bf16.msra.mxu0 %v4487
  %6364 = vmatprep.subr.bf16.mxu0 %v4498
  %6365 = vmatpush1.bf16.msra.mxu0 %v4497
  %6366 = vmatprep.subr.bf16.mxu0 %v4508
  %6367 = vmatpush1.bf16.msra.mxu0 %v4507
  %6368 = vmatprep.subr.bf16.mxu0 %v4518
  %6369 = vmatpush1.bf16.msra.mxu0 %v4517
  %6370 = vmatprep.mubr.bf16.mxu0 %v782
  %6371 = vmatmul.mubr.bf16.gmra.mrb[0].mxu0 %v781
  %v6372 = vpop.f32.mrb[0].mxu0
  %v6373 = vadd.f32 %v6332, %v6372
  %v6374 = vpop.f32.mrb[0].mxu0
  %v6375 = vadd.f32 %v6334, %v6374
  %v6376 = vpop.f32.mrb[0].mxu0
  %v6377 = vpop.f32.mrb[0].mxu0
  %6378 = vdwg.mxu0
  %6379 = vmatprep.subr.bf16.mxu0 %v4528
  %6380 = vmatpush1.bf16.msra.mxu0 %v4527
  %6381 = vmatprep.subr.bf16.mxu0 %v4538
  %6382 = vmatpush1.bf16.msra.mxu0 %v4537
  %6383 = vmatprep.subr.bf16.mxu0 %v4548
  %6384 = vmatpush1.bf16.msra.mxu0 %v4547
  %6385 = vmatprep.subr.bf16.mxu0 %v4558
  %6386 = vmatpush1.bf16.msra.mxu0 %v4557
  %6387 = vmatprep.subr.bf16.mxu0 %v4568
  %6388 = vmatpush1.bf16.msra.mxu0 %v4567
  %6389 = vmatprep.subr.bf16.mxu0 %v4578
  %6390 = vmatpush1.bf16.msra.mxu0 %v4577
  %6391 = vmatprep.subr.bf16.mxu0 %v4588
  %6392 = vmatpush1.bf16.msra.mxu0 %v4587
  %6393 = vmatprep.subr.bf16.mxu0 %v4598
  %6394 = vmatpush1.bf16.msra.mxu0 %v4597
  %6395 = vmatprep.subr.bf16.mxu0 %v4608
  %6396 = vmatpush1.bf16.msra.mxu0 %v4607
  %6397 = vmatprep.subr.bf16.mxu0 %v4618
  %6398 = vmatpush1.bf16.msra.mxu0 %v4617
  %6399 = vmatprep.subr.bf16.mxu0 %v4628
  %6400 = vmatpush1.bf16.msra.mxu0 %v4627
  %6401 = vmatprep.subr.bf16.mxu0 %v4638
  %6402 = vmatpush1.bf16.msra.mxu0 %v4637
  %6403 = vmatprep.subr.bf16.mxu0 %v4648
  %6404 = vmatpush1.bf16.msra.mxu0 %v4647
  %6405 = vmatprep.subr.bf16.mxu0 %v4658
  %6406 = vmatpush1.bf16.msra.mxu0 %v4657
  %6407 = vmatprep.subr.bf16.mxu0 %v4668
  %6408 = vmatpush1.bf16.msra.mxu0 %v4667
  %6409 = vmatprep.subr.bf16.mxu0 %v4678
  %6410 = vmatpush1.bf16.msra.mxu0 %v4677
  %6411 = vmatprep.mubr.bf16.mxu0 %v784
  %6412 = vmatmul.mubr.bf16.gmra.mrb[0].mxu0 %v783
  %v6413 = vpop.f32.mrb[0].mxu0
  %v6414 = vadd.f32 %v6373, %v6413
  %v6415 = vpop.f32.mrb[0].mxu0
  %v6416 = vadd.f32 %v6375, %v6415
  %v6417 = vpop.f32.mrb[0].mxu0
  %v6418 = vpop.f32.mrb[0].mxu0
  %6419 = vdwg.mxu0
  %6420 = vmatprep.subr.bf16.mxu0 %v4688
  %6421 = vmatpush1.bf16.msra.mxu0 %v4687
  %6422 = vmatprep.subr.bf16.mxu0 %v4698
  %6423 = vmatpush1.bf16.msra.mxu0 %v4697
  %6424 = vmatprep.subr.bf16.mxu0 %v4708
  %6425 = vmatpush1.bf16.msra.mxu0 %v4707
  %6426 = vmatprep.subr.bf16.mxu0 %v4718
  %6427 = vmatpush1.bf16.msra.mxu0 %v4717
  %6428 = vmatprep.subr.bf16.mxu0 %v4728
  %6429 = vmatpush1.bf16.msra.mxu0 %v4727
  %6430 = vmatprep.subr.bf16.mxu0 %v4738
  %6431 = vmatpush1.bf16.msra.mxu0 %v4737
  %6432 = vmatprep.subr.bf16.mxu0 %v4748
  %6433 = vmatpush1.bf16.msra.mxu0 %v4747
  %6434 = vmatprep.subr.bf16.mxu0 %v4758
  %6435 = vmatpush1.bf16.msra.mxu0 %v4757
  %6436 = vmatprep.subr.bf16.mxu0 %v4768
  %6437 = vmatpush1.bf16.msra.mxu0 %v4767
  %6438 = vmatprep.subr.bf16.mxu0 %v4778
  %6439 = vmatpush1.bf16.msra.mxu0 %v4777
  %6440 = vmatprep.subr.bf16.mxu0 %v4788
  %6441 = vmatpush1.bf16.msra.mxu0 %v4787
  %6442 = vmatprep.subr.bf16.mxu0 %v4798
  %6443 = vmatpush1.bf16.msra.mxu0 %v4797
  %6444 = vmatprep.subr.bf16.mxu0 %v4808
  %6445 = vmatpush1.bf16.msra.mxu0 %v4807
  %6446 = vmatprep.subr.bf16.mxu0 %v4818
  %6447 = vmatpush1.bf16.msra.mxu0 %v4817
  %6448 = vmatprep.subr.bf16.mxu0 %v4828
  %6449 = vmatpush1.bf16.msra.mxu0 %v4827
  %6450 = vmatprep.subr.bf16.mxu0 %v4838
  %6451 = vmatpush1.bf16.msra.mxu0 %v4837
  %6452 = vmatprep.mubr.bf16.mxu0 %v786
  %6453 = vmatmul.mubr.bf16.gmra.mrb[0].mxu0 %v785
  %v6454 = vpop.f32.mrb[0].mxu0
  %v6455 = vadd.f32 %v6414, %v6454
  %v6456 = vpop.f32.mrb[0].mxu0
  %v6457 = vadd.f32 %v6416, %v6456
  %v6458 = vpop.f32.mrb[0].mxu0
  %v6459 = vpop.f32.mrb[0].mxu0
  %6460 = vdwg.mxu0
  %6461 = vmatprep.subr.bf16.mxu0 %v4050
  %6462 = vmatpush1.bf16.msra.mxu0 %v4049
  %6463 = vmatprep.subr.bf16.mxu0 %v4060
  %6464 = vmatpush1.bf16.msra.mxu0 %v4059
  %6465 = vmatprep.subr.bf16.mxu0 %v4070
  %6466 = vmatpush1.bf16.msra.mxu0 %v4069
  %6467 = vmatprep.subr.bf16.mxu0 %v4080
  %6468 = vmatpush1.bf16.msra.mxu0 %v4079
  %6469 = vmatprep.subr.bf16.mxu0 %v4090
  %6470 = vmatpush1.bf16.msra.mxu0 %v4089
  %6471 = vmatprep.subr.bf16.mxu0 %v4100
  %6472 = vmatpush1.bf16.msra.mxu0 %v4099
  %6473 = vmatprep.subr.bf16.mxu0 %v4110
  %6474 = vmatpush1.bf16.msra.mxu0 %v4109
  %6475 = vmatprep.subr.bf16.mxu0 %v4120
  %6476 = vmatpush1.bf16.msra.mxu0 %v4119
  %6477 = vmatprep.subr.bf16.mxu0 %v4130
  %6478 = vmatpush1.bf16.msra.mxu0 %v4129
  %6479 = vmatprep.subr.bf16.mxu0 %v4140
  %6480 = vmatpush1.bf16.msra.mxu0 %v4139
  %6481 = vmatprep.subr.bf16.mxu0 %v4150
  %6482 = vmatpush1.bf16.msra.mxu0 %v4149
  %6483 = vmatprep.subr.bf16.mxu0 %v4160
  %6484 = vmatpush1.bf16.msra.mxu0 %v4159
  %6485 = vmatprep.subr.bf16.mxu0 %v4170
  %6486 = vmatpush1.bf16.msra.mxu0 %v4169
  %6487 = vmatprep.subr.bf16.mxu0 %v4180
  %6488 = vmatpush1.bf16.msra.mxu0 %v4179
  %6489 = vmatprep.subr.bf16.mxu0 %v4190
  %6490 = vmatpush1.bf16.msra.mxu0 %v4189
  %6491 = vmatprep.subr.bf16.mxu0 %v4200
  %6492 = vmatpush1.bf16.msra.mxu0 %v4199
  %6493 = vmatprep.mubr.bf16.mxu0 %v778
  %6494 = vmatmul.mubr.bf16.gmra.mrb[0].mxu0 %v777
  %v6495 = vpop.f32.mrb[0].mxu0
  %v6496 = vadd.f32 %v1626, %v6495
  %v6497 = vpop.f32.mrb[0].mxu0
  %v6498 = vadd.f32 %v1630, %v6497
  %v6499 = vpop.f32.mrb[0].mxu0
  %v6500 = vpop.f32.mrb[0].mxu0
  %6501 = vdwg.mxu0
  %6502 = vmatprep.subr.bf16.mxu0 %v4210
  %6503 = vmatpush1.bf16.msra.mxu0 %v4209
  %6504 = vmatprep.subr.bf16.mxu0 %v4220
  %6505 = vmatpush1.bf16.msra.mxu0 %v4219
  %6506 = vmatprep.subr.bf16.mxu0 %v4230
  %6507 = vmatpush1.bf16.msra.mxu0 %v4229
  %6508 = vmatprep.subr.bf16.mxu0 %v4240
  %6509 = vmatpush1.bf16.msra.mxu0 %v4239
  %6510 = vmatprep.subr.bf16.mxu0 %v4250
  %6511 = vmatpush1.bf16.msra.mxu0 %v4249
  %6512 = vmatprep.subr.bf16.mxu0 %v4260
  %6513 = vmatpush1.bf16.msra.mxu0 %v4259
  %6514 = vmatprep.subr.bf16.mxu0 %v4270
  %6515 = vmatpush1.bf16.msra.mxu0 %v4269
  %6516 = vmatprep.subr.bf16.mxu0 %v4280
  %6517 = vmatpush1.bf16.msra.mxu0 %v4279
  %6518 = vmatprep.subr.bf16.mxu0 %v4290
  %6519 = vmatpush1.bf16.msra.mxu0 %v4289
  %6520 = vmatprep.subr.bf16.mxu0 %v4300
  %6521 = vmatpush1.bf16.msra.mxu0 %v4299
  %6522 = vmatprep.subr.bf16.mxu0 %v4310
  %6523 = vmatpush1.bf16.msra.mxu0 %v4309
  %6524 = vmatprep.subr.bf16.mxu0 %v4320
  %6525 = vmatpush1.bf16.msra.mxu0 %v4319
  %6526 = vmatprep.subr.bf16.mxu0 %v4330
  %6527 = vmatpush1.bf16.msra.mxu0 %v4329
  %6528 = vmatprep.subr.bf16.mxu0 %v4340
  %6529 = vmatpush1.bf16.msra.mxu0 %v4339
  %6530 = vmatprep.subr.bf16.mxu0 %v4350
  %6531 = vmatpush1.bf16.msra.mxu0 %v4349
  %6532 = vmatprep.subr.bf16.mxu0 %v4360
  %6533 = vmatpush1.bf16.msra.mxu0 %v4359
  %6534 = vmatprep.mubr.bf16.mxu0 %v780
  %6535 = vmatmul.mubr.bf16.gmra.mrb[0].mxu0 %v779
  %v6536 = vpop.f32.mrb[0].mxu0
  %v6537 = vadd.f32 %v6496, %v6536
  %v6538 = vpop.f32.mrb[0].mxu0
  %v6539 = vadd.f32 %v6498, %v6538
  %v6540 = vpop.f32.mrb[0].mxu0
  %v6541 = vpop.f32.mrb[0].mxu0
  %6542 = vdwg.mxu0
  %6543 = vmatprep.subr.bf16.mxu0 %v4370
  %6544 = vmatpush1.bf16.msra.mxu0 %v4369
  %6545 = vmatprep.subr.bf16.mxu0 %v4380
  %6546 = vmatpush1.bf16.msra.mxu0 %v4379
  %6547 = vmatprep.subr.bf16.mxu0 %v4390
  %6548 = vmatpush1.bf16.msra.mxu0 %v4389
  %6549 = vmatprep.subr.bf16.mxu0 %v4400
  %6550 = vmatpush1.bf16.msra.mxu0 %v4399
  %6551 = vmatprep.subr.bf16.mxu0 %v4410
  %6552 = vmatpush1.bf16.msra.mxu0 %v4409
  %6553 = vmatprep.subr.bf16.mxu0 %v4420
  %6554 = vmatpush1.bf16.msra.mxu0 %v4419
  %6555 = vmatprep.subr.bf16.mxu0 %v4430
  %6556 = vmatpush1.bf16.msra.mxu0 %v4429
  %6557 = vmatprep.subr.bf16.mxu0 %v4440
  %6558 = vmatpush1.bf16.msra.mxu0 %v4439
  %6559 = vmatprep.subr.bf16.mxu0 %v4450
  %6560 = vmatpush1.bf16.msra.mxu0 %v4449
  %6561 = vmatprep.subr.bf16.mxu0 %v4460
  %6562 = vmatpush1.bf16.msra.mxu0 %v4459
  %6563 = vmatprep.subr.bf16.mxu0 %v4470
  %6564 = vmatpush1.bf16.msra.mxu0 %v4469
  %6565 = vmatprep.subr.bf16.mxu0 %v4480
  %6566 = vmatpush1.bf16.msra.mxu0 %v4479
  %6567 = vmatprep.subr.bf16.mxu0 %v4490
  %6568 = vmatpush1.bf16.msra.mxu0 %v4489
  %6569 = vmatprep.subr.bf16.mxu0 %v4500
  %6570 = vmatpush1.bf16.msra.mxu0 %v4499
  %6571 = vmatprep.subr.bf16.mxu0 %v4510
  %6572 = vmatpush1.bf16.msra.mxu0 %v4509
  %6573 = vmatprep.subr.bf16.mxu0 %v4520
  %6574 = vmatpush1.bf16.msra.mxu0 %v4519
  %6575 = vmatprep.mubr.bf16.mxu0 %v782
  %6576 = vmatmul.mubr.bf16.gmra.mrb[0].mxu0 %v781
  %v6577 = vpop.f32.mrb[0].mxu0
  %v6578 = vadd.f32 %v6537, %v6577
  %v6579 = vpop.f32.mrb[0].mxu0
  %v6580 = vadd.f32 %v6539, %v6579
  %v6581 = vpop.f32.mrb[0].mxu0
  %v6582 = vpop.f32.mrb[0].mxu0
  %6583 = vdwg.mxu0
  %6584 = vmatprep.subr.bf16.mxu0 %v4530
  %6585 = vmatpush1.bf16.msra.mxu0 %v4529
  %6586 = vmatprep.subr.bf16.mxu0 %v4540
  %6587 = vmatpush1.bf16.msra.mxu0 %v4539
  %6588 = vmatprep.subr.bf16.mxu0 %v4550
  %6589 = vmatpush1.bf16.msra.mxu0 %v4549
  %6590 = vmatprep.subr.bf16.mxu0 %v4560
  %6591 = vmatpush1.bf16.msra.mxu0 %v4559
  %6592 = vmatprep.subr.bf16.mxu0 %v4570
  %6593 = vmatpush1.bf16.msra.mxu0 %v4569
  %6594 = vmatprep.subr.bf16.mxu0 %v4580
  %6595 = vmatpush1.bf16.msra.mxu0 %v4579
  %6596 = vmatprep.subr.bf16.mxu0 %v4590
  %6597 = vmatpush1.bf16.msra.mxu0 %v4589
  %6598 = vmatprep.subr.bf16.mxu0 %v4600
  %6599 = vmatpush1.bf16.msra.mxu0 %v4599
  %6600 = vmatprep.subr.bf16.mxu0 %v4610
  %6601 = vmatpush1.bf16.msra.mxu0 %v4609
  %6602 = vmatprep.subr.bf16.mxu0 %v4620
  %6603 = vmatpush1.bf16.msra.mxu0 %v4619
  %6604 = vmatprep.subr.bf16.mxu0 %v4630
  %6605 = vmatpush1.bf16.msra.mxu0 %v4629
  %6606 = vmatprep.subr.bf16.mxu0 %v4640
  %6607 = vmatpush1.bf16.msra.mxu0 %v4639
  %6608 = vmatprep.subr.bf16.mxu0 %v4650
  %6609 = vmatpush1.bf16.msra.mxu0 %v4649
  %6610 = vmatprep.subr.bf16.mxu0 %v4660
  %6611 = vmatpush1.bf16.msra.mxu0 %v4659
  %6612 = vmatprep.subr.bf16.mxu0 %v4670
  %6613 = vmatpush1.bf16.msra.mxu0 %v4669
  %6614 = vmatprep.subr.bf16.mxu0 %v4680
  %6615 = vmatpush1.bf16.msra.mxu0 %v4679
  %6616 = vmatprep.mubr.bf16.mxu0 %v784
  %6617 = vmatmul.mubr.bf16.gmra.mrb[0].mxu0 %v783
  %v6618 = vpop.f32.mrb[0].mxu0
  %v6619 = vadd.f32 %v6578, %v6618
  %v6620 = vpop.f32.mrb[0].mxu0
  %v6621 = vadd.f32 %v6580, %v6620
  %v6622 = vpop.f32.mrb[0].mxu0
  %v6623 = vpop.f32.mrb[0].mxu0
  %6624 = vdwg.mxu0
  %6625 = vmatprep.subr.bf16.mxu0 %v4690
  %6626 = vmatpush1.bf16.msra.mxu0 %v4689
  %6627 = vmatprep.subr.bf16.mxu0 %v4700
  %6628 = vmatpush1.bf16.msra.mxu0 %v4699
  %6629 = vmatprep.subr.bf16.mxu0 %v4710
  %6630 = vmatpush1.bf16.msra.mxu0 %v4709
  %6631 = vmatprep.subr.bf16.mxu0 %v4720
  %6632 = vmatpush1.bf16.msra.mxu0 %v4719
  %6633 = vmatprep.subr.bf16.mxu0 %v4730
  %6634 = vmatpush1.bf16.msra.mxu0 %v4729
  %6635 = vmatprep.subr.bf16.mxu0 %v4740
  %6636 = vmatpush1.bf16.msra.mxu0 %v4739
  %6637 = vmatprep.subr.bf16.mxu0 %v4750
  %6638 = vmatpush1.bf16.msra.mxu0 %v4749
  %6639 = vmatprep.subr.bf16.mxu0 %v4760
  %6640 = vmatpush1.bf16.msra.mxu0 %v4759
  %6641 = vmatprep.subr.bf16.mxu0 %v4770
  %6642 = vmatpush1.bf16.msra.mxu0 %v4769
  %6643 = vmatprep.subr.bf16.mxu0 %v4780
  %6644 = vmatpush1.bf16.msra.mxu0 %v4779
  %6645 = vmatprep.subr.bf16.mxu0 %v4790
  %6646 = vmatpush1.bf16.msra.mxu0 %v4789
  %6647 = vmatprep.subr.bf16.mxu0 %v4800
  %6648 = vmatpush1.bf16.msra.mxu0 %v4799
  %6649 = vmatprep.subr.bf16.mxu0 %v4810
  %6650 = vmatpush1.bf16.msra.mxu0 %v4809
  %6651 = vmatprep.subr.bf16.mxu0 %v4820
  %6652 = vmatpush1.bf16.msra.mxu0 %v4819
  %6653 = vmatprep.subr.bf16.mxu0 %v4830
  %6654 = vmatpush1.bf16.msra.mxu0 %v4829
  %6655 = vmatprep.subr.bf16.mxu0 %v4840
  %6656 = vmatpush1.bf16.msra.mxu0 %v4839
  %6657 = vmatprep.mubr.bf16.mxu0 %v786
  %6658 = vmatmul.mubr.bf16.gmra.mrb[0].mxu0 %v785
  %v6659 = vpop.f32.mrb[0].mxu0
  %v6660 = vadd.f32 %v6619, %v6659
  %v6661 = vpop.f32.mrb[0].mxu0
  %v6662 = vadd.f32 %v6621, %v6661
  %v6663 = vpop.f32.mrb[0].mxu0
  %v6664 = vpop.f32.mrb[0].mxu0
  %6665 = vdwg.mxu0
  %v6666 = vmax.f32 %v5840, 0.0
  %v6667 = vmax.f32 %v5842, 0.0
  %v6668 = vmax.f32 %v6045, 0.0
  %v6669 = vmax.f32 %v6047, 0.0
  %v6670 = vmax.f32 %v6250, 0.0
  %v6671 = vmax.f32 %v6252, 0.0
  %v6672 = vmax.f32 %v6455, 0.0
  %v6673 = vmax.f32 %v6457, 0.0
  %v6674 = vmax.f32 %v6660, 0.0
  %v6675 = vmax.f32 %v6662, 0.0
  %v6676 = vpack.c.bf16 %v6666, %v6666
  %v6677 = vpack.c.bf16 %v6667, %v6667
  %v6678 = vpack.c.bf16 %v6668, %v6668
  %v6679 = vpack.c.bf16 %v6669, %v6669
  %v6680 = vpack.c.bf16 %v6670, %v6670
  %v6681 = vpack.c.bf16 %v6671, %v6671
  %v6682 = vpack.c.bf16 %v6672, %v6672
  %v6683 = vpack.c.bf16 %v6673, %v6673
  %v6684 = vpack.c.bf16 %v6674, %v6674
  %v6685 = vpack.c.bf16 %v6675, %v6675
  %v6686 = vld [vmem:[%s5] sm:$0xff]
  %v6687 = vld [vmem:[%s5 + $0x8] sm:$0xff]
  %v6688 = vld [vmem:[%s5 + $0x10] sm:$0xff]
  %v6689 = vld [vmem:[%s5 + $0x18] sm:$0xff]
  %v6690 = vld [vmem:[%s5 + $0x20] sm:$0xff]
  %v6691 = vld [vmem:[%s5 + $0x28] sm:$0xff]
  %v6692 = vld [vmem:[%s5 + $0x30] sm:$0xff]
  %v6693 = vld [vmem:[%s5 + $0x38] sm:$0xff]
  %v6694 = vld [vmem:[%s5 + $0x40] sm:$0xff]
  %v6695 = vld [vmem:[%s5 + $0x48] sm:$0xff]
  %v6696 = vld [vmem:[%s5 + $0x50] sm:$0xff]
  %v6697 = vld [vmem:[%s5 + $0x58] sm:$0xff]
  %v6698 = vld [vmem:[%s5 + $0x60] sm:$0xff]
  %v6699 = vld [vmem:[%s5 + $0x68] sm:$0xff]
  %v6700 = vld [vmem:[%s5 + $0x70] sm:$0xff]
  %v6701 = vld [vmem:[%s5 + $0x78] sm:$0xff]
  %v6702 = vld [vmem:[%s5 + $0x80] sm:$0xff]
  %v6703 = vld [vmem:[%s5 + $0x88] sm:$0xff]
  %v6704 = vld [vmem:[%s5 + $0x90] sm:$0xff]
  %v6705 = vld [vmem:[%s5 + $0x98] sm:$0xff]
  %v6706 = vld [vmem:[%s5 + $0xa0] sm:$0xff]
  %v6707 = vld [vmem:[%s5 + $0xa8] sm:$0xff]
  %v6708 = vld [vmem:[%s5 + $0xb0] sm:$0xff]
  %v6709 = vld [vmem:[%s5 + $0xb8] sm:$0xff]
  %v6710 = vld [vmem:[%s5 + $0xc0] sm:$0xff]
  %v6711 = vld [vmem:[%s5 + $0xc8] sm:$0xff]
  %v6712 = vld [vmem:[%s5 + $0xd0] sm:$0xff]
  %v6713 = vld [vmem:[%s5 + $0xd8] sm:$0xff]
  %v6714 = vld [vmem:[%s5 + $0xe0] sm:$0xff]
  %v6715 = vld [vmem:[%s5 + $0xe8] sm:$0xff]
  %v6716 = vld [vmem:[%s5 + $0xf0] sm:$0xff]
  %v6717 = vld [vmem:[%s5 + $0xf8] sm:$0xff]
  %v6718 = vld [vmem:[%s5 + $0x100] sm:$0xff]
  %v6719 = vld [vmem:[%s5 + $0x108] sm:$0xff]
  %v6720 = vld [vmem:[%s5 + $0x110] sm:$0xff]
  %v6721 = vld [vmem:[%s5 + $0x118] sm:$0xff]
  %v6722 = vld [vmem:[%s5 + $0x120] sm:$0xff]
  %v6723 = vld [vmem:[%s5 + $0x128] sm:$0xff]
  %v6724 = vld [vmem:[%s5 + $0x130] sm:$0xff]
  %v6725 = vld [vmem:[%s5 + $0x138] sm:$0xff]
  %v6726 = vld [vmem:[%s5 + $0x140] sm:$0xff]
  %v6727 = vld [vmem:[%s5 + $0x148] sm:$0xff]
  %v6728 = vld [vmem:[%s5 + $0x150] sm:$0xff]
  %v6729 = vld [vmem:[%s5 + $0x158] sm:$0xff]
  %v6730 = vld [vmem:[%s5 + $0x160] sm:$0xff]
  %v6731 = vld [vmem:[%s5 + $0x168] sm:$0xff]
  %v6732 = vld [vmem:[%s5 + $0x170] sm:$0xff]
  %v6733 = vld [vmem:[%s5 + $0x178] sm:$0xff]
  %v6734 = vld [vmem:[%s5 + $0x180] sm:$0xff]
  %v6735 = vld [vmem:[%s5 + $0x188] sm:$0xff]
  %v6736 = vld [vmem:[%s5 + $0x190] sm:$0xff]
  %v6737 = vld [vmem:[%s5 + $0x198] sm:$0xff]
  %v6738 = vld [vmem:[%s5 + $0x1a0] sm:$0xff]
  %v6739 = vld [vmem:[%s5 + $0x1a8] sm:$0xff]
  %v6740 = vld [vmem:[%s5 + $0x1b0] sm:$0xff]
  %v6741 = vld [vmem:[%s5 + $0x1b8] sm:$0xff]
  %v6742 = vld [vmem:[%s5 + $0x1c0] sm:$0xff]
  %v6743 = vld [vmem:[%s5 + $0x1c8] sm:$0xff]
  %v6744 = vld [vmem:[%s5 + $0x1d0] sm:$0xff]
  %v6745 = vld [vmem:[%s5 + $0x1d8] sm:$0xff]
  %v6746 = vld [vmem:[%s5 + $0x1e0] sm:$0xff]
  %v6747 = vld [vmem:[%s5 + $0x1e8] sm:$0xff]
  %v6748 = vld [vmem:[%s5 + $0x1f0] sm:$0xff]
  %v6749 = vld [vmem:[%s5 + $0x1f8] sm:$0xff]
  %v6750 = vld [vmem:[%s5 + $0x200] sm:$0xff]
  %v6751 = vld [vmem:[%s5 + $0x208] sm:$0xff]
  %v6752 = vld [vmem:[%s5 + $0x210] sm:$0xff]
  %v6753 = vld [vmem:[%s5 + $0x218] sm:$0xff]
  %v6754 = vld [vmem:[%s5 + $0x220] sm:$0xff]
  %v6755 = vld [vmem:[%s5 + $0x228] sm:$0xff]
  %v6756 = vld [vmem:[%s5 + $0x230] sm:$0xff]
  %v6757 = vld [vmem:[%s5 + $0x238] sm:$0xff]
  %v6758 = vld [vmem:[%s5 + $0x240] sm:$0xff]
  %v6759 = vld [vmem:[%s5 + $0x248] sm:$0xff]
  %v6760 = vld [vmem:[%s5 + $0x250] sm:$0xff]
  %v6761 = vld [vmem:[%s5 + $0x258] sm:$0xff]
  %v6762 = vld [vmem:[%s5 + $0x260] sm:$0xff]
  %v6763 = vld [vmem:[%s5 + $0x268] sm:$0xff]
  %v6764 = vld [vmem:[%s5 + $0x270] sm:$0xff]
  %v6765 = vld [vmem:[%s5 + $0x278] sm:$0xff]
  %v6766 = vld [vmem:[%s5 + $0x280] sm:$0xff]
  %v6767 = vld [vmem:[%s5 + $0x288] sm:$0xff]
  %v6768 = vld [vmem:[%s5 + $0x290] sm:$0xff]
  %v6769 = vld [vmem:[%s5 + $0x298] sm:$0xff]
  %v6770 = vld [vmem:[%s5 + $0x2a0] sm:$0xff]
  %v6771 = vld [vmem:[%s5 + $0x2a8] sm:$0xff]
  %v6772 = vld [vmem:[%s5 + $0x2b0] sm:$0xff]
  %v6773 = vld [vmem:[%s5 + $0x2b8] sm:$0xff]
  %v6774 = vld [vmem:[%s5 + $0x2c0] sm:$0xff]
  %v6775 = vld [vmem:[%s5 + $0x2c8] sm:$0xff]
  %v6776 = vld [vmem:[%s5 + $0x2d0] sm:$0xff]
  %v6777 = vld [vmem:[%s5 + $0x2d8] sm:$0xff]
  %v6778 = vld [vmem:[%s5 + $0x2e0] sm:$0xff]
  %v6779 = vld [vmem:[%s5 + $0x2e8] sm:$0xff]
  %v6780 = vld [vmem:[%s5 + $0x2f0] sm:$0xff]
  %v6781 = vld [vmem:[%s5 + $0x2f8] sm:$0xff]
  %v6782 = vld [vmem:[%s5 + $0x300] sm:$0xff]
  %v6783 = vld [vmem:[%s5 + $0x308] sm:$0xff]
  %v6784 = vld [vmem:[%s5 + $0x310] sm:$0xff]
  %v6785 = vld [vmem:[%s5 + $0x318] sm:$0xff]
  %v6786 = vld [vmem:[%s5 + $0x320] sm:$0xff]
  %v6787 = vld [vmem:[%s5 + $0x328] sm:$0xff]
  %v6788 = vld [vmem:[%s5 + $0x330] sm:$0xff]
  %v6789 = vld [vmem:[%s5 + $0x338] sm:$0xff]
  %v6790 = vld [vmem:[%s5 + $0x340] sm:$0xff]
  %v6791 = vld [vmem:[%s5 + $0x348] sm:$0xff]
  %v6792 = vld [vmem:[%s5 + $0x350] sm:$0xff]
  %v6793 = vld [vmem:[%s5 + $0x358] sm:$0xff]
  %v6794 = vld [vmem:[%s5 + $0x360] sm:$0xff]
  %v6795 = vld [vmem:[%s5 + $0x368] sm:$0xff]
  %v6796 = vld [vmem:[%s5 + $0x370] sm:$0xff]
  %v6797 = vld [vmem:[%s5 + $0x378] sm:$0xff]
  %v6798 = vld [vmem:[%s5 + $0x380] sm:$0xff]
  %v6799 = vld [vmem:[%s5 + $0x388] sm:$0xff]
  %v6800 = vld [vmem:[%s5 + $0x390] sm:$0xff]
  %v6801 = vld [vmem:[%s5 + $0x398] sm:$0xff]
  %v6802 = vld [vmem:[%s5 + $0x3a0] sm:$0xff]
  %v6803 = vld [vmem:[%s5 + $0x3a8] sm:$0xff]
  %v6804 = vld [vmem:[%s5 + $0x3b0] sm:$0xff]
  %v6805 = vld [vmem:[%s5 + $0x3b8] sm:$0xff]
  %v6806 = vld [vmem:[%s5 + $0x3c0] sm:$0xff]
  %v6807 = vld [vmem:[%s5 + $0x3c8] sm:$0xff]
  %v6808 = vld [vmem:[%s5 + $0x3d0] sm:$0xff]
  %v6809 = vld [vmem:[%s5 + $0x3d8] sm:$0xff]
  %v6810 = vld [vmem:[%s5 + $0x3e0] sm:$0xff]
  %v6811 = vld [vmem:[%s5 + $0x3e8] sm:$0xff]
  %v6812 = vld [vmem:[%s5 + $0x3f0] sm:$0xff]
  %v6813 = vld [vmem:[%s5 + $0x3f8] sm:$0xff]
  %v6814 = vld [vmem:[%s5 + $0x400] sm:$0xff]
  %v6815 = vld [vmem:[%s5 + $0x408] sm:$0xff]
  %v6816 = vld [vmem:[%s5 + $0x410] sm:$0xff]
  %v6817 = vld [vmem:[%s5 + $0x418] sm:$0xff]
  %v6818 = vld [vmem:[%s5 + $0x420] sm:$0xff]
  %v6819 = vld [vmem:[%s5 + $0x428] sm:$0xff]
  %v6820 = vld [vmem:[%s5 + $0x430] sm:$0xff]
  %v6821 = vld [vmem:[%s5 + $0x438] sm:$0xff]
  %v6822 = vld [vmem:[%s5 + $0x440] sm:$0xff]
  %v6823 = vld [vmem:[%s5 + $0x448] sm:$0xff]
  %v6824 = vld [vmem:[%s5 + $0x450] sm:$0xff]
  %v6825 = vld [vmem:[%s5 + $0x458] sm:$0xff]
  %v6826 = vld [vmem:[%s5 + $0x460] sm:$0xff]
  %v6827 = vld [vmem:[%s5 + $0x468] sm:$0xff]
  %v6828 = vld [vmem:[%s5 + $0x470] sm:$0xff]
  %v6829 = vld [vmem:[%s5 + $0x478] sm:$0xff]
  %v6830 = vld [vmem:[%s5 + $0x480] sm:$0xff]
  %v6831 = vld [vmem:[%s5 + $0x488] sm:$0xff]
  %v6832 = vld [vmem:[%s5 + $0x490] sm:$0xff]
  %v6833 = vld [vmem:[%s5 + $0x498] sm:$0xff]
  %v6834 = vld [vmem:[%s5 + $0x4a0] sm:$0xff]
  %v6835 = vld [vmem:[%s5 + $0x4a8] sm:$0xff]
  %v6836 = vld [vmem:[%s5 + $0x4b0] sm:$0xff]
  %v6837 = vld [vmem:[%s5 + $0x4b8] sm:$0xff]
  %v6838 = vld [vmem:[%s5 + $0x4c0] sm:$0xff]
  %v6839 = vld [vmem:[%s5 + $0x4c8] sm:$0xff]
  %v6840 = vld [vmem:[%s5 + $0x4d0] sm:$0xff]
  %v6841 = vld [vmem:[%s5 + $0x4d8] sm:$0xff]
  %v6842 = vld [vmem:[%s5 + $0x4e0] sm:$0xff]
  %v6843 = vld [vmem:[%s5 + $0x4e8] sm:$0xff]
  %v6844 = vld [vmem:[%s5 + $0x4f0] sm:$0xff]
  %v6845 = vld [vmem:[%s5 + $0x4f8] sm:$0xff]
  %v6846 = vld [vmem:[%s6] sm:$0x3]
  %v6848 = vlaneseq
  %v6849 = vshrl.u32 %v6848, 7
  %v6850 = vsub.s32 0, %v6849
  %v6851 = vrot.slane %v6846, %v6850
  %v6852 = vlaneseq
  %v6853 = vshrl.u32 %v6852, 7
  %v6854 = vsub.s32 1, %v6853
  %v6855 = vrot.slane %v6846, %v6854
  %v7018 = vunpack.c.l.b16 %v6686
  %v7019 = vunpack.c.h.b16 %v6686
  %v7020 = vunpack.c.l.b16 %v6687
  %v7021 = vunpack.c.h.b16 %v6687
  %v7022 = vunpack.c.l.b16 %v6688
  %v7023 = vunpack.c.h.b16 %v6688
  %v7024 = vunpack.c.l.b16 %v6689
  %v7025 = vunpack.c.h.b16 %v6689
  %v7026 = vunpack.c.l.b16 %v6690
  %v7027 = vunpack.c.h.b16 %v6690
  %v7028 = vunpack.c.l.b16 %v6691
  %v7029 = vunpack.c.h.b16 %v6691
  %v7030 = vunpack.c.l.b16 %v6692
  %v7031 = vunpack.c.h.b16 %v6692
  %v7032 = vunpack.c.l.b16 %v6693
  %v7033 = vunpack.c.h.b16 %v6693
  %v7034 = vunpack.c.l.b16 %v6694
  %v7035 = vunpack.c.h.b16 %v6694
  %v7036 = vunpack.c.l.b16 %v6695
  %v7037 = vunpack.c.h.b16 %v6695
  %v7038 = vunpack.c.l.b16 %v6696
  %v7039 = vunpack.c.h.b16 %v6696
  %v7040 = vunpack.c.l.b16 %v6697
  %v7041 = vunpack.c.h.b16 %v6697
  %v7042 = vunpack.c.l.b16 %v6698
  %v7043 = vunpack.c.h.b16 %v6698
  %v7044 = vunpack.c.l.b16 %v6699
  %v7045 = vunpack.c.h.b16 %v6699
  %v7046 = vunpack.c.l.b16 %v6700
  %v7047 = vunpack.c.h.b16 %v6700
  %v7048 = vunpack.c.l.b16 %v6701
  %v7049 = vunpack.c.h.b16 %v6701
  %v7050 = vunpack.c.l.b16 %v6702
  %v7051 = vunpack.c.h.b16 %v6702
  %v7052 = vunpack.c.l.b16 %v6703
  %v7053 = vunpack.c.h.b16 %v6703
  %v7054 = vunpack.c.l.b16 %v6704
  %v7055 = vunpack.c.h.b16 %v6704
  %v7056 = vunpack.c.l.b16 %v6705
  %v7057 = vunpack.c.h.b16 %v6705
  %v7058 = vunpack.c.l.b16 %v6706
  %v7059 = vunpack.c.h.b16 %v6706
  %v7060 = vunpack.c.l.b16 %v6707
  %v7061 = vunpack.c.h.b16 %v6707
  %v7062 = vunpack.c.l.b16 %v6708
  %v7063 = vunpack.c.h.b16 %v6708
  %v7064 = vunpack.c.l.b16 %v6709
  %v7065 = vunpack.c.h.b16 %v6709
  %v7066 = vunpack.c.l.b16 %v6710
  %v7067 = vunpack.c.h.b16 %v6710
  %v7068 = vunpack.c.l.b16 %v6711
  %v7069 = vunpack.c.h.b16 %v6711
  %v7070 = vunpack.c.l.b16 %v6712
  %v7071 = vunpack.c.h.b16 %v6712
  %v7072 = vunpack.c.l.b16 %v6713
  %v7073 = vunpack.c.h.b16 %v6713
  %v7074 = vunpack.c.l.b16 %v6714
  %v7075 = vunpack.c.h.b16 %v6714
  %v7076 = vunpack.c.l.b16 %v6715
  %v7077 = vunpack.c.h.b16 %v6715
  %v7078 = vunpack.c.l.b16 %v6716
  %v7079 = vunpack.c.h.b16 %v6716
  %v7080 = vunpack.c.l.b16 %v6717
  %v7081 = vunpack.c.h.b16 %v6717
  %v7082 = vunpack.c.l.b16 %v6718
  %v7083 = vunpack.c.h.b16 %v6718
  %v7084 = vunpack.c.l.b16 %v6719
  %v7085 = vunpack.c.h.b16 %v6719
  %v7086 = vunpack.c.l.b16 %v6720
  %v7087 = vunpack.c.h.b16 %v6720
  %v7088 = vunpack.c.l.b16 %v6721
  %v7089 = vunpack.c.h.b16 %v6721
  %v7090 = vunpack.c.l.b16 %v6722
  %v7091 = vunpack.c.h.b16 %v6722
  %v7092 = vunpack.c.l.b16 %v6723
  %v7093 = vunpack.c.h.b16 %v6723
  %v7094 = vunpack.c.l.b16 %v6724
  %v7095 = vunpack.c.h.b16 %v6724
  %v7096 = vunpack.c.l.b16 %v6725
  %v7097 = vunpack.c.h.b16 %v6725
  %v7098 = vunpack.c.l.b16 %v6726
  %v7099 = vunpack.c.h.b16 %v6726
  %v7100 = vunpack.c.l.b16 %v6727
  %v7101 = vunpack.c.h.b16 %v6727
  %v7102 = vunpack.c.l.b16 %v6728
  %v7103 = vunpack.c.h.b16 %v6728
  %v7104 = vunpack.c.l.b16 %v6729
  %v7105 = vunpack.c.h.b16 %v6729
  %v7106 = vunpack.c.l.b16 %v6730
  %v7107 = vunpack.c.h.b16 %v6730
  %v7108 = vunpack.c.l.b16 %v6731
  %v7109 = vunpack.c.h.b16 %v6731
  %v7110 = vunpack.c.l.b16 %v6732
  %v7111 = vunpack.c.h.b16 %v6732
  %v7112 = vunpack.c.l.b16 %v6733
  %v7113 = vunpack.c.h.b16 %v6733
  %v7114 = vunpack.c.l.b16 %v6734
  %v7115 = vunpack.c.h.b16 %v6734
  %v7116 = vunpack.c.l.b16 %v6735
  %v7117 = vunpack.c.h.b16 %v6735
  %v7118 = vunpack.c.l.b16 %v6736
  %v7119 = vunpack.c.h.b16 %v6736
  %v7120 = vunpack.c.l.b16 %v6737
  %v7121 = vunpack.c.h.b16 %v6737
  %v7122 = vunpack.c.l.b16 %v6738
  %v7123 = vunpack.c.h.b16 %v6738
  %v7124 = vunpack.c.l.b16 %v6739
  %v7125 = vunpack.c.h.b16 %v6739
  %v7126 = vunpack.c.l.b16 %v6740
  %v7127 = vunpack.c.h.b16 %v6740
  %v7128 = vunpack.c.l.b16 %v6741
  %v7129 = vunpack.c.h.b16 %v6741
  %v7130 = vunpack.c.l.b16 %v6742
  %v7131 = vunpack.c.h.b16 %v6742
  %v7132 = vunpack.c.l.b16 %v6743
  %v7133 = vunpack.c.h.b16 %v6743
  %v7134 = vunpack.c.l.b16 %v6744
  %v7135 = vunpack.c.h.b16 %v6744
  %v7136 = vunpack.c.l.b16 %v6745
  %v7137 = vunpack.c.h.b16 %v6745
  %v7138 = vunpack.c.l.b16 %v6746
  %v7139 = vunpack.c.h.b16 %v6746
  %v7140 = vunpack.c.l.b16 %v6747
  %v7141 = vunpack.c.h.b16 %v6747
  %v7142 = vunpack.c.l.b16 %v6748
  %v7143 = vunpack.c.h.b16 %v6748
  %v7144 = vunpack.c.l.b16 %v6749
  %v7145 = vunpack.c.h.b16 %v6749
  %v7146 = vunpack.c.l.b16 %v6750
  %v7147 = vunpack.c.h.b16 %v6750
  %v7148 = vunpack.c.l.b16 %v6751
  %v7149 = vunpack.c.h.b16 %v6751
  %v7150 = vunpack.c.l.b16 %v6752
  %v7151 = vunpack.c.h.b16 %v6752
  %v7152 = vunpack.c.l.b16 %v6753
  %v7153 = vunpack.c.h.b16 %v6753
  %v7154 = vunpack.c.l.b16 %v6754
  %v7155 = vunpack.c.h.b16 %v6754
  %v7156 = vunpack.c.l.b16 %v6755
  %v7157 = vunpack.c.h.b16 %v6755
  %v7158 = vunpack.c.l.b16 %v6756
  %v7159 = vunpack.c.h.b16 %v6756
  %v7160 = vunpack.c.l.b16 %v6757
  %v7161 = vunpack.c.h.b16 %v6757
  %v7162 = vunpack.c.l.b16 %v6758
  %v7163 = vunpack.c.h.b16 %v6758
  %v7164 = vunpack.c.l.b16 %v6759
  %v7165 = vunpack.c.h.b16 %v6759
  %v7166 = vunpack.c.l.b16 %v6760
  %v7167 = vunpack.c.h.b16 %v6760
  %v7168 = vunpack.c.l.b16 %v6761
  %v7169 = vunpack.c.h.b16 %v6761
  %v7170 = vunpack.c.l.b16 %v6762
  %v7171 = vunpack.c.h.b16 %v6762
  %v7172 = vunpack.c.l.b16 %v6763
  %v7173 = vunpack.c.h.b16 %v6763
  %v7174 = vunpack.c.l.b16 %v6764
  %v7175 = vunpack.c.h.b16 %v6764
  %v7176 = vunpack.c.l.b16 %v6765
  %v7177 = vunpack.c.h.b16 %v6765
  %v7178 = vunpack.c.l.b16 %v6766
  %v7179 = vunpack.c.h.b16 %v6766
  %v7180 = vunpack.c.l.b16 %v6767
  %v7181 = vunpack.c.h.b16 %v6767
  %v7182 = vunpack.c.l.b16 %v6768
  %v7183 = vunpack.c.h.b16 %v6768
  %v7184 = vunpack.c.l.b16 %v6769
  %v7185 = vunpack.c.h.b16 %v6769
  %v7186 = vunpack.c.l.b16 %v6770
  %v7187 = vunpack.c.h.b16 %v6770
  %v7188 = vunpack.c.l.b16 %v6771
  %v7189 = vunpack.c.h.b16 %v6771
  %v7190 = vunpack.c.l.b16 %v6772
  %v7191 = vunpack.c.h.b16 %v6772
  %v7192 = vunpack.c.l.b16 %v6773
  %v7193 = vunpack.c.h.b16 %v6773
  %v7194 = vunpack.c.l.b16 %v6774
  %v7195 = vunpack.c.h.b16 %v6774
  %v7196 = vunpack.c.l.b16 %v6775
  %v7197 = vunpack.c.h.b16 %v6775
  %v7198 = vunpack.c.l.b16 %v6776
  %v7199 = vunpack.c.h.b16 %v6776
  %v7200 = vunpack.c.l.b16 %v6777
  %v7201 = vunpack.c.h.b16 %v6777
  %v7202 = vunpack.c.l.b16 %v6778
  %v7203 = vunpack.c.h.b16 %v6778
  %v7204 = vunpack.c.l.b16 %v6779
  %v7205 = vunpack.c.h.b16 %v6779
  %v7206 = vunpack.c.l.b16 %v6780
  %v7207 = vunpack.c.h.b16 %v6780
  %v7208 = vunpack.c.l.b16 %v6781
  %v7209 = vunpack.c.h.b16 %v6781
  %v7210 = vunpack.c.l.b16 %v6782
  %v7211 = vunpack.c.h.b16 %v6782
  %v7212 = vunpack.c.l.b16 %v6783
  %v7213 = vunpack.c.h.b16 %v6783
  %v7214 = vunpack.c.l.b16 %v6784
  %v7215 = vunpack.c.h.b16 %v6784
  %v7216 = vunpack.c.l.b16 %v6785
  %v7217 = vunpack.c.h.b16 %v6785
  %v7218 = vunpack.c.l.b16 %v6786
  %v7219 = vunpack.c.h.b16 %v6786
  %v7220 = vunpack.c.l.b16 %v6787
  %v7221 = vunpack.c.h.b16 %v6787
  %v7222 = vunpack.c.l.b16 %v6788
  %v7223 = vunpack.c.h.b16 %v6788
  %v7224 = vunpack.c.l.b16 %v6789
  %v7225 = vunpack.c.h.b16 %v6789
  %v7226 = vunpack.c.l.b16 %v6790
  %v7227 = vunpack.c.h.b16 %v6790
  %v7228 = vunpack.c.l.b16 %v6791
  %v7229 = vunpack.c.h.b16 %v6791
  %v7230 = vunpack.c.l.b16 %v6792
  %v7231 = vunpack.c.h.b16 %v6792
  %v7232 = vunpack.c.l.b16 %v6793
  %v7233 = vunpack.c.h.b16 %v6793
  %v7234 = vunpack.c.l.b16 %v6794
  %v7235 = vunpack.c.h.b16 %v6794
  %v7236 = vunpack.c.l.b16 %v6795
  %v7237 = vunpack.c.h.b16 %v6795
  %v7238 = vunpack.c.l.b16 %v6796
  %v7239 = vunpack.c.h.b16 %v6796
  %v7240 = vunpack.c.l.b16 %v6797
  %v7241 = vunpack.c.h.b16 %v6797
  %v7242 = vunpack.c.l.b16 %v6798
  %v7243 = vunpack.c.h.b16 %v6798
  %v7244 = vunpack.c.l.b16 %v6799
  %v7245 = vunpack.c.h.b16 %v6799
  %v7246 = vunpack.c.l.b16 %v6800
  %v7247 = vunpack.c.h.b16 %v6800
  %v7248 = vunpack.c.l.b16 %v6801
  %v7249 = vunpack.c.h.b16 %v6801
  %v7250 = vunpack.c.l.b16 %v6802
  %v7251 = vunpack.c.h.b16 %v6802
  %v7252 = vunpack.c.l.b16 %v6803
  %v7253 = vunpack.c.h.b16 %v6803
  %v7254 = vunpack.c.l.b16 %v6804
  %v7255 = vunpack.c.h.b16 %v6804
  %v7256 = vunpack.c.l.b16 %v6805
  %v7257 = vunpack.c.h.b16 %v6805
  %v7258 = vunpack.c.l.b16 %v6806
  %v7259 = vunpack.c.h.b16 %v6806
  %v7260 = vunpack.c.l.b16 %v6807
  %v7261 = vunpack.c.h.b16 %v6807
  %v7262 = vunpack.c.l.b16 %v6808
  %v7263 = vunpack.c.h.b16 %v6808
  %v7264 = vunpack.c.l.b16 %v6809
  %v7265 = vunpack.c.h.b16 %v6809
  %v7266 = vunpack.c.l.b16 %v6810
  %v7267 = vunpack.c.h.b16 %v6810
  %v7268 = vunpack.c.l.b16 %v6811
  %v7269 = vunpack.c.h.b16 %v6811
  %v7270 = vunpack.c.l.b16 %v6812
  %v7271 = vunpack.c.h.b16 %v6812
  %v7272 = vunpack.c.l.b16 %v6813
  %v7273 = vunpack.c.h.b16 %v6813
  %v7274 = vunpack.c.l.b16 %v6814
  %v7275 = vunpack.c.h.b16 %v6814
  %v7276 = vunpack.c.l.b16 %v6815
  %v7277 = vunpack.c.h.b16 %v6815
  %v7278 = vunpack.c.l.b16 %v6816
  %v7279 = vunpack.c.h.b16 %v6816
  %v7280 = vunpack.c.l.b16 %v6817
  %v7281 = vunpack.c.h.b16 %v6817
  %v7282 = vunpack.c.l.b16 %v6818
  %v7283 = vunpack.c.h.b16 %v6818
  %v7284 = vunpack.c.l.b16 %v6819
  %v7285 = vunpack.c.h.b16 %v6819
  %v7286 = vunpack.c.l.b16 %v6820
  %v7287 = vunpack.c.h.b16 %v6820
  %v7288 = vunpack.c.l.b16 %v6821
  %v7289 = vunpack.c.h.b16 %v6821
  %v7290 = vunpack.c.l.b16 %v6822
  %v7291 = vunpack.c.h.b16 %v6822
  %v7292 = vunpack.c.l.b16 %v6823
  %v7293 = vunpack.c.h.b16 %v6823
  %v7294 = vunpack.c.l.b16 %v6824
  %v7295 = vunpack.c.h.b16 %v6824
  %v7296 = vunpack.c.l.b16 %v6825
  %v7297 = vunpack.c.h.b16 %v6825
  %v7298 = vunpack.c.l.b16 %v6826
  %v7299 = vunpack.c.h.b16 %v6826
  %v7300 = vunpack.c.l.b16 %v6827
  %v7301 = vunpack.c.h.b16 %v6827
  %v7302 = vunpack.c.l.b16 %v6828
  %v7303 = vunpack.c.h.b16 %v6828
  %v7304 = vunpack.c.l.b16 %v6829
  %v7305 = vunpack.c.h.b16 %v6829
  %v7306 = vunpack.c.l.b16 %v6830
  %v7307 = vunpack.c.h.b16 %v6830
  %v7308 = vunpack.c.l.b16 %v6831
  %v7309 = vunpack.c.h.b16 %v6831
  %v7310 = vunpack.c.l.b16 %v6832
  %v7311 = vunpack.c.h.b16 %v6832
  %v7312 = vunpack.c.l.b16 %v6833
  %v7313 = vunpack.c.h.b16 %v6833
  %v7314 = vunpack.c.l.b16 %v6834
  %v7315 = vunpack.c.h.b16 %v6834
  %v7316 = vunpack.c.l.b16 %v6835
  %v7317 = vunpack.c.h.b16 %v6835
  %v7318 = vunpack.c.l.b16 %v6836
  %v7319 = vunpack.c.h.b16 %v6836
  %v7320 = vunpack.c.l.b16 %v6837
  %v7321 = vunpack.c.h.b16 %v6837
  %v7322 = vunpack.c.l.b16 %v6838
  %v7323 = vunpack.c.h.b16 %v6838
  %v7324 = vunpack.c.l.b16 %v6839
  %v7325 = vunpack.c.h.b16 %v6839
  %v7326 = vunpack.c.l.b16 %v6840
  %v7327 = vunpack.c.h.b16 %v6840
  %v7328 = vunpack.c.l.b16 %v6841
  %v7329 = vunpack.c.h.b16 %v6841
  %v7330 = vunpack.c.l.b16 %v6842
  %v7331 = vunpack.c.h.b16 %v6842
  %v7332 = vunpack.c.l.b16 %v6843
  %v7333 = vunpack.c.h.b16 %v6843
  %v7334 = vunpack.c.l.b16 %v6844
  %v7335 = vunpack.c.h.b16 %v6844
  %v7336 = vunpack.c.l.b16 %v6845
  %v7337 = vunpack.c.h.b16 %v6845
  %v7338 = vpack.c.b16 %v7020, %v7018
  %v7339 = vpack.c.b16 %v7021, %v7019
  %v7340 = vpack.c.b16 %v7024, %v7022
  %v7341 = vpack.c.b16 %v7025, %v7023
  %v7342 = vpack.c.b16 %v7028, %v7026
  %v7343 = vpack.c.b16 %v7029, %v7027
  %v7344 = vpack.c.b16 %v7032, %v7030
  %v7345 = vpack.c.b16 %v7033, %v7031
  %v7346 = vpack.c.b16 %v7036, %v7034
  %v7347 = vpack.c.b16 %v7037, %v7035
  %v7348 = vpack.c.b16 %v7040, %v7038
  %v7349 = vpack.c.b16 %v7041, %v7039
  %v7350 = vpack.c.b16 %v7044, %v7042
  %v7351 = vpack.c.b16 %v7045, %v7043
  %v7352 = vpack.c.b16 %v7048, %v7046
  %v7353 = vpack.c.b16 %v7049, %v7047
  %v7354 = vpack.c.b16 %v7052, %v7050
  %v7355 = vpack.c.b16 %v7053, %v7051
  %v7356 = vpack.c.b16 %v7056, %v7054
  %v7357 = vpack.c.b16 %v7057, %v7055
  %v7358 = vpack.c.b16 %v7060, %v7058
  %v7359 = vpack.c.b16 %v7061, %v7059
  %v7360 = vpack.c.b16 %v7064, %v7062
  %v7361 = vpack.c.b16 %v7065, %v7063
  %v7362 = vpack.c.b16 %v7068, %v7066
  %v7363 = vpack.c.b16 %v7069, %v7067
  %v7364 = vpack.c.b16 %v7072, %v7070
  %v7365 = vpack.c.b16 %v7073, %v7071
  %v7366 = vpack.c.b16 %v7076, %v7074
  %v7367 = vpack.c.b16 %v7077, %v7075
  %v7368 = vpack.c.b16 %v7080, %v7078
  %v7369 = vpack.c.b16 %v7081, %v7079
  %v7370 = vpack.c.b16 %v7084, %v7082
  %v7371 = vpack.c.b16 %v7085, %v7083
  %v7372 = vpack.c.b16 %v7088, %v7086
  %v7373 = vpack.c.b16 %v7089, %v7087
  %v7374 = vpack.c.b16 %v7092, %v7090
  %v7375 = vpack.c.b16 %v7093, %v7091
  %v7376 = vpack.c.b16 %v7096, %v7094
  %v7377 = vpack.c.b16 %v7097, %v7095
  %v7378 = vpack.c.b16 %v7100, %v7098
  %v7379 = vpack.c.b16 %v7101, %v7099
  %v7380 = vpack.c.b16 %v7104, %v7102
  %v7381 = vpack.c.b16 %v7105, %v7103
  %v7382 = vpack.c.b16 %v7108, %v7106
  %v7383 = vpack.c.b16 %v7109, %v7107
  %v7384 = vpack.c.b16 %v7112, %v7110
  %v7385 = vpack.c.b16 %v7113, %v7111
  %v7386 = vpack.c.b16 %v7116, %v7114
  %v7387 = vpack.c.b16 %v7117, %v7115
  %v7388 = vpack.c.b16 %v7120, %v7118
  %v7389 = vpack.c.b16 %v7121, %v7119
  %v7390 = vpack.c.b16 %v7124, %v7122
  %v7391 = vpack.c.b16 %v7125, %v7123
  %v7392 = vpack.c.b16 %v7128, %v7126
  %v7393 = vpack.c.b16 %v7129, %v7127
  %v7394 = vpack.c.b16 %v7132, %v7130
  %v7395 = vpack.c.b16 %v7133, %v7131
  %v7396 = vpack.c.b16 %v7136, %v7134
  %v7397 = vpack.c.b16 %v7137, %v7135
  %v7398 = vpack.c.b16 %v7140, %v7138
  %v7399 = vpack.c.b16 %v7141, %v7139
  %v7400 = vpack.c.b16 %v7144, %v7142
  %v7401 = vpack.c.b16 %v7145, %v7143
  %v7402 = vpack.c.b16 %v7148, %v7146
  %v7403 = vpack.c.b16 %v7149, %v7147
  %v7404 = vpack.c.b16 %v7152, %v7150
  %v7405 = vpack.c.b16 %v7153, %v7151
  %v7406 = vpack.c.b16 %v7156, %v7154
  %v7407 = vpack.c.b16 %v7157, %v7155
  %v7408 = vpack.c.b16 %v7160, %v7158
  %v7409 = vpack.c.b16 %v7161, %v7159
  %v7410 = vpack.c.b16 %v7164, %v7162
  %v7411 = vpack.c.b16 %v7165, %v7163
  %v7412 = vpack.c.b16 %v7168, %v7166
  %v7413 = vpack.c.b16 %v7169, %v7167
  %v7414 = vpack.c.b16 %v7172, %v7170
  %v7415 = vpack.c.b16 %v7173, %v7171
  %v7416 = vpack.c.b16 %v7176, %v7174
  %v7417 = vpack.c.b16 %v7177, %v7175
  %v7418 = vpack.c.b16 %v7180, %v7178
  %v7419 = vpack.c.b16 %v7181, %v7179
  %v7420 = vpack.c.b16 %v7184, %v7182
  %v7421 = vpack.c.b16 %v7185, %v7183
  %v7422 = vpack.c.b16 %v7188, %v7186
  %v7423 = vpack.c.b16 %v7189, %v7187
  %v7424 = vpack.c.b16 %v7192, %v7190
  %v7425 = vpack.c.b16 %v7193, %v7191
  %v7426 = vpack.c.b16 %v7196, %v7194
  %v7427 = vpack.c.b16 %v7197, %v7195
  %v7428 = vpack.c.b16 %v7200, %v7198
  %v7429 = vpack.c.b16 %v7201, %v7199
  %v7430 = vpack.c.b16 %v7204, %v7202
  %v7431 = vpack.c.b16 %v7205, %v7203
  %v7432 = vpack.c.b16 %v7208, %v7206
  %v7433 = vpack.c.b16 %v7209, %v7207
  %v7434 = vpack.c.b16 %v7212, %v7210
  %v7435 = vpack.c.b16 %v7213, %v7211
  %v7436 = vpack.c.b16 %v7216, %v7214
  %v7437 = vpack.c.b16 %v7217, %v7215
  %v7438 = vpack.c.b16 %v7220, %v7218
  %v7439 = vpack.c.b16 %v7221, %v7219
  %v7440 = vpack.c.b16 %v7224, %v7222
  %v7441 = vpack.c.b16 %v7225, %v7223
  %v7442 = vpack.c.b16 %v7228, %v7226
  %v7443 = vpack.c.b16 %v7229, %v7227
  %v7444 = vpack.c.b16 %v7232, %v7230
  %v7445 = vpack.c.b16 %v7233, %v7231
  %v7446 = vpack.c.b16 %v7236, %v7234
  %v7447 = vpack.c.b16 %v7237, %v7235
  %v7448 = vpack.c.b16 %v7240, %v7238
  %v7449 = vpack.c.b16 %v7241, %v7239
  %v7450 = vpack.c.b16 %v7244, %v7242
  %v7451 = vpack.c.b16 %v7245, %v7243
  %v7452 = vpack.c.b16 %v7248, %v7246
  %v7453 = vpack.c.b16 %v7249, %v7247
  %v7454 = vpack.c.b16 %v7252, %v7250
  %v7455 = vpack.c.b16 %v7253, %v7251
  %v7456 = vpack.c.b16 %v7256, %v7254
  %v7457 = vpack.c.b16 %v7257, %v7255
  %v7458 = vpack.c.b16 %v7260, %v7258
  %v7459 = vpack.c.b16 %v7261, %v7259
  %v7460 = vpack.c.b16 %v7264, %v7262
  %v7461 = vpack.c.b16 %v7265, %v7263
  %v7462 = vpack.c.b16 %v7268, %v7266
  %v7463 = vpack.c.b16 %v7269, %v7267
  %v7464 = vpack.c.b16 %v7272, %v7270
  %v7465 = vpack.c.b16 %v7273, %v7271
  %v7466 = vpack.c.b16 %v7276, %v7274
  %v7467 = vpack.c.b16 %v7277, %v7275
  %v7468 = vpack.c.b16 %v7280, %v7278
  %v7469 = vpack.c.b16 %v7281, %v7279
  %v7470 = vpack.c.b16 %v7284, %v7282
  %v7471 = vpack.c.b16 %v7285, %v7283
  %v7472 = vpack.c.b16 %v7288, %v7286
  %v7473 = vpack.c.b16 %v7289, %v7287
  %v7474 = vpack.c.b16 %v7292, %v7290
  %v7475 = vpack.c.b16 %v7293, %v7291
  %v7476 = vpack.c.b16 %v7296, %v7294
  %v7477 = vpack.c.b16 %v7297, %v7295
  %v7478 = vpack.c.b16 %v7300, %v7298
  %v7479 = vpack.c.b16 %v7301, %v7299
  %v7480 = vpack.c.b16 %v7304, %v7302
  %v7481 = vpack.c.b16 %v7305, %v7303
  %v7482 = vpack.c.b16 %v7308, %v7306
  %v7483 = vpack.c.b16 %v7309, %v7307
  %v7484 = vpack.c.b16 %v7312, %v7310
  %v7485 = vpack.c.b16 %v7313, %v7311
  %v7486 = vpack.c.b16 %v7316, %v7314
  %v7487 = vpack.c.b16 %v7317, %v7315
  %v7488 = vpack.c.b16 %v7320, %v7318
  %v7489 = vpack.c.b16 %v7321, %v7319
  %v7490 = vpack.c.b16 %v7324, %v7322
  %v7491 = vpack.c.b16 %v7325, %v7323
  %v7492 = vpack.c.b16 %v7328, %v7326
  %v7493 = vpack.c.b16 %v7329, %v7327
  %v7494 = vpack.c.b16 %v7332, %v7330
  %v7495 = vpack.c.b16 %v7333, %v7331
  %v7496 = vpack.c.b16 %v7336, %v7334
  %v7497 = vpack.c.b16 %v7337, %v7335
  %7658 = vmatprep.subr.bf16.mxu0 %v7339
  %7659 = vmatpush1.bf16.msra.mxu0 %v7338
  %7660 = vmatprep.subr.bf16.mxu0 %v7341
  %7661 = vmatpush1.bf16.msra.mxu0 %v7340
  %7662 = vmatprep.subr.bf16.mxu0 %v7343
  %7663 = vmatpush1.bf16.msra.mxu0 %v7342
  %7664 = vmatprep.subr.bf16.mxu0 %v7345
  %7665 = vmatpush1.bf16.msra.mxu0 %v7344
  %7666 = vmatprep.subr.bf16.mxu0 %v7347
  %7667 = vmatpush1.bf16.msra.mxu0 %v7346
  %7668 = vmatprep.subr.bf16.mxu0 %v7349
  %7669 = vmatpush1.bf16.msra.mxu0 %v7348
  %7670 = vmatprep.subr.bf16.mxu0 %v7351
  %7671 = vmatpush1.bf16.msra.mxu0 %v7350
  %7672 = vmatprep.subr.bf16.mxu0 %v7353
  %7673 = vmatpush1.bf16.msra.mxu0 %v7352
  %7674 = vmatprep.subr.bf16.mxu0 %v7355
  %7675 = vmatpush1.bf16.msra.mxu0 %v7354
  %7676 = vmatprep.subr.bf16.mxu0 %v7357
  %7677 = vmatpush1.bf16.msra.mxu0 %v7356
  %7678 = vmatprep.subr.bf16.mxu0 %v7359
  %7679 = vmatpush1.bf16.msra.mxu0 %v7358
  %7680 = vmatprep.subr.bf16.mxu0 %v7361
  %7681 = vmatpush1.bf16.msra.mxu0 %v7360
  %7682 = vmatprep.subr.bf16.mxu0 %v7363
  %7683 = vmatpush1.bf16.msra.mxu0 %v7362
  %7684 = vmatprep.subr.bf16.mxu0 %v7365
  %7685 = vmatpush1.bf16.msra.mxu0 %v7364
  %7686 = vmatprep.subr.bf16.mxu0 %v7367
  %7687 = vmatpush1.bf16.msra.mxu0 %v7366
  %7688 = vmatprep.subr.bf16.mxu0 %v7369
  %7689 = vmatpush1.bf16.msra.mxu0 %v7368
  %7690 = vmatprep.mubr.bf16.mxu0 %v6677
  %7691 = vmatmul.mubr.bf16.gmra.mrb[0].mxu0 %v6676
  %v7692 = vpop.f32.mrb[0].mxu0
  %v7693 = vadd.f32 %v6851, %v7692
  %v7694 = vpop.f32.mrb[0].mxu0
  %v7695 = vadd.f32 %v6855, %v7694
  %v7696 = vpop.f32.mrb[0].mxu0
  %v7697 = vpop.f32.mrb[0].mxu0
  %7698 = vdwg.mxu0
  %7699 = vmatprep.subr.bf16.mxu0 %v7371
  %7700 = vmatpush1.bf16.msra.mxu0 %v7370
  %7701 = vmatprep.subr.bf16.mxu0 %v7373
  %7702 = vmatpush1.bf16.msra.mxu0 %v7372
  %7703 = vmatprep.subr.bf16.mxu0 %v7375
  %7704 = vmatpush1.bf16.msra.mxu0 %v7374
  %7705 = vmatprep.subr.bf16.mxu0 %v7377
  %7706 = vmatpush1.bf16.msra.mxu0 %v7376
  %7707 = vmatprep.subr.bf16.mxu0 %v7379
  %7708 = vmatpush1.bf16.msra.mxu0 %v7378
  %7709 = vmatprep.subr.bf16.mxu0 %v7381
  %7710 = vmatpush1.bf16.msra.mxu0 %v7380
  %7711 = vmatprep.subr.bf16.mxu0 %v7383
  %7712 = vmatpush1.bf16.msra.mxu0 %v7382
  %7713 = vmatprep.subr.bf16.mxu0 %v7385
  %7714 = vmatpush1.bf16.msra.mxu0 %v7384
  %7715 = vmatprep.subr.bf16.mxu0 %v7387
  %7716 = vmatpush1.bf16.msra.mxu0 %v7386
  %7717 = vmatprep.subr.bf16.mxu0 %v7389
  %7718 = vmatpush1.bf16.msra.mxu0 %v7388
  %7719 = vmatprep.subr.bf16.mxu0 %v7391
  %7720 = vmatpush1.bf16.msra.mxu0 %v7390
  %7721 = vmatprep.subr.bf16.mxu0 %v7393
  %7722 = vmatpush1.bf16.msra.mxu0 %v7392
  %7723 = vmatprep.subr.bf16.mxu0 %v7395
  %7724 = vmatpush1.bf16.msra.mxu0 %v7394
  %7725 = vmatprep.subr.bf16.mxu0 %v7397
  %7726 = vmatpush1.bf16.msra.mxu0 %v7396
  %7727 = vmatprep.subr.bf16.mxu0 %v7399
  %7728 = vmatpush1.bf16.msra.mxu0 %v7398
  %7729 = vmatprep.subr.bf16.mxu0 %v7401
  %7730 = vmatpush1.bf16.msra.mxu0 %v7400
  %7731 = vmatprep.mubr.bf16.mxu0 %v6679
  %7732 = vmatmul.mubr.bf16.gmra.mrb[0].mxu0 %v6678
  %v7733 = vpop.f32.mrb[0].mxu0
  %v7734 = vadd.f32 %v7693, %v7733
  %v7735 = vpop.f32.mrb[0].mxu0
  %v7736 = vadd.f32 %v7695, %v7735
  %v7737 = vpop.f32.mrb[0].mxu0
  %v7738 = vpop.f32.mrb[0].mxu0
  %7739 = vdwg.mxu0
  %7740 = vmatprep.subr.bf16.mxu0 %v7403
  %7741 = vmatpush1.bf16.msra.mxu0 %v7402
  %7742 = vmatprep.subr.bf16.mxu0 %v7405
  %7743 = vmatpush1.bf16.msra.mxu0 %v7404
  %7744 = vmatprep.subr.bf16.mxu0 %v7407
  %7745 = vmatpush1.bf16.msra.mxu0 %v7406
  %7746 = vmatprep.subr.bf16.mxu0 %v7409
  %7747 = vmatpush1.bf16.msra.mxu0 %v7408
  %7748 = vmatprep.subr.bf16.mxu0 %v7411
  %7749 = vmatpush1.bf16.msra.mxu0 %v7410
  %7750 = vmatprep.subr.bf16.mxu0 %v7413
  %7751 = vmatpush1.bf16.msra.mxu0 %v7412
  %7752 = vmatprep.subr.bf16.mxu0 %v7415
  %7753 = vmatpush1.bf16.msra.mxu0 %v7414
  %7754 = vmatprep.subr.bf16.mxu0 %v7417
  %7755 = vmatpush1.bf16.msra.mxu0 %v7416
  %7756 = vmatprep.subr.bf16.mxu0 %v7419
  %7757 = vmatpush1.bf16.msra.mxu0 %v7418
  %7758 = vmatprep.subr.bf16.mxu0 %v7421
  %7759 = vmatpush1.bf16.msra.mxu0 %v7420
  %7760 = vmatprep.subr.bf16.mxu0 %v7423
  %7761 = vmatpush1.bf16.msra.mxu0 %v7422
  %7762 = vmatprep.subr.bf16.mxu0 %v7425
  %7763 = vmatpush1.bf16.msra.mxu0 %v7424
  %7764 = vmatprep.subr.bf16.mxu0 %v7427
  %7765 = vmatpush1.bf16.msra.mxu0 %v7426
  %7766 = vmatprep.subr.bf16.mxu0 %v7429
  %7767 = vmatpush1.bf16.msra.mxu0 %v7428
  %7768 = vmatprep.subr.bf16.mxu0 %v7431
  %7769 = vmatpush1.bf16.msra.mxu0 %v7430
  %7770 = vmatprep.subr.bf16.mxu0 %v7433
  %7771 = vmatpush1.bf16.msra.mxu0 %v7432
  %7772 = vmatprep.mubr.bf16.mxu0 %v6681
  %7773 = vmatmul.mubr.bf16.gmra.mrb[0].mxu0 %v6680
  %v7774 = vpop.f32.mrb[0].mxu0
  %v7775 = vadd.f32 %v7734, %v7774
  %v7776 = vpop.f32.mrb[0].mxu0
  %v7777 = vadd.f32 %v7736, %v7776
  %v7778 = vpop.f32.mrb[0].mxu0
  %v7779 = vpop.f32.mrb[0].mxu0
  %7780 = vdwg.mxu0
  %7781 = vmatprep.subr.bf16.mxu0 %v7435
  %7782 = vmatpush1.bf16.msra.mxu0 %v7434
  %7783 = vmatprep.subr.bf16.mxu0 %v7437
  %7784 = vmatpush1.bf16.msra.mxu0 %v7436
  %7785 = vmatprep.subr.bf16.mxu0 %v7439
  %7786 = vmatpush1.bf16.msra.mxu0 %v7438
  %7787 = vmatprep.subr.bf16.mxu0 %v7441
  %7788 = vmatpush1.bf16.msra.mxu0 %v7440
  %7789 = vmatprep.subr.bf16.mxu0 %v7443
  %7790 = vmatpush1.bf16.msra.mxu0 %v7442
  %7791 = vmatprep.subr.bf16.mxu0 %v7445
  %7792 = vmatpush1.bf16.msra.mxu0 %v7444
  %7793 = vmatprep.subr.bf16.mxu0 %v7447
  %7794 = vmatpush1.bf16.msra.mxu0 %v7446
  %7795 = vmatprep.subr.bf16.mxu0 %v7449
  %7796 = vmatpush1.bf16.msra.mxu0 %v7448
  %7797 = vmatprep.subr.bf16.mxu0 %v7451
  %7798 = vmatpush1.bf16.msra.mxu0 %v7450
  %7799 = vmatprep.subr.bf16.mxu0 %v7453
  %7800 = vmatpush1.bf16.msra.mxu0 %v7452
  %7801 = vmatprep.subr.bf16.mxu0 %v7455
  %7802 = vmatpush1.bf16.msra.mxu0 %v7454
  %7803 = vmatprep.subr.bf16.mxu0 %v7457
  %7804 = vmatpush1.bf16.msra.mxu0 %v7456
  %7805 = vmatprep.subr.bf16.mxu0 %v7459
  %7806 = vmatpush1.bf16.msra.mxu0 %v7458
  %7807 = vmatprep.subr.bf16.mxu0 %v7461
  %7808 = vmatpush1.bf16.msra.mxu0 %v7460
  %7809 = vmatprep.subr.bf16.mxu0 %v7463
  %7810 = vmatpush1.bf16.msra.mxu0 %v7462
  %7811 = vmatprep.subr.bf16.mxu0 %v7465
  %7812 = vmatpush1.bf16.msra.mxu0 %v7464
  %7813 = vmatprep.mubr.bf16.mxu0 %v6683
  %7814 = vmatmul.mubr.bf16.gmra.mrb[0].mxu0 %v6682
  %v7815 = vpop.f32.mrb[0].mxu0
  %v7816 = vadd.f32 %v7775, %v7815
  %v7817 = vpop.f32.mrb[0].mxu0
  %v7818 = vadd.f32 %v7777, %v7817
  %v7819 = vpop.f32.mrb[0].mxu0
  %v7820 = vpop.f32.mrb[0].mxu0
  %7821 = vdwg.mxu0
  %7822 = vmatprep.subr.bf16.mxu0 %v7467
  %7823 = vmatpush1.bf16.msra.mxu0 %v7466
  %7824 = vmatprep.subr.bf16.mxu0 %v7469
  %7825 = vmatpush1.bf16.msra.mxu0 %v7468
  %7826 = vmatprep.subr.bf16.mxu0 %v7471
  %7827 = vmatpush1.bf16.msra.mxu0 %v7470
  %7828 = vmatprep.subr.bf16.mxu0 %v7473
  %7829 = vmatpush1.bf16.msra.mxu0 %v7472
  %7830 = vmatprep.subr.bf16.mxu0 %v7475
  %7831 = vmatpush1.bf16.msra.mxu0 %v7474
  %7832 = vmatprep.subr.bf16.mxu0 %v7477
  %7833 = vmatpush1.bf16.msra.mxu0 %v7476
  %7834 = vmatprep.subr.bf16.mxu0 %v7479
  %7835 = vmatpush1.bf16.msra.mxu0 %v7478
  %7836 = vmatprep.subr.bf16.mxu0 %v7481
  %7837 = vmatpush1.bf16.msra.mxu0 %v7480
  %7838 = vmatprep.subr.bf16.mxu0 %v7483
  %7839 = vmatpush1.bf16.msra.mxu0 %v7482
  %7840 = vmatprep.subr.bf16.mxu0 %v7485
  %7841 = vmatpush1.bf16.msra.mxu0 %v7484
  %7842 = vmatprep.subr.bf16.mxu0 %v7487
  %7843 = vmatpush1.bf16.msra.mxu0 %v7486
  %7844 = vmatprep.subr.bf16.mxu0 %v7489
  %7845 = vmatpush1.bf16.msra.mxu0 %v7488
  %7846 = vmatprep.subr.bf16.mxu0 %v7491
  %7847 = vmatpush1.bf16.msra.mxu0 %v7490
  %7848 = vmatprep.subr.bf16.mxu0 %v7493
  %7849 = vmatpush1.bf16.msra.mxu0 %v7492
  %7850 = vmatprep.subr.bf16.mxu0 %v7495
  %7851 = vmatpush1.bf16.msra.mxu0 %v7494
  %7852 = vmatprep.subr.bf16.mxu0 %v7497
  %7853 = vmatpush1.bf16.msra.mxu0 %v7496
  %7854 = vmatprep.mubr.bf16.mxu0 %v6685
  %7855 = vmatmul.mubr.bf16.gmra.mrb[0].mxu0 %v6684
  %v7856 = vpop.f32.mrb[0].mxu0
  %v7857 = vadd.f32 %v7816, %v7856
  %v7858 = vpop.f32.mrb[0].mxu0
  %v7859 = vadd.f32 %v7818, %v7858
  %v7860 = vpop.f32.mrb[0].mxu0
  %v7861 = vpop.f32.mrb[0].mxu0
  %7862 = vdwg.mxu0
  %v7863 = vsub.f32 0.0, %v7857
  %v7864 = vsub.f32 0.0, %v7859
  %v7865 = vmul.f32 %v7863, 1.442695
  %v7866 = vpow.pop %v7865
  %v7867 = vmul.f32 %v7864, 1.442695
  %v7868 = vpow.pop %v7867
  %v7869 = vadd.f32 %v7866, 1.0
  %v7870 = vadd.f32 %v7868, 1.0
  %v7871 = vrcp.pop %v7869
  %v7872 = vrcp.pop %v7870
  %7873 = vst [vmem:[%s7] sm:$0xff] %v7871
  %7874 = vst [vmem:[%s7 + $0x8] sm:$0xff] %v7872
  // Predicated region
  $region30: #{generator_forward.1} parent=0 // pred_check
    _
  $region31: #{generator_forward.1} parent=0 // pred_check_branch
    %7876 = sbr.rel (0) target = $region33
  $region32: #{generator_forward.1} parent=0 // pred_region
    _
  $region33: #{generator_forward.1} parent=0 // pred_fallthru
    _
  // Predicated region
  $region34: #{generator_forward.1} parent=0 // pred_check
    _
  $region35: #{generator_forward.1} parent=0 // pred_check_branch
    %7878 = sbr.rel (0) target = $region37
  $region36: #{generator_forward.1} parent=0 // pred_region
    _
  $region37: #{generator_forward.1} parent=0 // pred_fallthru
    _

</llo_original>
